<compile_context>
chip_gen: v6e
topology: v6e:2x2x1
jax: 0.10.0
libtpu: 0.0.40
codegen_flags: <defaults>
</compile_context>

<pallas_src>
import functools

import jax
import jax.numpy as jnp
from jax.experimental import pallas as pl
from jax.experimental.pallas import tpu as pltpu

# ----------------------------------------------------------------------------- #
# Model configuration (synthetic small BERT-style encoder)
# ----------------------------------------------------------------------------- #
HIDDEN = 32
N_LAYERS = 2
N_HEADS = 2
HEAD_DIM = HIDDEN // N_HEADS
INTERMEDIATE = 128
VOCAB = 100
MAX_POS = 64
TYPE_VOCAB = 2
LABEL_DIM = 4
LN_EPS = 1e-12
LANE = 128

# ---- embedding-table slab layout: [ETAB_ROWS, HIDDEN] f32 -------------------- #
WORD_OFF = 0                       # rows [0, 100)
POS_OFF = 104                      # rows [104, 168)  (8-aligned)
TYPE_OFF = POS_OFF + MAX_POS       # rows [168, 170)
ETAB_ROWS = 176

# ---- weight slab layout: [WSLAB_ROWS, 128] bf16 ------------------------------ #
W_Q, W_K, W_V, W_O, W_F1, W_F2 = 0, 32, 64, 96, 128, 160
W_PER_LAYER = 288                  # 5*32 + 128
W_CLS = N_LAYERS * W_PER_LAYER     # 576
WSLAB_ROWS = W_CLS + HIDDEN        # 608

# ---- small-param slab layout: [PSLAB_ROWS, 128] f32 -------------------------- #
P_EMB_G, P_EMB_B, P_BASE = 0, 1, 2
PB_QB, PB_KB, PB_VB, PB_OB = 0, 1, 2, 3
PB_LN1_G, PB_LN1_B, PB_F1B, PB_F2B, PB_LN2_G, PB_LN2_B = 4, 5, 6, 7, 8, 9
P_PER_LAYER = 10
P_CLS_B = P_BASE + N_LAYERS * P_PER_LAYER   # 22
PSLAB_ROWS = 24


# ----------------------------------------------------------------------------- #
# Single fused kernel: embeddings -> LN -> 2 encoder layers -> CLS -> classifier
# ----------------------------------------------------------------------------- #
def _model_kernel(ids_ref, tts_ref,                 # SMEM scalar-prefetch [B,S] i32
                  amask_ref, etab_ref, wslab_ref, pslab_ref,   # VMEM inputs
                  out_ref,                          # VMEM output [B, 128]
                  xbuf_ref,                         # VMEM scratch [B*S, HIDDEN]
                  *, batch, seq):
    hidden = HIDDEN
    hd = HEAD_DIM
    m = batch * seq
    scale = 1.0 / (hd ** 0.5)

    def bf(y):
        return y.astype(jnp.bfloat16)

    def ln(y, grow, brow):                          # f32 layernorm, params from pslab
        g = pslab_ref[grow:grow + 1, :hidden]
        b = pslab_ref[brow:brow + 1, :hidden]
        mu = jnp.mean(y, axis=-1, keepdims=True)
        var = jnp.mean(jnp.square(y - mu), axis=-1, keepdims=True)
        return (y - mu) * jax.lax.rsqrt(var + LN_EPS) * g + b

    def gelu(y):                                    # tanh-approx GELU (f32)
        return 0.5 * y * (1.0 + jnp.tanh(0.7978845608028654
                                         * (y + 0.044715 * y * y * y)))

    # ---- embeddings: gather word+type rows (dynamic) into scratch, add pos ---- #
    for t in range(m):
        b_i, s_i = divmod(t, seq)
        wrow = etab_ref[pl.ds(WORD_OFF + ids_ref[b_i, s_i], 1), :]
        trow = etab_ref[pl.ds(TYPE_OFF + tts_ref[b_i, s_i], 1), :]
        xbuf_ref[t:t + 1, :] = wrow + trow
    pos = etab_ref[POS_OFF:POS_OFF + seq, :]                       # [S, H] static
    emb = xbuf_ref[...] + jnp.concatenate([pos] * batch, axis=0)   # [M, H]
    x = ln(emb, P_EMB_G, P_EMB_B)

    # ---- attention-mask bias, built in-kernel -------------------------------- #
    att = amask_ref[...].astype(jnp.float32)        # [B, 1, S]
    bias = (1.0 - att) * -1e9                       # [B, 1, S]

    # ---- per-head lane masks (hoisted; VPU selects instead of lane slicing) --- #
    lane = jax.lax.broadcasted_iota(jnp.int32, (1, 1, hidden), 2)
    head_masks = [(lane >= h * hd) & (lane < (h + 1) * hd) for h in range(N_HEADS)]

    for l in range(N_LAYERS):                       # static unroll
        wb = l * W_PER_LAYER
        pb = P_BASE + l * P_PER_LAYER
        x_bf = bf(x)

        # Q/K/V projections: bf16 operands, f32 accumulation, weights from slab.
        q = jnp.dot(x_bf, wslab_ref[wb + W_Q:wb + W_Q + hidden, :hidden],
                    preferred_element_type=jnp.float32) + pslab_ref[pb + PB_QB:pb + PB_QB + 1, :hidden]
        k = jnp.dot(x_bf, wslab_ref[wb + W_K:wb + W_K + hidden, :hidden],
                    preferred_element_type=jnp.float32) + pslab_ref[pb + PB_KB:pb + PB_KB + 1, :hidden]
        v = jnp.dot(x_bf, wslab_ref[wb + W_V:wb + W_V + hidden, :hidden],
                    preferred_element_type=jnp.float32) + pslab_ref[pb + PB_VB:pb + PB_VB + 1, :hidden]
        q3 = bf(q.reshape(batch, seq, hidden))
        k3 = k.reshape(batch, seq, hidden)
        v3 = v.reshape(batch, seq, hidden)

        # Per-head attention via lane masking (no 16-lane slices, no concat).
        ctx = None
        for hm in head_masks:
            k_h = bf(jnp.where(hm, k3, 0.0))
            v_h = bf(jnp.where(hm, v3, 0.0))
            s = jnp.einsum("bqd,bkd->bqk", q3, k_h,
                           preferred_element_type=jnp.float32) * scale + bias
            s = s - jnp.max(s, axis=-1, keepdims=True)
            p = jnp.exp(s)
            p = p / jnp.sum(p, axis=-1, keepdims=True)             # exact softmax
            c = jnp.einsum("bqk,bkd->bqd", bf(p), v_h,
                           preferred_element_type=jnp.float32)
            ctx = c if ctx is None else ctx + c

        ctx2 = bf(ctx.reshape(m, hidden))
        attn = jnp.dot(ctx2, wslab_ref[wb + W_O:wb + W_O + hidden, :hidden],
                       preferred_element_type=jnp.float32) + pslab_ref[pb + PB_OB:pb + PB_OB + 1, :hidden]
        x = ln(x + attn, pb + PB_LN1_G, pb + PB_LN1_B)             # residual + LN

        # FFN
        h1 = jnp.dot(bf(x), wslab_ref[wb + W_F1:wb + W_F1 + hidden, :INTERMEDIATE],
                     preferred_element_type=jnp.float32) + pslab_ref[pb + PB_F1B:pb + PB_F1B + 1, :INTERMEDIATE]
        h1 = gelu(h1)
        ffn = jnp.dot(bf(h1), wslab_ref[wb + W_F2:wb + W_F2 + INTERMEDIATE, :hidden],
                      preferred_element_type=jnp.float32) + pslab_ref[pb + PB_F2B:pb + PB_F2B + 1, :hidden]
        x = ln(x + ffn, pb + PB_LN2_G, pb + PB_LN2_B)              # residual + LN

    # ---- [CLS] pooling (static row picks, no 3-D reshape) + classifier ------- #
    pooled = jnp.concatenate([x[b * seq:b * seq + 1, :] for b in range(batch)], axis=0)   # [B, H]
    logits = (jnp.dot(bf(pooled), wslab_ref[W_CLS:W_CLS + hidden, :LABEL_DIM],
                      preferred_element_type=jnp.float32)
              + pslab_ref[P_CLS_B:P_CLS_B + 1, :LABEL_DIM])                               # [B, 4]

    # Lane-dense single output slab: [pooled | logits | zeros] -> one full store.
    pad = jnp.zeros((batch, LANE - hidden - LABEL_DIM), jnp.float32)
    out_ref[...] = jnp.concatenate([pooled, logits, pad], axis=-1).astype(out_ref.dtype)


# ----------------------------------------------------------------------------- #
# Wrapper: one pallas_call for the whole forward pass
# ----------------------------------------------------------------------------- #
def encoder_classifier(params, input_ids, token_type_ids, attention_mask, *, batch, seq):
    amask = attention_mask.reshape(batch, 1, seq).astype(jnp.int32)   # free reshape
    kernel = functools.partial(_model_kernel, batch=batch, seq=seq)

    grid_spec = pltpu.PrefetchScalarGridSpec(
        num_scalar_prefetch=2,                    # input_ids, token_type_ids -> SMEM
        grid=(1,),
        in_specs=[
            pl.BlockSpec((batch, 1, seq), lambda i, *_: (0, 0, 0)),
            pl.BlockSpec((ETAB_ROWS, HIDDEN), lambda i, *_: (0, 0)),
            pl.BlockSpec((WSLAB_ROWS, LANE), lambda i, *_: (0, 0)),
            pl.BlockSpec((PSLAB_ROWS, LANE), lambda i, *_: (0, 0)),
        ],
        out_specs=pl.BlockSpec((batch, LANE), lambda i, *_: (0, 0)),
        scratch_shapes=[pltpu.VMEM((batch * seq, HIDDEN), jnp.float32)],
    )

    return pl.pallas_call(
        kernel,
        out_shape=jax.ShapeDtypeStruct((batch, LANE), jnp.float32),
        grid_spec=grid_spec,
        compiler_params=pltpu.CompilerParams(dimension_semantics=("arbitrary",)),
    )(input_ids.astype(jnp.int32), token_type_ids.astype(jnp.int32),
      amask, params["etab"], params["wslab"], params["pslab"])


# ----------------------------------------------------------------------------- #
# Parameters (synthetic, deterministic), pre-packed into 3 slabs at init time
# ----------------------------------------------------------------------------- #
def init_params(key):
    ks = jax.random.split(key, 3 + N_LAYERS + 1)

    def nrm(k, shape):
        return jax.random.normal(k, shape, jnp.float32) * 0.02

    # Embedding-table slab (f32).
    etab = jnp.zeros((ETAB_ROWS, HIDDEN), jnp.float32)
    etab = etab.at[WORD_OFF:WORD_OFF + VOCAB].set(nrm(ks[0], (VOCAB, HIDDEN)))
    etab = etab.at[POS_OFF:POS_OFF + MAX_POS].set(nrm(ks[1], (MAX_POS, HIDDEN)))
    etab = etab.at[TYPE_OFF:TYPE_OFF + TYPE_VOCAB].set(nrm(ks[2], (TYPE_VOCAB, HIDDEN)))

    # Weight slab (bf16) — all matrices lane-offset 0.
    wslab = jnp.zeros((WSLAB_ROWS, LANE), jnp.float32)
    for l in range(N_LAYERS):
        base = l * W_PER_LAYER
        kq, kk, kv, ko, k1, k2 = jax.random.split(ks[3 + l], 6)
        wslab = wslab.at[base + W_Q:base + W_Q + HIDDEN, :HIDDEN].set(nrm(kq, (HIDDEN, HIDDEN)))
        wslab = wslab.at[base + W_K:base + W_K + HIDDEN, :HIDDEN].set(nrm(kk, (HIDDEN, HIDDEN)))
        wslab = wslab.at[base + W_V:base + W_V + HIDDEN, :HIDDEN].set(nrm(kv, (HIDDEN, HIDDEN)))
        wslab = wslab.at[base + W_O:base + W_O + HIDDEN, :HIDDEN].set(nrm(ko, (HIDDEN, HIDDEN)))
        wslab = wslab.at[base + W_F1:base + W_F1 + HIDDEN, :INTERMEDIATE].set(nrm(k1, (HIDDEN, INTERMEDIATE)))
        wslab = wslab.at[base + W_F2:base + W_F2 + INTERMEDIATE, :HIDDEN].set(nrm(k2, (INTERMEDIATE, HIDDEN)))
    wslab = wslab.at[W_CLS:W_CLS + HIDDEN, :LABEL_DIM].set(nrm(ks[3 + N_LAYERS], (HIDDEN, LABEL_DIM)))
    wslab = wslab.astype(jnp.bfloat16)

    # Small-param slab (f32): LN gammas = 1, all biases / betas = 0.
    pslab = jnp.zeros((PSLAB_ROWS, LANE), jnp.float32)
    pslab = pslab.at[P_EMB_G, :HIDDEN].set(1.0)
    for l in range(N_LAYERS):
        pb = P_BASE + l * P_PER_LAYER
        pslab = pslab.at[pb + PB_LN1_G, :HIDDEN].set(1.0)
        pslab = pslab.at[pb + PB_LN2_G, :HIDDEN].set(1.0)

    return {"etab": etab, "wslab": wslab, "pslab": pslab}


@jax.jit
def pt_forward(params, input_ids, token_type_ids, attention_mask):
    """Equivalent of PT.forward: returns (pooled_output, logits, None)."""
    B, S = input_ids.shape
    combo = encoder_classifier(params, input_ids, token_type_ids, attention_mask,
                               batch=B, seq=S)
    pooled = combo[:, :HIDDEN]
    logits = combo[:, HIDDEN:HIDDEN + LABEL_DIM]
    return pooled, logits, None


# ----------------------------------------------------------------------------- #
# Main
# ----------------------------------------------------------------------------- #
if __name__ == "__main__":
    key = jax.random.PRNGKey(0)
    k_param, k_ids, k_type = jax.random.split(key, 3)

    B, S = 2, 8
    params = init_params(k_param)

    input_ids = jax.random.randint(k_ids, (B, S), 0, VOCAB, dtype=jnp.int32)
    token_type_ids = jax.random.randint(k_type, (B, S), 0, TYPE_VOCAB, dtype=jnp.int32)
    attention_mask = jnp.ones((B, S), jnp.int32).at[1, S - 2:].set(0)  # pad last 2 of batch 1

    pooled, logits, _ = pt_forward(params, input_ids, token_type_ids, attention_mask)
    jax.block_until_ready((pooled, logits))

    assert pooled.shape == (B, HIDDEN)
    assert logits.shape == (B, LABEL_DIM)
    assert bool(jnp.isfinite(pooled).all()) and bool(jnp.isfinite(logits).all())
    print("KERNEL_OK")
</pallas_src>

<mosaic_0001>
module attributes {stable_mosaic.version = 11 : i64} {
  func.func @_model_kernel(%arg0: i32, %arg1: memref<2x8xi32, #tpu.memory_space<smem>>, %arg2: memref<2x8xi32, #tpu.memory_space<smem>>, %arg3: memref<2x1x8xi32, #tpu.memory_space<vmem>>, %arg4: memref<176x32xf32, #tpu.memory_space<vmem>>, %arg5: memref<608x128xbf16, #tpu.memory_space<vmem>>, %arg6: memref<24x128xf32, #tpu.memory_space<vmem>>, %arg7: memref<2x128xf32, #tpu.memory_space<vmem>>, %arg8: memref<16x32xf32, #tpu.memory_space<vmem>>) attributes {dimension_semantics = [#tpu.dimension_semantics<arbitrary>], iteration_bounds = array<i64: 1>, scalar_prefetch = 2 : i64, scratch_operands = 1 : i64, tpu.core_type = #tpu.core_type<tc>, window_params = [{pipeline_mode = #tpu.pipeline_mode<synchronous>, transform_indices = @transform_0, window_bounds = array<i64: 2, 1, 8>}, {pipeline_mode = #tpu.pipeline_mode<synchronous>, transform_indices = @transform_1, window_bounds = array<i64: 176, 32>}, {pipeline_mode = #tpu.pipeline_mode<synchronous>, transform_indices = @transform_2, window_bounds = array<i64: 608, 128>}, {pipeline_mode = #tpu.pipeline_mode<synchronous>, transform_indices = @transform_3, window_bounds = array<i64: 24, 128>}, {pipeline_mode = #tpu.pipeline_mode<synchronous>, transform_indices = @transform_4, window_bounds = array<i64: 2, 128>}]} {
    %c0 = arith.constant 0 : index
    %c0_0 = arith.constant 0 : index
    %0 = memref.load %arg1[%c0, %c0_0] : memref<2x8xi32, #tpu.memory_space<smem>>
    %c0_i32 = arith.constant 0 : i32
    %1 = arith.addi %c0_i32, %0 : i32
    %2 = arith.index_cast %1 : i32 to index
    %c0_1 = arith.constant 0 : index
    %3 = vector.load %arg4[%2, %c0_1] : memref<176x32xf32, #tpu.memory_space<vmem>>, vector<1x32xf32>
    %c0_2 = arith.constant 0 : index
    %c0_3 = arith.constant 0 : index
    %4 = memref.load %arg2[%c0_2, %c0_3] : memref<2x8xi32, #tpu.memory_space<smem>>
    %c168_i32 = arith.constant 168 : i32
    %5 = arith.addi %c168_i32, %4 : i32
    %6 = arith.index_cast %5 : i32 to index
    %c0_4 = arith.constant 0 : index
    %7 = vector.load %arg4[%6, %c0_4] : memref<176x32xf32, #tpu.memory_space<vmem>>, vector<1x32xf32>
    %8 = arith.addf %3, %7 : vector<1x32xf32>
    %c0_5 = arith.constant 0 : index
    %c0_6 = arith.constant 0 : index
    %9 = vector.load %arg8[%c0_5, %c0_6] : memref<16x32xf32, #tpu.memory_space<vmem>>, vector<1x32xf32>
    tpu.vector_store %arg8[%c0_5, %c0_6], %8 {strides = array<i32>} : memref<16x32xf32, #tpu.memory_space<vmem>>, vector<1x32xf32>,
    %c0_7 = arith.constant 0 : index
    %c1 = arith.constant 1 : index
    %10 = memref.load %arg1[%c0_7, %c1] : memref<2x8xi32, #tpu.memory_space<smem>>
    %c0_i32_8 = arith.constant 0 : i32
    %11 = arith.addi %c0_i32_8, %10 : i32
    %12 = arith.index_cast %11 : i32 to index
    %c0_9 = arith.constant 0 : index
    %13 = vector.load %arg4[%12, %c0_9] : memref<176x32xf32, #tpu.memory_space<vmem>>, vector<1x32xf32>
    %c0_10 = arith.constant 0 : index
    %c1_11 = arith.constant 1 : index
    %14 = memref.load %arg2[%c0_10, %c1_11] : memref<2x8xi32, #tpu.memory_space<smem>>
    %c168_i32_12 = arith.constant 168 : i32
    %15 = arith.addi %c168_i32_12, %14 : i32
    %16 = arith.index_cast %15 : i32 to index
    %c0_13 = arith.constant 0 : index
    %17 = vector.load %arg4[%16, %c0_13] : memref<176x32xf32, #tpu.memory_space<vmem>>, vector<1x32xf32>
    %18 = arith.addf %13, %17 : vector<1x32xf32>
    %c1_14 = arith.constant 1 : index
    %c0_15 = arith.constant 0 : index
    %19 = vector.load %arg8[%c1_14, %c0_15] : memref<16x32xf32, #tpu.memory_space<vmem>>, vector<1x32xf32>
    tpu.vector_store %arg8[%c1_14, %c0_15], %18 {strides = array<i32>} : memref<16x32xf32, #tpu.memory_space<vmem>>, vector<1x32xf32>,
    %c0_16 = arith.constant 0 : index
    %c2 = arith.constant 2 : index
    %20 = memref.load %arg1[%c0_16, %c2] : memref<2x8xi32, #tpu.memory_space<smem>>
    %c0_i32_17 = arith.constant 0 : i32
    %21 = arith.addi %c0_i32_17, %20 : i32
    %22 = arith.index_cast %21 : i32 to index
    %c0_18 = arith.constant 0 : index
    %23 = vector.load %arg4[%22, %c0_18] : memref<176x32xf32, #tpu.memory_space<vmem>>, vector<1x32xf32>
    %c0_19 = arith.constant 0 : index
    %c2_20 = arith.constant 2 : index
    %24 = memref.load %arg2[%c0_19, %c2_20] : memref<2x8xi32, #tpu.memory_space<smem>>
    %c168_i32_21 = arith.constant 168 : i32
    %25 = arith.addi %c168_i32_21, %24 : i32
    %26 = arith.index_cast %25 : i32 to index
    %c0_22 = arith.constant 0 : index
    %27 = vector.load %arg4[%26, %c0_22] : memref<176x32xf32, #tpu.memory_space<vmem>>, vector<1x32xf32>
    %28 = arith.addf %23, %27 : vector<1x32xf32>
    %c2_23 = arith.constant 2 : index
    %c0_24 = arith.constant 0 : index
    %29 = vector.load %arg8[%c2_23, %c0_24] : memref<16x32xf32, #tpu.memory_space<vmem>>, vector<1x32xf32>
    tpu.vector_store %arg8[%c2_23, %c0_24], %28 {strides = array<i32>} : memref<16x32xf32, #tpu.memory_space<vmem>>, vector<1x32xf32>,
    %c0_25 = arith.constant 0 : index
    %c3 = arith.constant 3 : index
    %30 = memref.load %arg1[%c0_25, %c3] : memref<2x8xi32, #tpu.memory_space<smem>>
    %c0_i32_26 = arith.constant 0 : i32
    %31 = arith.addi %c0_i32_26, %30 : i32
    %32 = arith.index_cast %31 : i32 to index
    %c0_27 = arith.constant 0 : index
    %33 = vector.load %arg4[%32, %c0_27] : memref<176x32xf32, #tpu.memory_space<vmem>>, vector<1x32xf32>
    %c0_28 = arith.constant 0 : index
    %c3_29 = arith.constant 3 : index
    %34 = memref.load %arg2[%c0_28, %c3_29] : memref<2x8xi32, #tpu.memory_space<smem>>
    %c168_i32_30 = arith.constant 168 : i32
    %35 = arith.addi %c168_i32_30, %34 : i32
    %36 = arith.index_cast %35 : i32 to index
    %c0_31 = arith.constant 0 : index
    %37 = vector.load %arg4[%36, %c0_31] : memref<176x32xf32, #tpu.memory_space<vmem>>, vector<1x32xf32>
    %38 = arith.addf %33, %37 : vector<1x32xf32>
    %c3_32 = arith.constant 3 : index
    %c0_33 = arith.constant 0 : index
    %39 = vector.load %arg8[%c3_32, %c0_33] : memref<16x32xf32, #tpu.memory_space<vmem>>, vector<1x32xf32>
    tpu.vector_store %arg8[%c3_32, %c0_33], %38 {strides = array<i32>} : memref<16x32xf32, #tpu.memory_space<vmem>>, vector<1x32xf32>,
    %c0_34 = arith.constant 0 : index
    %c4 = arith.constant 4 : index
    %40 = memref.load %arg1[%c0_34, %c4] : memref<2x8xi32, #tpu.memory_space<smem>>
    %c0_i32_35 = arith.constant 0 : i32
    %41 = arith.addi %c0_i32_35, %40 : i32
    %42 = arith.index_cast %41 : i32 to index
    %c0_36 = arith.constant 0 : index
    %43 = vector.load %arg4[%42, %c0_36] : memref<176x32xf32, #tpu.memory_space<vmem>>, vector<1x32xf32>
    %c0_37 = arith.constant 0 : index
    %c4_38 = arith.constant 4 : index
    %44 = memref.load %arg2[%c0_37, %c4_38] : memref<2x8xi32, #tpu.memory_space<smem>>
    %c168_i32_39 = arith.constant 168 : i32
    %45 = arith.addi %c168_i32_39, %44 : i32
    %46 = arith.index_cast %45 : i32 to index
    %c0_40 = arith.constant 0 : index
    %47 = vector.load %arg4[%46, %c0_40] : memref<176x32xf32, #tpu.memory_space<vmem>>, vector<1x32xf32>
    %48 = arith.addf %43, %47 : vector<1x32xf32>
    %c4_41 = arith.constant 4 : index
    %c0_42 = arith.constant 0 : index
    %49 = vector.load %arg8[%c4_41, %c0_42] : memref<16x32xf32, #tpu.memory_space<vmem>>, vector<1x32xf32>
    tpu.vector_store %arg8[%c4_41, %c0_42], %48 {strides = array<i32>} : memref<16x32xf32, #tpu.memory_space<vmem>>, vector<1x32xf32>,
    %c0_43 = arith.constant 0 : index
    %c5 = arith.constant 5 : index
    %50 = memref.load %arg1[%c0_43, %c5] : memref<2x8xi32, #tpu.memory_space<smem>>
    %c0_i32_44 = arith.constant 0 : i32
    %51 = arith.addi %c0_i32_44, %50 : i32
    %52 = arith.index_cast %51 : i32 to index
    %c0_45 = arith.constant 0 : index
    %53 = vector.load %arg4[%52, %c0_45] : memref<176x32xf32, #tpu.memory_space<vmem>>, vector<1x32xf32>
    %c0_46 = arith.constant 0 : index
    %c5_47 = arith.constant 5 : index
    %54 = memref.load %arg2[%c0_46, %c5_47] : memref<2x8xi32, #tpu.memory_space<smem>>
    %c168_i32_48 = arith.constant 168 : i32
    %55 = arith.addi %c168_i32_48, %54 : i32
    %56 = arith.index_cast %55 : i32 to index
    %c0_49 = arith.constant 0 : index
    %57 = vector.load %arg4[%56, %c0_49] : memref<176x32xf32, #tpu.memory_space<vmem>>, vector<1x32xf32>
    %58 = arith.addf %53, %57 : vector<1x32xf32>
    %c5_50 = arith.constant 5 : index
    %c0_51 = arith.constant 0 : index
    %59 = vector.load %arg8[%c5_50, %c0_51] : memref<16x32xf32, #tpu.memory_space<vmem>>, vector<1x32xf32>
    tpu.vector_store %arg8[%c5_50, %c0_51], %58 {strides = array<i32>} : memref<16x32xf32, #tpu.memory_space<vmem>>, vector<1x32xf32>,
    %c0_52 = arith.constant 0 : index
    %c6 = arith.constant 6 : index
    %60 = memref.load %arg1[%c0_52, %c6] : memref<2x8xi32, #tpu.memory_space<smem>>
    %c0_i32_53 = arith.constant 0 : i32
    %61 = arith.addi %c0_i32_53, %60 : i32
    %62 = arith.index_cast %61 : i32 to index
    %c0_54 = arith.constant 0 : index
    %63 = vector.load %arg4[%62, %c0_54] : memref<176x32xf32, #tpu.memory_space<vmem>>, vector<1x32xf32>
    %c0_55 = arith.constant 0 : index
    %c6_56 = arith.constant 6 : index
    %64 = memref.load %arg2[%c0_55, %c6_56] : memref<2x8xi32, #tpu.memory_space<smem>>
    %c168_i32_57 = arith.constant 168 : i32
    %65 = arith.addi %c168_i32_57, %64 : i32
    %66 = arith.index_cast %65 : i32 to index
    %c0_58 = arith.constant 0 : index
    %67 = vector.load %arg4[%66, %c0_58] : memref<176x32xf32, #tpu.memory_space<vmem>>, vector<1x32xf32>
    %68 = arith.addf %63, %67 : vector<1x32xf32>
    %c6_59 = arith.constant 6 : index
    %c0_60 = arith.constant 0 : index
    %69 = vector.load %arg8[%c6_59, %c0_60] : memref<16x32xf32, #tpu.memory_space<vmem>>, vector<1x32xf32>
    tpu.vector_store %arg8[%c6_59, %c0_60], %68 {strides = array<i32>} : memref<16x32xf32, #tpu.memory_space<vmem>>, vector<1x32xf32>,
    %c0_61 = arith.constant 0 : index
    %c7 = arith.constant 7 : index
    %70 = memref.load %arg1[%c0_61, %c7] : memref<2x8xi32, #tpu.memory_space<smem>>
    %c0_i32_62 = arith.constant 0 : i32
    %71 = arith.addi %c0_i32_62, %70 : i32
    %72 = arith.index_cast %71 : i32 to index
    %c0_63 = arith.constant 0 : index
    %73 = vector.load %arg4[%72, %c0_63] : memref<176x32xf32, #tpu.memory_space<vmem>>, vector<1x32xf32>
    %c0_64 = arith.constant 0 : index
    %c7_65 = arith.constant 7 : index
    %74 = memref.load %arg2[%c0_64, %c7_65] : memref<2x8xi32, #tpu.memory_space<smem>>
    %c168_i32_66 = arith.constant 168 : i32
    %75 = arith.addi %c168_i32_66, %74 : i32
    %76 = arith.index_cast %75 : i32 to index
    %c0_67 = arith.constant 0 : index
    %77 = vector.load %arg4[%76, %c0_67] : memref<176x32xf32, #tpu.memory_space<vmem>>, vector<1x32xf32>
    %78 = arith.addf %73, %77 : vector<1x32xf32>
    %c7_68 = arith.constant 7 : index
    %c0_69 = arith.constant 0 : index
    %79 = vector.load %arg8[%c7_68, %c0_69] : memref<16x32xf32, #tpu.memory_space<vmem>>, vector<1x32xf32>
    tpu.vector_store %arg8[%c7_68, %c0_69], %78 {strides = array<i32>} : memref<16x32xf32, #tpu.memory_space<vmem>>, vector<1x32xf32>,
    %c1_70 = arith.constant 1 : index
    %c0_71 = arith.constant 0 : index
    %80 = memref.load %arg1[%c1_70, %c0_71] : memref<2x8xi32, #tpu.memory_space<smem>>
    %c0_i32_72 = arith.constant 0 : i32
    %81 = arith.addi %c0_i32_72, %80 : i32
    %82 = arith.index_cast %81 : i32 to index
    %c0_73 = arith.constant 0 : index
    %83 = vector.load %arg4[%82, %c0_73] : memref<176x32xf32, #tpu.memory_space<vmem>>, vector<1x32xf32>
    %c1_74 = arith.constant 1 : index
    %c0_75 = arith.constant 0 : index
    %84 = memref.load %arg2[%c1_74, %c0_75] : memref<2x8xi32, #tpu.memory_space<smem>>
    %c168_i32_76 = arith.constant 168 : i32
    %85 = arith.addi %c168_i32_76, %84 : i32
    %86 = arith.index_cast %85 : i32 to index
    %c0_77 = arith.constant 0 : index
    %87 = vector.load %arg4[%86, %c0_77] : memref<176x32xf32, #tpu.memory_space<vmem>>, vector<1x32xf32>
    %88 = arith.addf %83, %87 : vector<1x32xf32>
    %c8 = arith.constant 8 : index
    %c0_78 = arith.constant 0 : index
    %89 = vector.load %arg8[%c8, %c0_78] : memref<16x32xf32, #tpu.memory_space<vmem>>, vector<1x32xf32>
    tpu.vector_store %arg8[%c8, %c0_78], %88 {strides = array<i32>} : memref<16x32xf32, #tpu.memory_space<vmem>>, vector<1x32xf32>,
    %c1_79 = arith.constant 1 : index
    %c1_80 = arith.constant 1 : index
    %90 = memref.load %arg1[%c1_79, %c1_80] : memref<2x8xi32, #tpu.memory_space<smem>>
    %c0_i32_81 = arith.constant 0 : i32
    %91 = arith.addi %c0_i32_81, %90 : i32
    %92 = arith.index_cast %91 : i32 to index
    %c0_82 = arith.constant 0 : index
    %93 = vector.load %arg4[%92, %c0_82] : memref<176x32xf32, #tpu.memory_space<vmem>>, vector<1x32xf32>
    %c1_83 = arith.constant 1 : index
    %c1_84 = arith.constant 1 : index
    %94 = memref.load %arg2[%c1_83, %c1_84] : memref<2x8xi32, #tpu.memory_space<smem>>
    %c168_i32_85 = arith.constant 168 : i32
    %95 = arith.addi %c168_i32_85, %94 : i32
    %96 = arith.index_cast %95 : i32 to index
    %c0_86 = arith.constant 0 : index
    %97 = vector.load %arg4[%96, %c0_86] : memref<176x32xf32, #tpu.memory_space<vmem>>, vector<1x32xf32>
    %98 = arith.addf %93, %97 : vector<1x32xf32>
    %c9 = arith.constant 9 : index
    %c0_87 = arith.constant 0 : index
    %99 = vector.load %arg8[%c9, %c0_87] : memref<16x32xf32, #tpu.memory_space<vmem>>, vector<1x32xf32>
    tpu.vector_store %arg8[%c9, %c0_87], %98 {strides = array<i32>} : memref<16x32xf32, #tpu.memory_space<vmem>>, vector<1x32xf32>,
    %c1_88 = arith.constant 1 : index
    %c2_89 = arith.constant 2 : index
    %100 = memref.load %arg1[%c1_88, %c2_89] : memref<2x8xi32, #tpu.memory_space<smem>>
    %c0_i32_90 = arith.constant 0 : i32
    %101 = arith.addi %c0_i32_90, %100 : i32
    %102 = arith.index_cast %101 : i32 to index
    %c0_91 = arith.constant 0 : index
    %103 = vector.load %arg4[%102, %c0_91] : memref<176x32xf32, #tpu.memory_space<vmem>>, vector<1x32xf32>
    %c1_92 = arith.constant 1 : index
    %c2_93 = arith.constant 2 : index
    %104 = memref.load %arg2[%c1_92, %c2_93] : memref<2x8xi32, #tpu.memory_space<smem>>
    %c168_i32_94 = arith.constant 168 : i32
    %105 = arith.addi %c168_i32_94, %104 : i32
    %106 = arith.index_cast %105 : i32 to index
    %c0_95 = arith.constant 0 : index
    %107 = vector.load %arg4[%106, %c0_95] : memref<176x32xf32, #tpu.memory_space<vmem>>, vector<1x32xf32>
    %108 = arith.addf %103, %107 : vector<1x32xf32>
    %c10 = arith.constant 10 : index
    %c0_96 = arith.constant 0 : index
    %109 = vector.load %arg8[%c10, %c0_96] : memref<16x32xf32, #tpu.memory_space<vmem>>, vector<1x32xf32>
    tpu.vector_store %arg8[%c10, %c0_96], %108 {strides = array<i32>} : memref<16x32xf32, #tpu.memory_space<vmem>>, vector<1x32xf32>,
    %c1_97 = arith.constant 1 : index
    %c3_98 = arith.constant 3 : index
    %110 = memref.load %arg1[%c1_97, %c3_98] : memref<2x8xi32, #tpu.memory_space<smem>>
    %c0_i32_99 = arith.constant 0 : i32
    %111 = arith.addi %c0_i32_99, %110 : i32
    %112 = arith.index_cast %111 : i32 to index
    %c0_100 = arith.constant 0 : index
    %113 = vector.load %arg4[%112, %c0_100] : memref<176x32xf32, #tpu.memory_space<vmem>>, vector<1x32xf32>
    %c1_101 = arith.constant 1 : index
    %c3_102 = arith.constant 3 : index
    %114 = memref.load %arg2[%c1_101, %c3_102] : memref<2x8xi32, #tpu.memory_space<smem>>
    %c168_i32_103 = arith.constant 168 : i32
    %115 = arith.addi %c168_i32_103, %114 : i32
    %116 = arith.index_cast %115 : i32 to index
    %c0_104 = arith.constant 0 : index
    %117 = vector.load %arg4[%116, %c0_104] : memref<176x32xf32, #tpu.memory_space<vmem>>, vector<1x32xf32>
    %118 = arith.addf %113, %117 : vector<1x32xf32>
    %c11 = arith.constant 11 : index
    %c0_105 = arith.constant 0 : index
    %119 = vector.load %arg8[%c11, %c0_105] : memref<16x32xf32, #tpu.memory_space<vmem>>, vector<1x32xf32>
    tpu.vector_store %arg8[%c11, %c0_105], %118 {strides = array<i32>} : memref<16x32xf32, #tpu.memory_space<vmem>>, vector<1x32xf32>,
    %c1_106 = arith.constant 1 : index
    %c4_107 = arith.constant 4 : index
    %120 = memref.load %arg1[%c1_106, %c4_107] : memref<2x8xi32, #tpu.memory_space<smem>>
    %c0_i32_108 = arith.constant 0 : i32
    %121 = arith.addi %c0_i32_108, %120 : i32
    %122 = arith.index_cast %121 : i32 to index
    %c0_109 = arith.constant 0 : index
    %123 = vector.load %arg4[%122, %c0_109] : memref<176x32xf32, #tpu.memory_space<vmem>>, vector<1x32xf32>
    %c1_110 = arith.constant 1 : index
    %c4_111 = arith.constant 4 : index
    %124 = memref.load %arg2[%c1_110, %c4_111] : memref<2x8xi32, #tpu.memory_space<smem>>
    %c168_i32_112 = arith.constant 168 : i32
    %125 = arith.addi %c168_i32_112, %124 : i32
    %126 = arith.index_cast %125 : i32 to index
    %c0_113 = arith.constant 0 : index
    %127 = vector.load %arg4[%126, %c0_113] : memref<176x32xf32, #tpu.memory_space<vmem>>, vector<1x32xf32>
    %128 = arith.addf %123, %127 : vector<1x32xf32>
    %c12 = arith.constant 12 : index
    %c0_114 = arith.constant 0 : index
    %129 = vector.load %arg8[%c12, %c0_114] : memref<16x32xf32, #tpu.memory_space<vmem>>, vector<1x32xf32>
    tpu.vector_store %arg8[%c12, %c0_114], %128 {strides = array<i32>} : memref<16x32xf32, #tpu.memory_space<vmem>>, vector<1x32xf32>,
    %c1_115 = arith.constant 1 : index
    %c5_116 = arith.constant 5 : index
    %130 = memref.load %arg1[%c1_115, %c5_116] : memref<2x8xi32, #tpu.memory_space<smem>>
    %c0_i32_117 = arith.constant 0 : i32
    %131 = arith.addi %c0_i32_117, %130 : i32
    %132 = arith.index_cast %131 : i32 to index
    %c0_118 = arith.constant 0 : index
    %133 = vector.load %arg4[%132, %c0_118] : memref<176x32xf32, #tpu.memory_space<vmem>>, vector<1x32xf32>
    %c1_119 = arith.constant 1 : index
    %c5_120 = arith.constant 5 : index
    %134 = memref.load %arg2[%c1_119, %c5_120] : memref<2x8xi32, #tpu.memory_space<smem>>
    %c168_i32_121 = arith.constant 168 : i32
    %135 = arith.addi %c168_i32_121, %134 : i32
    %136 = arith.index_cast %135 : i32 to index
    %c0_122 = arith.constant 0 : index
    %137 = vector.load %arg4[%136, %c0_122] : memref<176x32xf32, #tpu.memory_space<vmem>>, vector<1x32xf32>
    %138 = arith.addf %133, %137 : vector<1x32xf32>
    %c13 = arith.constant 13 : index
    %c0_123 = arith.constant 0 : index
    %139 = vector.load %arg8[%c13, %c0_123] : memref<16x32xf32, #tpu.memory_space<vmem>>, vector<1x32xf32>
    tpu.vector_store %arg8[%c13, %c0_123], %138 {strides = array<i32>} : memref<16x32xf32, #tpu.memory_space<vmem>>, vector<1x32xf32>,
    %c1_124 = arith.constant 1 : index
    %c6_125 = arith.constant 6 : index
    %140 = memref.load %arg1[%c1_124, %c6_125] : memref<2x8xi32, #tpu.memory_space<smem>>
    %c0_i32_126 = arith.constant 0 : i32
    %141 = arith.addi %c0_i32_126, %140 : i32
    %142 = arith.index_cast %141 : i32 to index
    %c0_127 = arith.constant 0 : index
    %143 = vector.load %arg4[%142, %c0_127] : memref<176x32xf32, #tpu.memory_space<vmem>>, vector<1x32xf32>
    %c1_128 = arith.constant 1 : index
    %c6_129 = arith.constant 6 : index
    %144 = memref.load %arg2[%c1_128, %c6_129] : memref<2x8xi32, #tpu.memory_space<smem>>
    %c168_i32_130 = arith.constant 168 : i32
    %145 = arith.addi %c168_i32_130, %144 : i32
    %146 = arith.index_cast %145 : i32 to index
    %c0_131 = arith.constant 0 : index
    %147 = vector.load %arg4[%146, %c0_131] : memref<176x32xf32, #tpu.memory_space<vmem>>, vector<1x32xf32>
    %148 = arith.addf %143, %147 : vector<1x32xf32>
    %c14 = arith.constant 14 : index
    %c0_132 = arith.constant 0 : index
    %149 = vector.load %arg8[%c14, %c0_132] : memref<16x32xf32, #tpu.memory_space<vmem>>, vector<1x32xf32>
    tpu.vector_store %arg8[%c14, %c0_132], %148 {strides = array<i32>} : memref<16x32xf32, #tpu.memory_space<vmem>>, vector<1x32xf32>,
    %c1_133 = arith.constant 1 : index
    %c7_134 = arith.constant 7 : index
    %150 = memref.load %arg1[%c1_133, %c7_134] : memref<2x8xi32, #tpu.memory_space<smem>>
    %c0_i32_135 = arith.constant 0 : i32
    %151 = arith.addi %c0_i32_135, %150 : i32
    %152 = arith.index_cast %151 : i32 to index
    %c0_136 = arith.constant 0 : index
    %153 = vector.load %arg4[%152, %c0_136] : memref<176x32xf32, #tpu.memory_space<vmem>>, vector<1x32xf32>
    %c1_137 = arith.constant 1 : index
    %c7_138 = arith.constant 7 : index
    %154 = memref.load %arg2[%c1_137, %c7_138] : memref<2x8xi32, #tpu.memory_space<smem>>
    %c168_i32_139 = arith.constant 168 : i32
    %155 = arith.addi %c168_i32_139, %154 : i32
    %156 = arith.index_cast %155 : i32 to index
    %c0_140 = arith.constant 0 : index
    %157 = vector.load %arg4[%156, %c0_140] : memref<176x32xf32, #tpu.memory_space<vmem>>, vector<1x32xf32>
    %158 = arith.addf %153, %157 : vector<1x32xf32>
    %c15 = arith.constant 15 : index
    %c0_141 = arith.constant 0 : index
    %159 = vector.load %arg8[%c15, %c0_141] : memref<16x32xf32, #tpu.memory_space<vmem>>, vector<1x32xf32>
    tpu.vector_store %arg8[%c15, %c0_141], %158 {strides = array<i32>} : memref<16x32xf32, #tpu.memory_space<vmem>>, vector<1x32xf32>,
    %c104 = arith.constant 104 : index
    %c0_142 = arith.constant 0 : index
    %160 = vector.load %arg4[%c104, %c0_142] : memref<176x32xf32, #tpu.memory_space<vmem>>, vector<8x32xf32>
    %c0_143 = arith.constant 0 : index
    %c0_144 = arith.constant 0 : index
    %161 = vector.load %arg8[%c0_143, %c0_144] : memref<16x32xf32, #tpu.memory_space<vmem>>, vector<16x32xf32>
    %162 = tpu.concatenate %160, %160 in 0 : vector<8x32xf32>, vector<8x32xf32> -> vector<16x32xf32>
    %163 = arith.addf %161, %162 : vector<16x32xf32>
    %c0_145 = arith.constant 0 : index
    %c0_146 = arith.constant 0 : index
    %164 = vector.load %arg6[%c0_145, %c0_146] : memref<24x128xf32, #tpu.memory_space<vmem>>, vector<1x32xf32>
    %c1_147 = arith.constant 1 : index
    %c0_148 = arith.constant 0 : index
    %165 = vector.load %arg6[%c1_147, %c0_148] : memref<24x128xf32, #tpu.memory_space<vmem>>, vector<1x32xf32>
    %cst = arith.constant dense<0.000000e+00> : vector<16xf32>
    %166 = vector.multi_reduction <add>, %163, %cst [1] : vector<16x32xf32> to vector<16xf32>
    %167 = vector.shape_cast %166 : vector<16xf32> to vector<16x1xf32>
    %cst_149 = arith.constant 3.200000e+01 : f32
    %168 = vector.broadcast %cst_149 : f32 to vector<16x1xf32>
    %169 = arith.divf %167, %168 : vector<16x1xf32>
    %170 = vector.broadcast %169 : vector<16x1xf32> to vector<16x32xf32>
    %171 = arith.subf %163, %170 : vector<16x32xf32>
    %172 = arith.mulf %171, %171 : vector<16x32xf32>
    %cst_150 = arith.constant dense<0.000000e+00> : vector<16xf32>
    %173 = vector.multi_reduction <add>, %172, %cst_150 [1] : vector<16x32xf32> to vector<16xf32>
    %174 = vector.shape_cast %173 : vector<16xf32> to vector<16x1xf32>
    %cst_151 = arith.constant 3.200000e+01 : f32
    %175 = vector.broadcast %cst_151 : f32 to vector<16x1xf32>
    %176 = arith.divf %174, %175 : vector<16x1xf32>
    %177 = vector.broadcast %169 : vector<16x1xf32> to vector<16x32xf32>
    %178 = arith.subf %163, %177 : vector<16x32xf32>
    %cst_152 = arith.constant 9.99999996E-13 : f32
    %179 = vector.broadcast %cst_152 : f32 to vector<16x1xf32>
    %180 = arith.addf %176, %179 : vector<16x1xf32>
    %181 = math.rsqrt %180 : vector<16x1xf32>
    %182 = vector.broadcast %181 : vector<16x1xf32> to vector<16x32xf32>
    %183 = arith.mulf %178, %182 : vector<16x32xf32>
    %184 = vector.broadcast %164 : vector<1x32xf32> to vector<16x32xf32>
    %185 = arith.mulf %183, %184 : vector<16x32xf32>
    %186 = vector.broadcast %165 : vector<1x32xf32> to vector<16x32xf32>
    %187 = arith.addf %185, %186 : vector<16x32xf32>
    %c0_153 = arith.constant 0 : index
    %c0_154 = arith.constant 0 : index
    %c0_155 = arith.constant 0 : index
    %188 = vector.load %arg3[%c0_153, %c0_154, %c0_155] : memref<2x1x8xi32, #tpu.memory_space<vmem>>, vector<2x1x8xi32>
    %189 = arith.sitofp %188 : vector<2x1x8xi32> to vector<2x1x8xf32>
    %cst_156 = arith.constant 1.000000e+00 : f32
    %190 = vector.broadcast %cst_156 : f32 to vector<2x1x8xf32>
    %191 = arith.subf %190, %189 : vector<2x1x8xf32>
    %cst_157 = arith.constant -1.000000e+09 : f32
    %192 = vector.broadcast %cst_157 : f32 to vector<2x1x8xf32>
    %193 = arith.mulf %191, %192 : vector<2x1x8xf32>
    %194 = tpu.iota {dimensions = array<i32: 2>} : vector<1x1x32xi32>
    %c0_i32_158 = arith.constant 0 : i32
    %195 = vector.broadcast %c0_i32_158 : i32 to vector<1x1x32xi32>
    %196 = arith.cmpi sge, %194, %195 : vector<1x1x32xi32>
    %c16_i32 = arith.constant 16 : i32
    %197 = vector.broadcast %c16_i32 : i32 to vector<1x1x32xi32>
    %198 = arith.cmpi slt, %194, %197 : vector<1x1x32xi32>
    %199 = arith.andi %196, %198 : vector<1x1x32xi1>
    %c16_i32_159 = arith.constant 16 : i32
    %200 = vector.broadcast %c16_i32_159 : i32 to vector<1x1x32xi32>
    %201 = arith.cmpi sge, %194, %200 : vector<1x1x32xi32>
    %c32_i32 = arith.constant 32 : i32
    %202 = vector.broadcast %c32_i32 : i32 to vector<1x1x32xi32>
    %203 = arith.cmpi slt, %194, %202 : vector<1x1x32xi32>
    %204 = arith.andi %201, %203 : vector<1x1x32xi1>
    %205 = arith.truncf %187 : vector<16x32xf32> to vector<16x32xbf16>
    %c0_160 = arith.constant 0 : index
    %c0_161 = arith.constant 0 : index
    %206 = vector.load %arg5[%c0_160, %c0_161] : memref<608x128xbf16, #tpu.memory_space<vmem>>, vector<32x32xbf16>
    %cst_162 = arith.constant dense<0.000000e+00> : vector<16x32xf32>
    %207 = tpu.matmul %205, %206, %cst_162 {dimension_numbers = #tpu.dot_dimension_numbers<[1], [0], [0], [1], [0, 0, 1, 1], [], []>} : vector<16x32xbf16>, vector<32x32xbf16>, vector<16x32xf32> -> vector<16x32xf32>
    %c2_163 = arith.constant 2 : index
    %c0_164 = arith.constant 0 : index
    %208 = vector.load %arg6[%c2_163, %c0_164] : memref<24x128xf32, #tpu.memory_space<vmem>>, vector<1x32xf32>
    %209 = vector.broadcast %208 : vector<1x32xf32> to vector<16x32xf32>
    %210 = arith.addf %207, %209 : vector<16x32xf32>
    %c32 = arith.constant 32 : index
    %c0_165 = arith.constant 0 : index
    %211 = vector.load %arg5[%c32, %c0_165] : memref<608x128xbf16, #tpu.memory_space<vmem>>, vector<32x32xbf16>
    %cst_166 = arith.constant dense<0.000000e+00> : vector<16x32xf32>
    %212 = tpu.matmul %205, %211, %cst_166 {dimension_numbers = #tpu.dot_dimension_numbers<[1], [0], [0], [1], [0, 0, 1, 1], [], []>} : vector<16x32xbf16>, vector<32x32xbf16>, vector<16x32xf32> -> vector<16x32xf32>
    %c3_167 = arith.constant 3 : index
    %c0_168 = arith.constant 0 : index
    %213 = vector.load %arg6[%c3_167, %c0_168] : memref<24x128xf32, #tpu.memory_space<vmem>>, vector<1x32xf32>
    %214 = vector.broadcast %213 : vector<1x32xf32> to vector<16x32xf32>
    %215 = arith.addf %212, %214 : vector<16x32xf32>
    %c64 = arith.constant 64 : index
    %c0_169 = arith.constant 0 : index
    %216 = vector.load %arg5[%c64, %c0_169] : memref<608x128xbf16, #tpu.memory_space<vmem>>, vector<32x32xbf16>
    %cst_170 = arith.constant dense<0.000000e+00> : vector<16x32xf32>
    %217 = tpu.matmul %205, %216, %cst_170 {dimension_numbers = #tpu.dot_dimension_numbers<[1], [0], [0], [1], [0, 0, 1, 1], [], []>} : vector<16x32xbf16>, vector<32x32xbf16>, vector<16x32xf32> -> vector<16x32xf32>
    %c4_171 = arith.constant 4 : index
    %c0_172 = arith.constant 0 : index
    %218 = vector.load %arg6[%c4_171, %c0_172] : memref<24x128xf32, #tpu.memory_space<vmem>>, vector<1x32xf32>
    %219 = vector.broadcast %218 : vector<1x32xf32> to vector<16x32xf32>
    %220 = arith.addf %217, %219 : vector<16x32xf32>
    %221 = vector.shape_cast %210 : vector<16x32xf32> to vector<2x8x32xf32>
    %222 = arith.truncf %221 : vector<2x8x32xf32> to vector<2x8x32xbf16>
    %223 = vector.shape_cast %215 : vector<16x32xf32> to vector<2x8x32xf32>
    %224 = vector.shape_cast %220 : vector<16x32xf32> to vector<2x8x32xf32>
    %cst_173 = arith.constant 0.000000e+00 : f32
    %225 = vector.shape_cast %199 : vector<1x1x32xi1> to vector<1x1x32xi1>
    %226 = vector.broadcast %225 : vector<1x1x32xi1> to vector<2x8x32xi1>
    %227 = vector.broadcast %cst_173 : f32 to vector<2x8x32xf32>
    %228 = arith.select %226, %223, %227 : vector<2x8x32xi1>, vector<2x8x32xf32>
    %229 = arith.truncf %228 : vector<2x8x32xf32> to vector<2x8x32xbf16>
    %cst_174 = arith.constant 0.000000e+00 : f32
    %230 = vector.shape_cast %199 : vector<1x1x32xi1> to vector<1x1x32xi1>
    %231 = vector.broadcast %230 : vector<1x1x32xi1> to vector<2x8x32xi1>
    %232 = vector.broadcast %cst_174 : f32 to vector<2x8x32xf32>
    %233 = arith.select %231, %224, %232 : vector<2x8x32xi1>, vector<2x8x32xf32>
    %234 = arith.truncf %233 : vector<2x8x32xf32> to vector<2x8x32xbf16>
    "tpu.trace_start"() <{level = 10 : i32, message = "bqd,bkd->bqk"}> : () -> ()
    %cst_175 = arith.constant dense<0.000000e+00> : vector<2x8x8xf32>
    %235 = tpu.matmul %222, %229, %cst_175 {dimension_numbers = #tpu.dot_dimension_numbers<[2], [2], [1], [1], [0, 0, 0, 1, 1, 1], [0], [0]>} : vector<2x8x32xbf16>, vector<2x8x32xbf16>, vector<2x8x8xf32> -> vector<2x8x8xf32>
    "tpu.trace_stop"() : () -> ()
    %cst_176 = arith.constant 2.500000e-01 : f32
    %236 = vector.broadcast %cst_176 : f32 to vector<2x8x8xf32>
    %237 = arith.mulf %235, %236 : vector<2x8x8xf32>
    %238 = vector.broadcast %193 : vector<2x1x8xf32> to vector<2x8x8xf32>
    %239 = arith.addf %237, %238 : vector<2x8x8xf32>
    %cst_177 = arith.constant dense<0xFF800000> : vector<2x8xf32>
    %240 = vector.multi_reduction <maximumf>, %239, %cst_177 [2] : vector<2x8x8xf32> to vector<2x8xf32>
    %241 = vector.shape_cast %240 : vector<2x8xf32> to vector<2x8x1xf32>
    %242 = vector.broadcast %241 : vector<2x8x1xf32> to vector<2x8x8xf32>
    %243 = arith.subf %239, %242 : vector<2x8x8xf32>
    %244 = math.exp %243 : vector<2x8x8xf32>
    %cst_178 = arith.constant dense<0.000000e+00> : vector<2x8xf32>
    %245 = vector.multi_reduction <add>, %244, %cst_178 [2] : vector<2x8x8xf32> to vector<2x8xf32>
    %246 = vector.shape_cast %245 : vector<2x8xf32> to vector<2x8x1xf32>
    %247 = vector.broadcast %246 : vector<2x8x1xf32> to vector<2x8x8xf32>
    %248 = arith.divf %244, %247 : vector<2x8x8xf32>
    %249 = arith.truncf %248 : vector<2x8x8xf32> to vector<2x8x8xbf16>
    "tpu.trace_start"() <{level = 10 : i32, message = "bqk,bkd->bqd"}> : () -> ()
    %cst_179 = arith.constant dense<0.000000e+00> : vector<2x8x32xf32>
    %250 = tpu.matmul %249, %234, %cst_179 {dimension_numbers = #tpu.dot_dimension_numbers<[2], [1], [1], [2], [0, 0, 0, 1, 1, 2], [0], [0]>} : vector<2x8x8xbf16>, vector<2x8x32xbf16>, vector<2x8x32xf32> -> vector<2x8x32xf32>
    %cst_180 = arith.constant 0.000000e+00 : f32
    "tpu.trace_stop"() : () -> ()
    %251 = vector.shape_cast %204 : vector<1x1x32xi1> to vector<1x1x32xi1>
    %252 = vector.broadcast %251 : vector<1x1x32xi1> to vector<2x8x32xi1>
    %253 = vector.broadcast %cst_180 : f32 to vector<2x8x32xf32>
    %254 = arith.select %252, %223, %253 : vector<2x8x32xi1>, vector<2x8x32xf32>
    %255 = arith.truncf %254 : vector<2x8x32xf32> to vector<2x8x32xbf16>
    %cst_181 = arith.constant 0.000000e+00 : f32
    %256 = vector.shape_cast %204 : vector<1x1x32xi1> to vector<1x1x32xi1>
    %257 = vector.broadcast %256 : vector<1x1x32xi1> to vector<2x8x32xi1>
    %258 = vector.broadcast %cst_181 : f32 to vector<2x8x32xf32>
    %259 = arith.select %257, %224, %258 : vector<2x8x32xi1>, vector<2x8x32xf32>
    %260 = arith.truncf %259 : vector<2x8x32xf32> to vector<2x8x32xbf16>
    "tpu.trace_start"() <{level = 10 : i32, message = "bqd,bkd->bqk"}> : () -> ()
    %cst_182 = arith.constant dense<0.000000e+00> : vector<2x8x8xf32>
    %261 = tpu.matmul %222, %255, %cst_182 {dimension_numbers = #tpu.dot_dimension_numbers<[2], [2], [1], [1], [0, 0, 0, 1, 1, 1], [0], [0]>} : vector<2x8x32xbf16>, vector<2x8x32xbf16>, vector<2x8x8xf32> -> vector<2x8x8xf32>
    "tpu.trace_stop"() : () -> ()
    %cst_183 = arith.constant 2.500000e-01 : f32
    %262 = vector.broadcast %cst_183 : f32 to vector<2x8x8xf32>
    %263 = arith.mulf %261, %262 : vector<2x8x8xf32>
    %264 = vector.broadcast %193 : vector<2x1x8xf32> to vector<2x8x8xf32>
    %265 = arith.addf %263, %264 : vector<2x8x8xf32>
    %cst_184 = arith.constant dense<0xFF800000> : vector<2x8xf32>
    %266 = vector.multi_reduction <maximumf>, %265, %cst_184 [2] : vector<2x8x8xf32> to vector<2x8xf32>
    %267 = vector.shape_cast %266 : vector<2x8xf32> to vector<2x8x1xf32>
    %268 = vector.broadcast %267 : vector<2x8x1xf32> to vector<2x8x8xf32>
    %269 = arith.subf %265, %268 : vector<2x8x8xf32>
    %270 = math.exp %269 : vector<2x8x8xf32>
    %cst_185 = arith.constant dense<0.000000e+00> : vector<2x8xf32>
    %271 = vector.multi_reduction <add>, %270, %cst_185 [2] : vector<2x8x8xf32> to vector<2x8xf32>
    %272 = vector.shape_cast %271 : vector<2x8xf32> to vector<2x8x1xf32>
    %273 = vector.broadcast %272 : vector<2x8x1xf32> to vector<2x8x8xf32>
    %274 = arith.divf %270, %273 : vector<2x8x8xf32>
    %275 = arith.truncf %274 : vector<2x8x8xf32> to vector<2x8x8xbf16>
    "tpu.trace_start"() <{level = 10 : i32, message = "bqk,bkd->bqd"}> : () -> ()
    %cst_186 = arith.constant dense<0.000000e+00> : vector<2x8x32xf32>
    %276 = tpu.matmul %275, %260, %cst_186 {dimension_numbers = #tpu.dot_dimension_numbers<[2], [1], [1], [2], [0, 0, 0, 1, 1, 2], [0], [0]>} : vector<2x8x8xbf16>, vector<2x8x32xbf16>, vector<2x8x32xf32> -> vector<2x8x32xf32>
    "tpu.trace_stop"() : () -> ()
    %277 = arith.addf %250, %276 : vector<2x8x32xf32>
    %278 = vector.shape_cast %277 : vector<2x8x32xf32> to vector<16x32xf32>
    %279 = arith.truncf %278 : vector<16x32xf32> to vector<16x32xbf16>
    %c96 = arith.constant 96 : index
    %c0_187 = arith.constant 0 : index
    %280 = vector.load %arg5[%c96, %c0_187] : memref<608x128xbf16, #tpu.memory_space<vmem>>, vector<32x32xbf16>
    %cst_188 = arith.constant dense<0.000000e+00> : vector<16x32xf32>
    %281 = tpu.matmul %279, %280, %cst_188 {dimension_numbers = #tpu.dot_dimension_numbers<[1], [0], [0], [1], [0, 0, 1, 1], [], []>} : vector<16x32xbf16>, vector<32x32xbf16>, vector<16x32xf32> -> vector<16x32xf32>
    %c5_189 = arith.constant 5 : index
    %c0_190 = arith.constant 0 : index
    %282 = vector.load %arg6[%c5_189, %c0_190] : memref<24x128xf32, #tpu.memory_space<vmem>>, vector<1x32xf32>
    %283 = vector.broadcast %282 : vector<1x32xf32> to vector<16x32xf32>
    %284 = arith.addf %281, %283 : vector<16x32xf32>
    %285 = arith.addf %187, %284 : vector<16x32xf32>
    %c6_191 = arith.constant 6 : index
    %c0_192 = arith.constant 0 : index
    %286 = vector.load %arg6[%c6_191, %c0_192] : memref<24x128xf32, #tpu.memory_space<vmem>>, vector<1x32xf32>
    %c7_193 = arith.constant 7 : index
    %c0_194 = arith.constant 0 : index
    %287 = vector.load %arg6[%c7_193, %c0_194] : memref<24x128xf32, #tpu.memory_space<vmem>>, vector<1x32xf32>
    %cst_195 = arith.constant dense<0.000000e+00> : vector<16xf32>
    %288 = vector.multi_reduction <add>, %285, %cst_195 [1] : vector<16x32xf32> to vector<16xf32>
    %289 = vector.shape_cast %288 : vector<16xf32> to vector<16x1xf32>
    %cst_196 = arith.constant 3.200000e+01 : f32
    %290 = vector.broadcast %cst_196 : f32 to vector<16x1xf32>
    %291 = arith.divf %289, %290 : vector<16x1xf32>
    %292 = vector.broadcast %291 : vector<16x1xf32> to vector<16x32xf32>
    %293 = arith.subf %285, %292 : vector<16x32xf32>
    %294 = arith.mulf %293, %293 : vector<16x32xf32>
    %cst_197 = arith.constant dense<0.000000e+00> : vector<16xf32>
    %295 = vector.multi_reduction <add>, %294, %cst_197 [1] : vector<16x32xf32> to vector<16xf32>
    %296 = vector.shape_cast %295 : vector<16xf32> to vector<16x1xf32>
    %cst_198 = arith.constant 3.200000e+01 : f32
    %297 = vector.broadcast %cst_198 : f32 to vector<16x1xf32>
    %298 = arith.divf %296, %297 : vector<16x1xf32>
    %299 = vector.broadcast %291 : vector<16x1xf32> to vector<16x32xf32>
    %300 = arith.subf %285, %299 : vector<16x32xf32>
    %cst_199 = arith.constant 9.99999996E-13 : f32
    %301 = vector.broadcast %cst_199 : f32 to vector<16x1xf32>
    %302 = arith.addf %298, %301 : vector<16x1xf32>
    %303 = math.rsqrt %302 : vector<16x1xf32>
    %304 = vector.broadcast %303 : vector<16x1xf32> to vector<16x32xf32>
    %305 = arith.mulf %300, %304 : vector<16x32xf32>
    %306 = vector.broadcast %286 : vector<1x32xf32> to vector<16x32xf32>
    %307 = arith.mulf %305, %306 : vector<16x32xf32>
    %308 = vector.broadcast %287 : vector<1x32xf32> to vector<16x32xf32>
    %309 = arith.addf %307, %308 : vector<16x32xf32>
    %310 = arith.truncf %309 : vector<16x32xf32> to vector<16x32xbf16>
    %c128 = arith.constant 128 : index
    %c0_200 = arith.constant 0 : index
    %311 = vector.load %arg5[%c128, %c0_200] : memref<608x128xbf16, #tpu.memory_space<vmem>>, vector<32x128xbf16>
    %cst_201 = arith.constant dense<0.000000e+00> : vector<16x128xf32>
    %312 = tpu.matmul %310, %311, %cst_201 {dimension_numbers = #tpu.dot_dimension_numbers<[1], [0], [0], [1], [0, 0, 1, 1], [], []>} : vector<16x32xbf16>, vector<32x128xbf16>, vector<16x128xf32> -> vector<16x128xf32>
    %c8_202 = arith.constant 8 : index
    %c0_203 = arith.constant 0 : index
    %313 = vector.load %arg6[%c8_202, %c0_203] : memref<24x128xf32, #tpu.memory_space<vmem>>, vector<1x128xf32>
    %314 = vector.broadcast %313 : vector<1x128xf32> to vector<16x128xf32>
    %315 = arith.addf %312, %314 : vector<16x128xf32>
    %cst_204 = arith.constant 5.000000e-01 : f32
    %316 = vector.broadcast %cst_204 : f32 to vector<16x128xf32>
    %317 = arith.mulf %316, %315 : vector<16x128xf32>
    %cst_205 = arith.constant 4.471500e-02 : f32
    %318 = vector.broadcast %cst_205 : f32 to vector<16x128xf32>
    %319 = arith.mulf %318, %315 : vector<16x128xf32>
    %320 = arith.mulf %319, %315 : vector<16x128xf32>
    %321 = arith.mulf %320, %315 : vector<16x128xf32>
    %322 = arith.addf %315, %321 : vector<16x128xf32>
    %cst_206 = arith.constant 0.797884583 : f32
    %323 = vector.broadcast %cst_206 : f32 to vector<16x128xf32>
    %324 = arith.mulf %323, %322 : vector<16x128xf32>
    %325 = math.tanh %324 : vector<16x128xf32>
    %cst_207 = arith.constant 1.000000e+00 : f32
    %326 = vector.broadcast %cst_207 : f32 to vector<16x128xf32>
    %327 = arith.addf %326, %325 : vector<16x128xf32>
    %328 = arith.mulf %317, %327 : vector<16x128xf32>
    %329 = arith.truncf %328 : vector<16x128xf32> to vector<16x128xbf16>
    %c160 = arith.constant 160 : index
    %c0_208 = arith.constant 0 : index
    %330 = vector.load %arg5[%c160, %c0_208] : memref<608x128xbf16, #tpu.memory_space<vmem>>, vector<128x32xbf16>
    %cst_209 = arith.constant dense<0.000000e+00> : vector<16x32xf32>
    %331 = tpu.matmul %329, %330, %cst_209 {dimension_numbers = #tpu.dot_dimension_numbers<[1], [0], [0], [1], [0, 0, 1, 1], [], []>} : vector<16x128xbf16>, vector<128x32xbf16>, vector<16x32xf32> -> vector<16x32xf32>
    %c9_210 = arith.constant 9 : index
    %c0_211 = arith.constant 0 : index
    %332 = vector.load %arg6[%c9_210, %c0_211] : memref<24x128xf32, #tpu.memory_space<vmem>>, vector<1x32xf32>
    %333 = vector.broadcast %332 : vector<1x32xf32> to vector<16x32xf32>
    %334 = arith.addf %331, %333 : vector<16x32xf32>
    %335 = arith.addf %309, %334 : vector<16x32xf32>
    %c10_212 = arith.constant 10 : index
    %c0_213 = arith.constant 0 : index
    %336 = vector.load %arg6[%c10_212, %c0_213] : memref<24x128xf32, #tpu.memory_space<vmem>>, vector<1x32xf32>
    %c11_214 = arith.constant 11 : index
    %c0_215 = arith.constant 0 : index
    %337 = vector.load %arg6[%c11_214, %c0_215] : memref<24x128xf32, #tpu.memory_space<vmem>>, vector<1x32xf32>
    %cst_216 = arith.constant dense<0.000000e+00> : vector<16xf32>
    %338 = vector.multi_reduction <add>, %335, %cst_216 [1] : vector<16x32xf32> to vector<16xf32>
    %339 = vector.shape_cast %338 : vector<16xf32> to vector<16x1xf32>
    %cst_217 = arith.constant 3.200000e+01 : f32
    %340 = vector.broadcast %cst_217 : f32 to vector<16x1xf32>
    %341 = arith.divf %339, %340 : vector<16x1xf32>
    %342 = vector.broadcast %341 : vector<16x1xf32> to vector<16x32xf32>
    %343 = arith.subf %335, %342 : vector<16x32xf32>
    %344 = arith.mulf %343, %343 : vector<16x32xf32>
    %cst_218 = arith.constant dense<0.000000e+00> : vector<16xf32>
    %345 = vector.multi_reduction <add>, %344, %cst_218 [1] : vector<16x32xf32> to vector<16xf32>
    %346 = vector.shape_cast %345 : vector<16xf32> to vector<16x1xf32>
    %cst_219 = arith.constant 3.200000e+01 : f32
    %347 = vector.broadcast %cst_219 : f32 to vector<16x1xf32>
    %348 = arith.divf %346, %347 : vector<16x1xf32>
    %349 = vector.broadcast %341 : vector<16x1xf32> to vector<16x32xf32>
    %350 = arith.subf %335, %349 : vector<16x32xf32>
    %cst_220 = arith.constant 9.99999996E-13 : f32
    %351 = vector.broadcast %cst_220 : f32 to vector<16x1xf32>
    %352 = arith.addf %348, %351 : vector<16x1xf32>
    %353 = math.rsqrt %352 : vector<16x1xf32>
    %354 = vector.broadcast %353 : vector<16x1xf32> to vector<16x32xf32>
    %355 = arith.mulf %350, %354 : vector<16x32xf32>
    %356 = vector.broadcast %336 : vector<1x32xf32> to vector<16x32xf32>
    %357 = arith.mulf %355, %356 : vector<16x32xf32>
    %358 = vector.broadcast %337 : vector<1x32xf32> to vector<16x32xf32>
    %359 = arith.addf %357, %358 : vector<16x32xf32>
    %360 = arith.truncf %359 : vector<16x32xf32> to vector<16x32xbf16>
    %c288 = arith.constant 288 : index
    %c0_221 = arith.constant 0 : index
    %361 = vector.load %arg5[%c288, %c0_221] : memref<608x128xbf16, #tpu.memory_space<vmem>>, vector<32x32xbf16>
    %cst_222 = arith.constant dense<0.000000e+00> : vector<16x32xf32>
    %362 = tpu.matmul %360, %361, %cst_222 {dimension_numbers = #tpu.dot_dimension_numbers<[1], [0], [0], [1], [0, 0, 1, 1], [], []>} : vector<16x32xbf16>, vector<32x32xbf16>, vector<16x32xf32> -> vector<16x32xf32>
    %c12_223 = arith.constant 12 : index
    %c0_224 = arith.constant 0 : index
    %363 = vector.load %arg6[%c12_223, %c0_224] : memref<24x128xf32, #tpu.memory_space<vmem>>, vector<1x32xf32>
    %364 = vector.broadcast %363 : vector<1x32xf32> to vector<16x32xf32>
    %365 = arith.addf %362, %364 : vector<16x32xf32>
    %c320 = arith.constant 320 : index
    %c0_225 = arith.constant 0 : index
    %366 = vector.load %arg5[%c320, %c0_225] : memref<608x128xbf16, #tpu.memory_space<vmem>>, vector<32x32xbf16>
    %cst_226 = arith.constant dense<0.000000e+00> : vector<16x32xf32>
    %367 = tpu.matmul %360, %366, %cst_226 {dimension_numbers = #tpu.dot_dimension_numbers<[1], [0], [0], [1], [0, 0, 1, 1], [], []>} : vector<16x32xbf16>, vector<32x32xbf16>, vector<16x32xf32> -> vector<16x32xf32>
    %c13_227 = arith.constant 13 : index
    %c0_228 = arith.constant 0 : index
    %368 = vector.load %arg6[%c13_227, %c0_228] : memref<24x128xf32, #tpu.memory_space<vmem>>, vector<1x32xf32>
    %369 = vector.broadcast %368 : vector<1x32xf32> to vector<16x32xf32>
    %370 = arith.addf %367, %369 : vector<16x32xf32>
    %c352 = arith.constant 352 : index
    %c0_229 = arith.constant 0 : index
    %371 = vector.load %arg5[%c352, %c0_229] : memref<608x128xbf16, #tpu.memory_space<vmem>>, vector<32x32xbf16>
    %cst_230 = arith.constant dense<0.000000e+00> : vector<16x32xf32>
    %372 = tpu.matmul %360, %371, %cst_230 {dimension_numbers = #tpu.dot_dimension_numbers<[1], [0], [0], [1], [0, 0, 1, 1], [], []>} : vector<16x32xbf16>, vector<32x32xbf16>, vector<16x32xf32> -> vector<16x32xf32>
    %c14_231 = arith.constant 14 : index
    %c0_232 = arith.constant 0 : index
    %373 = vector.load %arg6[%c14_231, %c0_232] : memref<24x128xf32, #tpu.memory_space<vmem>>, vector<1x32xf32>
    %374 = vector.broadcast %373 : vector<1x32xf32> to vector<16x32xf32>
    %375 = arith.addf %372, %374 : vector<16x32xf32>
    %376 = vector.shape_cast %365 : vector<16x32xf32> to vector<2x8x32xf32>
    %377 = arith.truncf %376 : vector<2x8x32xf32> to vector<2x8x32xbf16>
    %378 = vector.shape_cast %370 : vector<16x32xf32> to vector<2x8x32xf32>
    %379 = vector.shape_cast %375 : vector<16x32xf32> to vector<2x8x32xf32>
    %cst_233 = arith.constant 0.000000e+00 : f32
    %380 = vector.shape_cast %199 : vector<1x1x32xi1> to vector<1x1x32xi1>
    %381 = vector.broadcast %380 : vector<1x1x32xi1> to vector<2x8x32xi1>
    %382 = vector.broadcast %cst_233 : f32 to vector<2x8x32xf32>
    %383 = arith.select %381, %378, %382 : vector<2x8x32xi1>, vector<2x8x32xf32>
    %384 = arith.truncf %383 : vector<2x8x32xf32> to vector<2x8x32xbf16>
    %cst_234 = arith.constant 0.000000e+00 : f32
    %385 = vector.shape_cast %199 : vector<1x1x32xi1> to vector<1x1x32xi1>
    %386 = vector.broadcast %385 : vector<1x1x32xi1> to vector<2x8x32xi1>
    %387 = vector.broadcast %cst_234 : f32 to vector<2x8x32xf32>
    %388 = arith.select %386, %379, %387 : vector<2x8x32xi1>, vector<2x8x32xf32>
    %389 = arith.truncf %388 : vector<2x8x32xf32> to vector<2x8x32xbf16>
    "tpu.trace_start"() <{level = 10 : i32, message = "bqd,bkd->bqk"}> : () -> ()
    %cst_235 = arith.constant dense<0.000000e+00> : vector<2x8x8xf32>
    %390 = tpu.matmul %377, %384, %cst_235 {dimension_numbers = #tpu.dot_dimension_numbers<[2], [2], [1], [1], [0, 0, 0, 1, 1, 1], [0], [0]>} : vector<2x8x32xbf16>, vector<2x8x32xbf16>, vector<2x8x8xf32> -> vector<2x8x8xf32>
    "tpu.trace_stop"() : () -> ()
    %cst_236 = arith.constant 2.500000e-01 : f32
    %391 = vector.broadcast %cst_236 : f32 to vector<2x8x8xf32>
    %392 = arith.mulf %390, %391 : vector<2x8x8xf32>
    %393 = vector.broadcast %193 : vector<2x1x8xf32> to vector<2x8x8xf32>
    %394 = arith.addf %392, %393 : vector<2x8x8xf32>
    %cst_237 = arith.constant dense<0xFF800000> : vector<2x8xf32>
    %395 = vector.multi_reduction <maximumf>, %394, %cst_237 [2] : vector<2x8x8xf32> to vector<2x8xf32>
    %396 = vector.shape_cast %395 : vector<2x8xf32> to vector<2x8x1xf32>
    %397 = vector.broadcast %396 : vector<2x8x1xf32> to vector<2x8x8xf32>
    %398 = arith.subf %394, %397 : vector<2x8x8xf32>
    %399 = math.exp %398 : vector<2x8x8xf32>
    %cst_238 = arith.constant dense<0.000000e+00> : vector<2x8xf32>
    %400 = vector.multi_reduction <add>, %399, %cst_238 [2] : vector<2x8x8xf32> to vector<2x8xf32>
    %401 = vector.shape_cast %400 : vector<2x8xf32> to vector<2x8x1xf32>
    %402 = vector.broadcast %401 : vector<2x8x1xf32> to vector<2x8x8xf32>
    %403 = arith.divf %399, %402 : vector<2x8x8xf32>
    %404 = arith.truncf %403 : vector<2x8x8xf32> to vector<2x8x8xbf16>
    "tpu.trace_start"() <{level = 10 : i32, message = "bqk,bkd->bqd"}> : () -> ()
    %cst_239 = arith.constant dense<0.000000e+00> : vector<2x8x32xf32>
    %405 = tpu.matmul %404, %389, %cst_239 {dimension_numbers = #tpu.dot_dimension_numbers<[2], [1], [1], [2], [0, 0, 0, 1, 1, 2], [0], [0]>} : vector<2x8x8xbf16>, vector<2x8x32xbf16>, vector<2x8x32xf32> -> vector<2x8x32xf32>
    %cst_240 = arith.constant 0.000000e+00 : f32
    "tpu.trace_stop"() : () -> ()
    %406 = vector.shape_cast %204 : vector<1x1x32xi1> to vector<1x1x32xi1>
    %407 = vector.broadcast %406 : vector<1x1x32xi1> to vector<2x8x32xi1>
    %408 = vector.broadcast %cst_240 : f32 to vector<2x8x32xf32>
    %409 = arith.select %407, %378, %408 : vector<2x8x32xi1>, vector<2x8x32xf32>
    %410 = arith.truncf %409 : vector<2x8x32xf32> to vector<2x8x32xbf16>
    %cst_241 = arith.constant 0.000000e+00 : f32
    %411 = vector.shape_cast %204 : vector<1x1x32xi1> to vector<1x1x32xi1>
    %412 = vector.broadcast %411 : vector<1x1x32xi1> to vector<2x8x32xi1>
    %413 = vector.broadcast %cst_241 : f32 to vector<2x8x32xf32>
    %414 = arith.select %412, %379, %413 : vector<2x8x32xi1>, vector<2x8x32xf32>
    %415 = arith.truncf %414 : vector<2x8x32xf32> to vector<2x8x32xbf16>
    "tpu.trace_start"() <{level = 10 : i32, message = "bqd,bkd->bqk"}> : () -> ()
    %cst_242 = arith.constant dense<0.000000e+00> : vector<2x8x8xf32>
    %416 = tpu.matmul %377, %410, %cst_242 {dimension_numbers = #tpu.dot_dimension_numbers<[2], [2], [1], [1], [0, 0, 0, 1, 1, 1], [0], [0]>} : vector<2x8x32xbf16>, vector<2x8x32xbf16>, vector<2x8x8xf32> -> vector<2x8x8xf32>
    "tpu.trace_stop"() : () -> ()
    %cst_243 = arith.constant 2.500000e-01 : f32
    %417 = vector.broadcast %cst_243 : f32 to vector<2x8x8xf32>
    %418 = arith.mulf %416, %417 : vector<2x8x8xf32>
    %419 = vector.broadcast %193 : vector<2x1x8xf32> to vector<2x8x8xf32>
    %420 = arith.addf %418, %419 : vector<2x8x8xf32>
    %cst_244 = arith.constant dense<0xFF800000> : vector<2x8xf32>
    %421 = vector.multi_reduction <maximumf>, %420, %cst_244 [2] : vector<2x8x8xf32> to vector<2x8xf32>
    %422 = vector.shape_cast %421 : vector<2x8xf32> to vector<2x8x1xf32>
    %423 = vector.broadcast %422 : vector<2x8x1xf32> to vector<2x8x8xf32>
    %424 = arith.subf %420, %423 : vector<2x8x8xf32>
    %425 = math.exp %424 : vector<2x8x8xf32>
    %cst_245 = arith.constant dense<0.000000e+00> : vector<2x8xf32>
    %426 = vector.multi_reduction <add>, %425, %cst_245 [2] : vector<2x8x8xf32> to vector<2x8xf32>
    %427 = vector.shape_cast %426 : vector<2x8xf32> to vector<2x8x1xf32>
    %428 = vector.broadcast %427 : vector<2x8x1xf32> to vector<2x8x8xf32>
    %429 = arith.divf %425, %428 : vector<2x8x8xf32>
    %430 = arith.truncf %429 : vector<2x8x8xf32> to vector<2x8x8xbf16>
    "tpu.trace_start"() <{level = 10 : i32, message = "bqk,bkd->bqd"}> : () -> ()
    %cst_246 = arith.constant dense<0.000000e+00> : vector<2x8x32xf32>
    %431 = tpu.matmul %430, %415, %cst_246 {dimension_numbers = #tpu.dot_dimension_numbers<[2], [1], [1], [2], [0, 0, 0, 1, 1, 2], [0], [0]>} : vector<2x8x8xbf16>, vector<2x8x32xbf16>, vector<2x8x32xf32> -> vector<2x8x32xf32>
    "tpu.trace_stop"() : () -> ()
    %432 = arith.addf %405, %431 : vector<2x8x32xf32>
    %433 = vector.shape_cast %432 : vector<2x8x32xf32> to vector<16x32xf32>
    %434 = arith.truncf %433 : vector<16x32xf32> to vector<16x32xbf16>
    %c384 = arith.constant 384 : index
    %c0_247 = arith.constant 0 : index
    %435 = vector.load %arg5[%c384, %c0_247] : memref<608x128xbf16, #tpu.memory_space<vmem>>, vector<32x32xbf16>
    %cst_248 = arith.constant dense<0.000000e+00> : vector<16x32xf32>
    %436 = tpu.matmul %434, %435, %cst_248 {dimension_numbers = #tpu.dot_dimension_numbers<[1], [0], [0], [1], [0, 0, 1, 1], [], []>} : vector<16x32xbf16>, vector<32x32xbf16>, vector<16x32xf32> -> vector<16x32xf32>
    %c15_249 = arith.constant 15 : index
    %c0_250 = arith.constant 0 : index
    %437 = vector.load %arg6[%c15_249, %c0_250] : memref<24x128xf32, #tpu.memory_space<vmem>>, vector<1x32xf32>
    %438 = vector.broadcast %437 : vector<1x32xf32> to vector<16x32xf32>
    %439 = arith.addf %436, %438 : vector<16x32xf32>
    %440 = arith.addf %359, %439 : vector<16x32xf32>
    %c16 = arith.constant 16 : index
    %c0_251 = arith.constant 0 : index
    %441 = vector.load %arg6[%c16, %c0_251] : memref<24x128xf32, #tpu.memory_space<vmem>>, vector<1x32xf32>
    %c17 = arith.constant 17 : index
    %c0_252 = arith.constant 0 : index
    %442 = vector.load %arg6[%c17, %c0_252] : memref<24x128xf32, #tpu.memory_space<vmem>>, vector<1x32xf32>
    %cst_253 = arith.constant dense<0.000000e+00> : vector<16xf32>
    %443 = vector.multi_reduction <add>, %440, %cst_253 [1] : vector<16x32xf32> to vector<16xf32>
    %444 = vector.shape_cast %443 : vector<16xf32> to vector<16x1xf32>
    %cst_254 = arith.constant 3.200000e+01 : f32
    %445 = vector.broadcast %cst_254 : f32 to vector<16x1xf32>
    %446 = arith.divf %444, %445 : vector<16x1xf32>
    %447 = vector.broadcast %446 : vector<16x1xf32> to vector<16x32xf32>
    %448 = arith.subf %440, %447 : vector<16x32xf32>
    %449 = arith.mulf %448, %448 : vector<16x32xf32>
    %cst_255 = arith.constant dense<0.000000e+00> : vector<16xf32>
    %450 = vector.multi_reduction <add>, %449, %cst_255 [1] : vector<16x32xf32> to vector<16xf32>
    %451 = vector.shape_cast %450 : vector<16xf32> to vector<16x1xf32>
    %cst_256 = arith.constant 3.200000e+01 : f32
    %452 = vector.broadcast %cst_256 : f32 to vector<16x1xf32>
    %453 = arith.divf %451, %452 : vector<16x1xf32>
    %454 = vector.broadcast %446 : vector<16x1xf32> to vector<16x32xf32>
    %455 = arith.subf %440, %454 : vector<16x32xf32>
    %cst_257 = arith.constant 9.99999996E-13 : f32
    %456 = vector.broadcast %cst_257 : f32 to vector<16x1xf32>
    %457 = arith.addf %453, %456 : vector<16x1xf32>
    %458 = math.rsqrt %457 : vector<16x1xf32>
    %459 = vector.broadcast %458 : vector<16x1xf32> to vector<16x32xf32>
    %460 = arith.mulf %455, %459 : vector<16x32xf32>
    %461 = vector.broadcast %441 : vector<1x32xf32> to vector<16x32xf32>
    %462 = arith.mulf %460, %461 : vector<16x32xf32>
    %463 = vector.broadcast %442 : vector<1x32xf32> to vector<16x32xf32>
    %464 = arith.addf %462, %463 : vector<16x32xf32>
    %465 = arith.truncf %464 : vector<16x32xf32> to vector<16x32xbf16>
    %c416 = arith.constant 416 : index
    %c0_258 = arith.constant 0 : index
    %466 = vector.load %arg5[%c416, %c0_258] : memref<608x128xbf16, #tpu.memory_space<vmem>>, vector<32x128xbf16>
    %cst_259 = arith.constant dense<0.000000e+00> : vector<16x128xf32>
    %467 = tpu.matmul %465, %466, %cst_259 {dimension_numbers = #tpu.dot_dimension_numbers<[1], [0], [0], [1], [0, 0, 1, 1], [], []>} : vector<16x32xbf16>, vector<32x128xbf16>, vector<16x128xf32> -> vector<16x128xf32>
    %c18 = arith.constant 18 : index
    %c0_260 = arith.constant 0 : index
    %468 = vector.load %arg6[%c18, %c0_260] : memref<24x128xf32, #tpu.memory_space<vmem>>, vector<1x128xf32>
    %469 = vector.broadcast %468 : vector<1x128xf32> to vector<16x128xf32>
    %470 = arith.addf %467, %469 : vector<16x128xf32>
    %cst_261 = arith.constant 5.000000e-01 : f32
    %471 = vector.broadcast %cst_261 : f32 to vector<16x128xf32>
    %472 = arith.mulf %471, %470 : vector<16x128xf32>
    %cst_262 = arith.constant 4.471500e-02 : f32
    %473 = vector.broadcast %cst_262 : f32 to vector<16x128xf32>
    %474 = arith.mulf %473, %470 : vector<16x128xf32>
    %475 = arith.mulf %474, %470 : vector<16x128xf32>
    %476 = arith.mulf %475, %470 : vector<16x128xf32>
    %477 = arith.addf %470, %476 : vector<16x128xf32>
    %cst_263 = arith.constant 0.797884583 : f32
    %478 = vector.broadcast %cst_263 : f32 to vector<16x128xf32>
    %479 = arith.mulf %478, %477 : vector<16x128xf32>
    %480 = math.tanh %479 : vector<16x128xf32>
    %cst_264 = arith.constant 1.000000e+00 : f32
    %481 = vector.broadcast %cst_264 : f32 to vector<16x128xf32>
    %482 = arith.addf %481, %480 : vector<16x128xf32>
    %483 = arith.mulf %472, %482 : vector<16x128xf32>
    %484 = arith.truncf %483 : vector<16x128xf32> to vector<16x128xbf16>
    %c448 = arith.constant 448 : index
    %c0_265 = arith.constant 0 : index
    %485 = vector.load %arg5[%c448, %c0_265] : memref<608x128xbf16, #tpu.memory_space<vmem>>, vector<128x32xbf16>
    %cst_266 = arith.constant dense<0.000000e+00> : vector<16x32xf32>
    %486 = tpu.matmul %484, %485, %cst_266 {dimension_numbers = #tpu.dot_dimension_numbers<[1], [0], [0], [1], [0, 0, 1, 1], [], []>} : vector<16x128xbf16>, vector<128x32xbf16>, vector<16x32xf32> -> vector<16x32xf32>
    %c19 = arith.constant 19 : index
    %c0_267 = arith.constant 0 : index
    %487 = vector.load %arg6[%c19, %c0_267] : memref<24x128xf32, #tpu.memory_space<vmem>>, vector<1x32xf32>
    %488 = vector.broadcast %487 : vector<1x32xf32> to vector<16x32xf32>
    %489 = arith.addf %486, %488 : vector<16x32xf32>
    %490 = arith.addf %464, %489 : vector<16x32xf32>
    %c20 = arith.constant 20 : index
    %c0_268 = arith.constant 0 : index
    %491 = vector.load %arg6[%c20, %c0_268] : memref<24x128xf32, #tpu.memory_space<vmem>>, vector<1x32xf32>
    %c21 = arith.constant 21 : index
    %c0_269 = arith.constant 0 : index
    %492 = vector.load %arg6[%c21, %c0_269] : memref<24x128xf32, #tpu.memory_space<vmem>>, vector<1x32xf32>
    %cst_270 = arith.constant dense<0.000000e+00> : vector<16xf32>
    %493 = vector.multi_reduction <add>, %490, %cst_270 [1] : vector<16x32xf32> to vector<16xf32>
    %494 = vector.shape_cast %493 : vector<16xf32> to vector<16x1xf32>
    %cst_271 = arith.constant 3.200000e+01 : f32
    %495 = vector.broadcast %cst_271 : f32 to vector<16x1xf32>
    %496 = arith.divf %494, %495 : vector<16x1xf32>
    %497 = vector.broadcast %496 : vector<16x1xf32> to vector<16x32xf32>
    %498 = arith.subf %490, %497 : vector<16x32xf32>
    %499 = arith.mulf %498, %498 : vector<16x32xf32>
    %cst_272 = arith.constant dense<0.000000e+00> : vector<16xf32>
    %500 = vector.multi_reduction <add>, %499, %cst_272 [1] : vector<16x32xf32> to vector<16xf32>
    %501 = vector.shape_cast %500 : vector<16xf32> to vector<16x1xf32>
    %cst_273 = arith.constant 3.200000e+01 : f32
    %502 = vector.broadcast %cst_273 : f32 to vector<16x1xf32>
    %503 = arith.divf %501, %502 : vector<16x1xf32>
    %504 = vector.broadcast %496 : vector<16x1xf32> to vector<16x32xf32>
    %505 = arith.subf %490, %504 : vector<16x32xf32>
    %cst_274 = arith.constant 9.99999996E-13 : f32
    %506 = vector.broadcast %cst_274 : f32 to vector<16x1xf32>
    %507 = arith.addf %503, %506 : vector<16x1xf32>
    %508 = math.rsqrt %507 : vector<16x1xf32>
    %509 = vector.broadcast %508 : vector<16x1xf32> to vector<16x32xf32>
    %510 = arith.mulf %505, %509 : vector<16x32xf32>
    %511 = vector.broadcast %491 : vector<1x32xf32> to vector<16x32xf32>
    %512 = arith.mulf %510, %511 : vector<16x32xf32>
    %513 = vector.broadcast %492 : vector<1x32xf32> to vector<16x32xf32>
    %514 = arith.addf %512, %513 : vector<16x32xf32>
    %515 = vector.extract_strided_slice %514 {offsets = [0, 0], sizes = [1, 32], strides = [1, 1]} : vector<16x32xf32> to vector<1x32xf32>
    %516 = vector.extract_strided_slice %514 {offsets = [8, 0], sizes = [1, 32], strides = [1, 1]} : vector<16x32xf32> to vector<1x32xf32>
    %517 = tpu.concatenate %515, %516 in 0 : vector<1x32xf32>, vector<1x32xf32> -> vector<2x32xf32>
    %518 = arith.truncf %517 : vector<2x32xf32> to vector<2x32xbf16>
    %c576 = arith.constant 576 : index
    %c0_275 = arith.constant 0 : index
    %519 = vector.load %arg5[%c576, %c0_275] : memref<608x128xbf16, #tpu.memory_space<vmem>>, vector<32x4xbf16>
    %cst_276 = arith.constant dense<0.000000e+00> : vector<2x4xf32>
    %520 = tpu.matmul %518, %519, %cst_276 {dimension_numbers = #tpu.dot_dimension_numbers<[1], [0], [0], [1], [0, 0, 1, 1], [], []>} : vector<2x32xbf16>, vector<32x4xbf16>, vector<2x4xf32> -> vector<2x4xf32>
    %c22 = arith.constant 22 : index
    %c0_277 = arith.constant 0 : index
    %521 = vector.load %arg6[%c22, %c0_277] : memref<24x128xf32, #tpu.memory_space<vmem>>, vector<1x4xf32>
    %522 = vector.broadcast %521 : vector<1x4xf32> to vector<2x4xf32>
    %523 = arith.addf %520, %522 : vector<2x4xf32>
    %cst_278 = arith.constant 0.000000e+00 : f32
    %524 = vector.broadcast %cst_278 : f32 to vector<2x92xf32>
    %525 = tpu.concatenate %517, %523, %524 in 1 : vector<2x32xf32>, vector<2x4xf32>, vector<2x92xf32> -> vector<2x128xf32>
    %c0_279 = arith.constant 0 : index
    %c0_280 = arith.constant 0 : index
    %526 = vector.load %arg7[%c0_279, %c0_280] : memref<2x128xf32, #tpu.memory_space<vmem>>, vector<2x128xf32>
    tpu.vector_store %arg7[%c0_279, %c0_280], %525 {strides = array<i32>} : memref<2x128xf32, #tpu.memory_space<vmem>>, vector<2x128xf32>,
    return
  }
  func.func @transform_0(%arg0: i32, %arg1: memref<2x8xi32, #tpu.memory_space<smem>>, %arg2: memref<2x8xi32, #tpu.memory_space<smem>>) -> (i32, i32, i32) {
    %c0_i32 = arith.constant 0 : i32
    %c0_i32_0 = arith.constant 0 : i32
    %c0_i32_1 = arith.constant 0 : i32
    %c0_i32_2 = arith.constant 0 : i32
    return %c0_i32, %c0_i32_0, %c0_i32_1 : i32, i32, i32
  }
  func.func @transform_1(%arg0: i32, %arg1: memref<2x8xi32, #tpu.memory_space<smem>>, %arg2: memref<2x8xi32, #tpu.memory_space<smem>>) -> (i32, i32) {
    %c0_i32 = arith.constant 0 : i32
    %c0_i32_0 = arith.constant 0 : i32
    %c0_i32_1 = arith.constant 0 : i32
    return %c0_i32, %c0_i32_0 : i32, i32
  }
  func.func @transform_2(%arg0: i32, %arg1: memref<2x8xi32, #tpu.memory_space<smem>>, %arg2: memref<2x8xi32, #tpu.memory_space<smem>>) -> (i32, i32) {
    %c0_i32 = arith.constant 0 : i32
    %c0_i32_0 = arith.constant 0 : i32
    %c0_i32_1 = arith.constant 0 : i32
    return %c0_i32, %c0_i32_0 : i32, i32
  }
  func.func @transform_3(%arg0: i32, %arg1: memref<2x8xi32, #tpu.memory_space<smem>>, %arg2: memref<2x8xi32, #tpu.memory_space<smem>>) -> (i32, i32) {
    %c0_i32 = arith.constant 0 : i32
    %c0_i32_0 = arith.constant 0 : i32
    %c0_i32_1 = arith.constant 0 : i32
    return %c0_i32, %c0_i32_0 : i32, i32
  }
  func.func @transform_4(%arg0: i32, %arg1: memref<2x8xi32, #tpu.memory_space<smem>>, %arg2: memref<2x8xi32, #tpu.memory_space<smem>>) -> (i32, i32) {
    %c0_i32 = arith.constant 0 : i32
    %c0_i32_0 = arith.constant 0 : i32
    %c0_i32_1 = arith.constant 0 : i32
    return %c0_i32, %c0_i32_0 : i32, i32
  }
}

</mosaic_0001>

<llo_original>
// kernel: pt_forward.1
$region0: #{pt_forward.1}
  #allocation0 [shape = 'u32[]', space=smem, size = 0x4, offset = 0x4, fixed_abs, tag = 'smem constant byte address 0x4 - core index']
  #allocation1 [shape = 'u32[144,128]{1,0:T(1,128)}', space=vmem, size = 0x12000, scoped, tag = 'internal scratch']
  #allocation2 [shape = 'f32[16,32]{1,0:T(8,128)}', space=vmem, size = 0x2000, scoped, tag = 'scratch operand']
  #allocation3 [shape = 's32[1]{0}', space=sflag, size = 0x4, scoped, tag = 'scoped memory for pt_forward.1']
  #allocation4 [shape = 'u8[1024]{0}', space=smem, size = 0x400, scoped, tag = 'prefetched SMEM operand 0']
  #allocation5 [shape = 'u8[1024]{0}', space=smem, size = 0x400, scoped, tag = 'prefetched SMEM operand 1']
  %s0 = inlined_call_operand.vmem [shape: s32[2,8], index: 0, kind: input, shape index: {}]
  %s1 = inlined_call_operand.vmem [shape: s32[2,8], index: 1, kind: input, shape index: {}]
  %s2 = inlined_call_operand.vmem [shape: s32[2,1,8], index: 2, kind: input, shape index: {}]
  %s3 = inlined_call_operand.vmem [shape: f32[176,32], index: 3, kind: input, shape index: {}]
  %s4 = inlined_call_operand.hbm [shape: bf16[608,128], index: 4, kind: input, shape index: {}]
  %s5 = inlined_call_operand.vmem [shape: f32[24,128], index: 5, kind: input, shape index: {}]
  %s6 = inlined_call_operand.vmem [shape: f32[2,128], index: 6, kind: output, shape index: {}]
  %s7 = sld [smem:[#allocation0]]
  $region30: #{pt_forward.1} parent=0
    _
  %s9 = ssub.s32 1, %s7
  %s10 = scalar_select 0, %s9, %s7
  %s11 = sshll.u32 %s0, 4
  %s12 = int_to_ptr.vmem [resolvable:$true] %s11
  %14 = dma.vmem_to_smem %s12, 32, [#allocation4], [#allocation3]
  %s15 = sshll.u32 %s1, 4
  %s16 = int_to_ptr.vmem [resolvable:$true] %s15
  %18 = dma.vmem_to_smem %s16, 32, [#allocation5], [#allocation3]
  %19 = dma.done [#allocation3], 64
  %20 = sfence
  $region1: #{pt_forward.1} parent=0
    #allocation6 [shape = 'u8[155648]{0}', space=vmem, size = 0x26000, scoped, tag = 'input window, operand 4, single buffered']
    #allocation7 [shape = 's32[1]{0}', space=sflag, size = 0x4, scoped, tag = 'scoped memory for pt_forward.1']
    %21 = vsyncpa [#allocation7], 0
    // Predicated region
    $region2: #{pt_forward.1} parent=1 // pred_check
      _
    $region3: #{pt_forward.1} parent=1 // pred_check_branch
      %23 = sbr.rel (0) target = $region5
    $region4: #{pt_forward.1} parent=1 // pred_region
      _
    $region5: #{pt_forward.1} parent=1 // pred_fallthru
      _
    // Predicated region
    $region6: #{pt_forward.1} parent=1 // pred_check
      _
    $region7: #{pt_forward.1} parent=1 // pred_check_branch
      %25 = sbr.rel (0) target = $region9
    $region8: #{pt_forward.1} parent=1 // pred_region
      _
    $region9: #{pt_forward.1} parent=1 // pred_fallthru
      _
    // Predicated region
    $region10: #{pt_forward.1} parent=1 // pred_check
      _
    $region11: #{pt_forward.1} parent=1 // pred_check_branch
      %27 = sbr.rel (0) target = $region13
    $region12: #{pt_forward.1} parent=1 // pred_region
      %s29 = ssub.s32 4864, 4864
      %30 = vsyncadd [#allocation7], %s29
      %s31 = sshll.u32 [#allocation6], 4
      %s32 = int_to_ptr.vmem [resolvable:$true] %s31
      %37 = dma.hbm_to_vmem [thread:$0]  %s4, 4864, %s32, [#allocation7], 64, 64, 4
    $region13: #{pt_forward.1} parent=1 // pred_fallthru
      _
    // Predicated region
    $region14: #{pt_forward.1} parent=1 // pred_check
      _
    $region15: #{pt_forward.1} parent=1 // pred_check_branch
      %39 = sbr.rel (0) target = $region17
    $region16: #{pt_forward.1} parent=1 // pred_region
      _
    $region17: #{pt_forward.1} parent=1 // pred_fallthru
      _
    // Predicated region
    $region18: #{pt_forward.1} parent=1 // pred_check
      _
    $region19: #{pt_forward.1} parent=1 // pred_check_branch
      %41 = sbr.rel (0) target = $region21
    $region20: #{pt_forward.1} parent=1 // pred_region
      %42 = dma.done [#allocation7], 4864
    $region21: #{pt_forward.1} parent=1 // pred_fallthru
      _
    %s44 = sld [smem:[#allocation4]]
    %s45 = scalar_lea.vmem %s3, %s44
    %v46 = vld [vmem:[%s45] sm:$0x1]
    %s47 = sld [smem:[#allocation5]]
    %s48 = sadd.s32 %s47, 168
    %s49 = scalar_lea.vmem %s3, %s48
    %v50 = vld [vmem:[%s49] sm:$0x1]
    %v51 = vadd.f32 %v46, %v50
    %vm52 = vcmask 253952
    %53 = vst.msk [vmem:[#allocation2] sm:$0x1] %vm52, %v51
    %s54 = sld [smem:[#allocation4 + $0x1]]
    %s55 = scalar_lea.vmem %s3, %s54
    %v56 = vld [vmem:[%s55] sm:$0x1]
    %s57 = sld [smem:[#allocation5 + $0x1]]
    %s58 = sadd.s32 %s57, 168
    %s59 = scalar_lea.vmem %s3, %s58
    %v60 = vld [vmem:[%s59] sm:$0x1]
    %v61 = vadd.f32 %v56, %v60
    %62 = vst.msk [vmem:[#allocation2 + $0x1] sm:$0x1] %vm52, %v61
    %s63 = sld [smem:[#allocation4 + $0x2]]
    %s64 = scalar_lea.vmem %s3, %s63
    %v65 = vld [vmem:[%s64] sm:$0x1]
    %s66 = sld [smem:[#allocation5 + $0x2]]
    %s67 = sadd.s32 %s66, 168
    %s68 = scalar_lea.vmem %s3, %s67
    %v69 = vld [vmem:[%s68] sm:$0x1]
    %v70 = vadd.f32 %v65, %v69
    %71 = vst.msk [vmem:[#allocation2 + $0x2] sm:$0x1] %vm52, %v70
    %s72 = sld [smem:[#allocation4 + $0x3]]
    %s73 = scalar_lea.vmem %s3, %s72
    %v74 = vld [vmem:[%s73] sm:$0x1]
    %s75 = sld [smem:[#allocation5 + $0x3]]
    %s76 = sadd.s32 %s75, 168
    %s77 = scalar_lea.vmem %s3, %s76
    %v78 = vld [vmem:[%s77] sm:$0x1]
    %v79 = vadd.f32 %v74, %v78
    %80 = vst.msk [vmem:[#allocation2 + $0x3] sm:$0x1] %vm52, %v79
    %s81 = sld [smem:[#allocation4 + $0x4]]
    %s82 = scalar_lea.vmem %s3, %s81
    %v83 = vld [vmem:[%s82] sm:$0x1]
    %s84 = sld [smem:[#allocation5 + $0x4]]
    %s85 = sadd.s32 %s84, 168
    %s86 = scalar_lea.vmem %s3, %s85
    %v87 = vld [vmem:[%s86] sm:$0x1]
    %v88 = vadd.f32 %v83, %v87
    %89 = vst.msk [vmem:[#allocation2 + $0x4] sm:$0x1] %vm52, %v88
    %s90 = sld [smem:[#allocation4 + $0x5]]
    %s91 = scalar_lea.vmem %s3, %s90
    %v92 = vld [vmem:[%s91] sm:$0x1]
    %s93 = sld [smem:[#allocation5 + $0x5]]
    %s94 = sadd.s32 %s93, 168
    %s95 = scalar_lea.vmem %s3, %s94
    %v96 = vld [vmem:[%s95] sm:$0x1]
    %v97 = vadd.f32 %v92, %v96
    %98 = vst.msk [vmem:[#allocation2 + $0x5] sm:$0x1] %vm52, %v97
    %s99 = sld [smem:[#allocation4 + $0x6]]
    %s100 = scalar_lea.vmem %s3, %s99
    %v101 = vld [vmem:[%s100] sm:$0x1]
    %s102 = sld [smem:[#allocation5 + $0x6]]
    %s103 = sadd.s32 %s102, 168
    %s104 = scalar_lea.vmem %s3, %s103
    %v105 = vld [vmem:[%s104] sm:$0x1]
    %v106 = vadd.f32 %v101, %v105
    %107 = vst.msk [vmem:[#allocation2 + $0x6] sm:$0x1] %vm52, %v106
    %s108 = sld [smem:[#allocation4 + $0x7]]
    %s109 = scalar_lea.vmem %s3, %s108
    %v110 = vld [vmem:[%s109] sm:$0x1]
    %s111 = sld [smem:[#allocation5 + $0x7]]
    %s112 = sadd.s32 %s111, 168
    %s113 = scalar_lea.vmem %s3, %s112
    %v114 = vld [vmem:[%s113] sm:$0x1]
    %v115 = vadd.f32 %v110, %v114
    %116 = vst.msk [vmem:[#allocation2 + $0x7] sm:$0x1] %vm52, %v115
    %s117 = sld [smem:[#allocation4 + $0x80]]
    %s118 = scalar_lea.vmem %s3, %s117
    %v119 = vld [vmem:[%s118] sm:$0x1]
    %s120 = sld [smem:[#allocation5 + $0x80]]
    %s121 = sadd.s32 %s120, 168
    %s122 = scalar_lea.vmem %s3, %s121
    %v123 = vld [vmem:[%s122] sm:$0x1]
    %v124 = vadd.f32 %v119, %v123
    %125 = vst.msk [vmem:[#allocation2 + $0x8] sm:$0x1] %vm52, %v124
    %s126 = sld [smem:[#allocation4 + $0x81]]
    %s127 = scalar_lea.vmem %s3, %s126
    %v128 = vld [vmem:[%s127] sm:$0x1]
    %s129 = sld [smem:[#allocation5 + $0x81]]
    %s130 = sadd.s32 %s129, 168
    %s131 = scalar_lea.vmem %s3, %s130
    %v132 = vld [vmem:[%s131] sm:$0x1]
    %v133 = vadd.f32 %v128, %v132
    %134 = vst.msk [vmem:[#allocation2 + $0x9] sm:$0x1] %vm52, %v133
    %s135 = sld [smem:[#allocation4 + $0x82]]
    %s136 = scalar_lea.vmem %s3, %s135
    %v137 = vld [vmem:[%s136] sm:$0x1]
    %s138 = sld [smem:[#allocation5 + $0x82]]
    %s139 = sadd.s32 %s138, 168
    %s140 = scalar_lea.vmem %s3, %s139
    %v141 = vld [vmem:[%s140] sm:$0x1]
    %v142 = vadd.f32 %v137, %v141
    %143 = vst.msk [vmem:[#allocation2 + $0xa] sm:$0x1] %vm52, %v142
    %s144 = sld [smem:[#allocation4 + $0x83]]
    %s145 = scalar_lea.vmem %s3, %s144
    %v146 = vld [vmem:[%s145] sm:$0x1]
    %s147 = sld [smem:[#allocation5 + $0x83]]
    %s148 = sadd.s32 %s147, 168
    %s149 = scalar_lea.vmem %s3, %s148
    %v150 = vld [vmem:[%s149] sm:$0x1]
    %v151 = vadd.f32 %v146, %v150
    %152 = vst.msk [vmem:[#allocation2 + $0xb] sm:$0x1] %vm52, %v151
    %s153 = sld [smem:[#allocation4 + $0x84]]
    %s154 = scalar_lea.vmem %s3, %s153
    %v155 = vld [vmem:[%s154] sm:$0x1]
    %s156 = sld [smem:[#allocation5 + $0x84]]
    %s157 = sadd.s32 %s156, 168
    %s158 = scalar_lea.vmem %s3, %s157
    %v159 = vld [vmem:[%s158] sm:$0x1]
    %v160 = vadd.f32 %v155, %v159
    %161 = vst.msk [vmem:[#allocation2 + $0xc] sm:$0x1] %vm52, %v160
    %s162 = sld [smem:[#allocation4 + $0x85]]
    %s163 = scalar_lea.vmem %s3, %s162
    %v164 = vld [vmem:[%s163] sm:$0x1]
    %s165 = sld [smem:[#allocation5 + $0x85]]
    %s166 = sadd.s32 %s165, 168
    %s167 = scalar_lea.vmem %s3, %s166
    %v168 = vld [vmem:[%s167] sm:$0x1]
    %v169 = vadd.f32 %v164, %v168
    %170 = vst.msk [vmem:[#allocation2 + $0xd] sm:$0x1] %vm52, %v169
    %s171 = sld [smem:[#allocation4 + $0x86]]
    %s172 = scalar_lea.vmem %s3, %s171
    %v173 = vld [vmem:[%s172] sm:$0x1]
    %s174 = sld [smem:[#allocation5 + $0x86]]
    %s175 = sadd.s32 %s174, 168
    %s176 = scalar_lea.vmem %s3, %s175
    %v177 = vld [vmem:[%s176] sm:$0x1]
    %v178 = vadd.f32 %v173, %v177
    %179 = vst.msk [vmem:[#allocation2 + $0xe] sm:$0x1] %vm52, %v178
    %s180 = sld [smem:[#allocation4 + $0x87]]
    %s181 = scalar_lea.vmem %s3, %s180
    %v182 = vld [vmem:[%s181] sm:$0x1]
    %s183 = sld [smem:[#allocation5 + $0x87]]
    %s184 = sadd.s32 %s183, 168
    %s185 = scalar_lea.vmem %s3, %s184
    %v186 = vld [vmem:[%s185] sm:$0x1]
    %v187 = vadd.f32 %v182, %v186
    %188 = vst.msk [vmem:[#allocation2 + $0xf] sm:$0x1] %vm52, %v187
    %v189 = vld [vmem:[%s3 + $0x68] sm:$0xff]
    %v190 = vld [vmem:[#allocation2] sm:$0xff]
    %v191 = vld [vmem:[#allocation2 + $0x8] sm:$0xff]
    %v192 = vadd.f32 %v190, %v189
    %v193 = vadd.f32 %v191, %v189
    %v194 = vld [vmem:[%s5] sm:$0x1]
    %v195 = vld [vmem:[%s5 + $0x1] sm:$0x1]
    %vm196 = vcmask 261120
    %v197 = vsel %vm196, %v192, 0.0
    %198 = vadd.xlane.f32.xlu0 %v197
    %v199 = vpop.xlane.xlu0 %198
    %v200 = vsel %vm196, %v193, 0.0
    %201 = vadd.xlane.f32.xlu0 %v200
    %v202 = vpop.xlane.xlu0 %201
    %v203 = vrcp.pop 32.0
    %v204 = vmul.f32 %v199, %v203
    %v205 = vmul.f32 %v202, %v203
    %v206 = vsub.f32 %v192, %v204
    %v207 = vsub.f32 %v193, %v205
    %v208 = vmul.f32 %v206, %v206
    %v209 = vmul.f32 %v207, %v207
    %v210 = vsel %vm196, %v208, 0.0
    %211 = vadd.xlane.f32.xlu0 %v210
    %v212 = vpop.xlane.xlu0 %211
    %v213 = vsel %vm196, %v209, 0.0
    %214 = vadd.xlane.f32.xlu0 %v213
    %v215 = vpop.xlane.xlu0 %214
    %v216 = vmul.f32 %v212, %v203
    %v217 = vmul.f32 %v215, %v203
    %v218 = vadd.f32 %v216, 1e-12
    %v219 = vadd.f32 %v217, 1e-12
    %v220 = vrsqrt.pop %v218
    %v221 = vrsqrt.pop %v219
    %v222 = vmul.f32 %v206, %v220
    %v223 = vmul.f32 %v207, %v221
    %v224 = vlaneseq
    %v225 = vshrl.u32 %v224, 7
    %v226 = vsub.s32 0, %v225
    %v227 = vrot.slane %v194, %v226
    %v228 = vmul.f32 %v222, %v227
    %v229 = vmul.f32 %v223, %v227
    %v230 = vlaneseq
    %v231 = vshrl.u32 %v230, 7
    %v232 = vsub.s32 0, %v231
    %v233 = vrot.slane %v195, %v232
    %v234 = vadd.f32 %v228, %v233
    %v235 = vadd.f32 %v229, %v233
    %v236 = vld [vmem:[%s2] sm:$0x1]
    %v237 = vld [vmem:[%s2 + $0x1] sm:$0x1]
    %v238 = vcvt.s32.f32 %v236
    %v239 = vcvt.s32.f32 %v237
    %v240 = vsub.f32 1.0, %v238
    %v241 = vsub.f32 1.0, %v239
    %v242 = vmul.f32 %v240, -1e+09
    %v243 = vmul.f32 %v241, -1e+09
    %v244 = vlaneseq
    %v245 = vand.u32 %v244, 127
    %vm246 = vcmp.ge.s32.totalorder %v245, 0
    %vm247 = vcmp.lt.s32.totalorder %v245, 16
    %vm248 = vmand %vm246, %vm247
    %vm249 = vcmp.ge.s32.totalorder %v245, 16
    %vm250 = vcmp.lt.s32.totalorder %v245, 32
    %vm251 = vmand %vm249, %vm250
    %v252 = vpack.c.bf16 %v235, %v234
    %v253 = vld [vmem:[#allocation6] sm:$0xf]
    %v254 = vld [vmem:[#allocation6 + $0x4] sm:$0xf]
    %v255 = vld [vmem:[#allocation6 + $0x8] sm:$0xf]
    %v256 = vld [vmem:[#allocation6 + $0xc] sm:$0xf]
    %v257 = vld [vmem:[%s5 + $0x2] sm:$0x1]
    %v258 = vlaneseq
    %v259 = vshrl.u32 %v258, 7
    %v260 = vsub.s32 0, %v259
    %v261 = vrot.slane %v257, %v260
    %v266 = vunpack.c.l.b16 %v253
    %v267 = vunpack.c.l.b16 %v254
    %v268 = vunpack.c.l.b16 %v255
    %v269 = vunpack.c.l.b16 %v256
    %v270 = vpack.c.b16 %v267, %v266
    %v271 = vpack.c.b16 %v269, %v268
    %v275 = vsel %vm196, %v252, 0
    %277 = vmatprep.subr.bf16.mxu0 0
    %278 = vmatpush1.bf16.msra.mxu0 0
    %279 = vmatprep.subr.bf16.mxu0 0
    %280 = vmatpush1.bf16.msra.mxu0 0
    %281 = vmatprep.subr.bf16.mxu0 0
    %282 = vmatpush1.bf16.msra.mxu0 0
    %283 = vmatprep.subr.bf16.mxu0 0
    %284 = vmatpush1.bf16.msra.mxu0 0
    %285 = vmatprep.subr.bf16.mxu0 0
    %286 = vmatpush1.bf16.msra.mxu0 0
    %287 = vmatprep.subr.bf16.mxu0 0
    %288 = vmatpush1.bf16.msra.mxu0 0
    %289 = vmatprep.subr.bf16.mxu0 0
    %290 = vmatpush1.bf16.msra.mxu0 %v271
    %291 = vmatprep.subr.bf16.mxu0 0
    %292 = vmatpush1.bf16.msra.mxu0 %v270
    %293 = vmatprep.subr.bf16.mxu0 0
    %294 = vmatpush2.bf16.msra.mxu0 0
    %295 = vmatprep.subr.bf16.mxu0 0
    %296 = vmatpush2.bf16.msra.mxu0 0
    %297 = vmatprep.subr.bf16.mxu0 0
    %298 = vmatpush2.bf16.msra.mxu0 0
    %299 = vmatprep.subr.bf16.mxu0 0
    %300 = vmatpush2.bf16.msra.mxu0 0
    %301 = vmatprep.subr.bf16.mxu0 0
    %302 = vmatpush2.bf16.msra.mxu0 0
    %303 = vmatprep.subr.bf16.mxu0 0
    %304 = vmatpush2.bf16.msra.mxu0 0
    %305 = vmatprep.subr.bf16.mxu0 0
    %306 = vmatpush2.bf16.msra.mxu0 0
    %307 = vmatprep.subr.bf16.mxu0 0
    %308 = vmatpush2.bf16.msra.mxu0 0
    %309 = vmatprep.mubr.bf16.mxu0 0
    %310 = vmatmul.mubr.bf16.gmra.mxu0 %v275
    %v311 = vpop.f32.mrf.mxu0
    %v312 = vadd.f32 %v261, %v311
    %v313 = vpop.f32.mrf.mxu0
    %v314 = vpop.f32.mrf.mxu0
    %v315 = vadd.f32 %v261, %v314
    %v316 = vpop.f32.mrf.mxu0
    %317 = vdwg.mxu0
    %v318 = vld [vmem:[#allocation6 + $0x10] sm:$0xf]
    %v319 = vld [vmem:[#allocation6 + $0x14] sm:$0xf]
    %v320 = vld [vmem:[#allocation6 + $0x18] sm:$0xf]
    %v321 = vld [vmem:[#allocation6 + $0x1c] sm:$0xf]
    %v322 = vld [vmem:[%s5 + $0x3] sm:$0x1]
    %v323 = vlaneseq
    %v324 = vshrl.u32 %v323, 7
    %v325 = vsub.s32 0, %v324
    %v326 = vrot.slane %v322, %v325
    %v331 = vunpack.c.l.b16 %v318
    %v332 = vunpack.c.l.b16 %v319
    %v333 = vunpack.c.l.b16 %v320
    %v334 = vunpack.c.l.b16 %v321
    %v335 = vpack.c.b16 %v332, %v331
    %v336 = vpack.c.b16 %v334, %v333
    %339 = vmatprep.subr.bf16.mxu0 0
    %340 = vmatpush1.bf16.msra.mxu0 0
    %341 = vmatprep.subr.bf16.mxu0 0
    %342 = vmatpush1.bf16.msra.mxu0 0
    %343 = vmatprep.subr.bf16.mxu0 0
    %344 = vmatpush1.bf16.msra.mxu0 0
    %345 = vmatprep.subr.bf16.mxu0 0
    %346 = vmatpush1.bf16.msra.mxu0 0
    %347 = vmatprep.subr.bf16.mxu0 0
    %348 = vmatpush1.bf16.msra.mxu0 0
    %349 = vmatprep.subr.bf16.mxu0 0
    %350 = vmatpush1.bf16.msra.mxu0 0
    %351 = vmatprep.subr.bf16.mxu0 0
    %352 = vmatpush1.bf16.msra.mxu0 %v336
    %353 = vmatprep.subr.bf16.mxu0 0
    %354 = vmatpush1.bf16.msra.mxu0 %v335
    %355 = vmatprep.subr.bf16.mxu0 0
    %356 = vmatpush2.bf16.msra.mxu0 0
    %357 = vmatprep.subr.bf16.mxu0 0
    %358 = vmatpush2.bf16.msra.mxu0 0
    %359 = vmatprep.subr.bf16.mxu0 0
    %360 = vmatpush2.bf16.msra.mxu0 0
    %361 = vmatprep.subr.bf16.mxu0 0
    %362 = vmatpush2.bf16.msra.mxu0 0
    %363 = vmatprep.subr.bf16.mxu0 0
    %364 = vmatpush2.bf16.msra.mxu0 0
    %365 = vmatprep.subr.bf16.mxu0 0
    %366 = vmatpush2.bf16.msra.mxu0 0
    %367 = vmatprep.subr.bf16.mxu0 0
    %368 = vmatpush2.bf16.msra.mxu0 0
    %369 = vmatprep.subr.bf16.mxu0 0
    %370 = vmatpush2.bf16.msra.mxu0 0
    %371 = vmatprep.mubr.bf16.mxu0 0
    %372 = vmatmul.mubr.bf16.gmra.mxu0 %v275
    %v373 = vpop.f32.mrf.mxu0
    %v374 = vadd.f32 %v326, %v373
    %v375 = vpop.f32.mrf.mxu0
    %v376 = vpop.f32.mrf.mxu0
    %v377 = vadd.f32 %v326, %v376
    %v378 = vpop.f32.mrf.mxu0
    %379 = vdwg.mxu0
    %v380 = vld [vmem:[#allocation6 + $0x20] sm:$0xf]
    %v381 = vld [vmem:[#allocation6 + $0x24] sm:$0xf]
    %v382 = vld [vmem:[#allocation6 + $0x28] sm:$0xf]
    %v383 = vld [vmem:[#allocation6 + $0x2c] sm:$0xf]
    %v384 = vld [vmem:[%s5 + $0x4] sm:$0x1]
    %v385 = vlaneseq
    %v386 = vshrl.u32 %v385, 7
    %v387 = vsub.s32 0, %v386
    %v388 = vrot.slane %v384, %v387
    %v393 = vunpack.c.l.b16 %v380
    %v394 = vunpack.c.l.b16 %v381
    %v395 = vunpack.c.l.b16 %v382
    %v396 = vunpack.c.l.b16 %v383
    %v397 = vpack.c.b16 %v394, %v393
    %v398 = vpack.c.b16 %v396, %v395
    %401 = vmatprep.subr.bf16.mxu0 0
    %402 = vmatpush1.bf16.msra.mxu0 0
    %403 = vmatprep.subr.bf16.mxu0 0
    %404 = vmatpush1.bf16.msra.mxu0 0
    %405 = vmatprep.subr.bf16.mxu0 0
    %406 = vmatpush1.bf16.msra.mxu0 0
    %407 = vmatprep.subr.bf16.mxu0 0
    %408 = vmatpush1.bf16.msra.mxu0 0
    %409 = vmatprep.subr.bf16.mxu0 0
    %410 = vmatpush1.bf16.msra.mxu0 0
    %411 = vmatprep.subr.bf16.mxu0 0
    %412 = vmatpush1.bf16.msra.mxu0 0
    %413 = vmatprep.subr.bf16.mxu0 0
    %414 = vmatpush1.bf16.msra.mxu0 %v398
    %415 = vmatprep.subr.bf16.mxu0 0
    %416 = vmatpush1.bf16.msra.mxu0 %v397
    %417 = vmatprep.subr.bf16.mxu0 0
    %418 = vmatpush2.bf16.msra.mxu0 0
    %419 = vmatprep.subr.bf16.mxu0 0
    %420 = vmatpush2.bf16.msra.mxu0 0
    %421 = vmatprep.subr.bf16.mxu0 0
    %422 = vmatpush2.bf16.msra.mxu0 0
    %423 = vmatprep.subr.bf16.mxu0 0
    %424 = vmatpush2.bf16.msra.mxu0 0
    %425 = vmatprep.subr.bf16.mxu0 0
    %426 = vmatpush2.bf16.msra.mxu0 0
    %427 = vmatprep.subr.bf16.mxu0 0
    %428 = vmatpush2.bf16.msra.mxu0 0
    %429 = vmatprep.subr.bf16.mxu0 0
    %430 = vmatpush2.bf16.msra.mxu0 0
    %431 = vmatprep.subr.bf16.mxu0 0
    %432 = vmatpush2.bf16.msra.mxu0 0
    %433 = vmatprep.mubr.bf16.mxu0 0
    %434 = vmatmul.mubr.bf16.gmra.mxu0 %v275
    %v435 = vpop.f32.mrf.mxu0
    %v436 = vadd.f32 %v388, %v435
    %v437 = vpop.f32.mrf.mxu0
    %v438 = vpop.f32.mrf.mxu0
    %v439 = vadd.f32 %v388, %v438
    %v440 = vpop.f32.mrf.mxu0
    %441 = vdwg.mxu0
    %v442 = vpack.c.bf16 %v312, %v312
    %v443 = vpack.c.bf16 %v315, %v315
    %v444 = vsel %vm248, 1, 0
    %vm445 = vcmp.eq.s32.totalorder %v444, 1
    %v446 = vsel %vm445, %v374, 0.0
    %v447 = vsel %vm445, %v377, 0.0
    %v448 = vpack.c.bf16 %v446, %v446
    %v449 = vpack.c.bf16 %v447, %v447
    %v450 = vsel %vm445, %v436, 0.0
    %v451 = vsel %vm445, %v439, 0.0
    %v452 = vpack.c.bf16 %v450, %v450
    %v453 = vpack.c.bf16 %v451, %v451
    %v455 = vsel %vm196, %v442, 0
    %v458 = vsel %vm196, %v448, 0
    %460 = vmatprep.subr.bf16.mxu0 0
    %461 = vmatpush1.bf16.xpose.msra.mxu0 0
    %462 = vmatprep.subr.bf16.mxu0 0
    %463 = vmatpush1.bf16.xpose.msra.mxu0 0
    %464 = vmatprep.subr.bf16.mxu0 0
    %465 = vmatpush1.bf16.xpose.msra.mxu0 0
    %466 = vmatprep.subr.bf16.mxu0 0
    %467 = vmatpush1.bf16.xpose.msra.mxu0 0
    %468 = vmatprep.subr.bf16.mxu0 0
    %469 = vmatpush1.bf16.xpose.msra.mxu0 0
    %470 = vmatprep.subr.bf16.mxu0 0
    %471 = vmatpush1.bf16.xpose.msra.mxu0 0
    %472 = vmatprep.subr.bf16.mxu0 0
    %473 = vmatpush1.bf16.xpose.msra.mxu0 0
    %474 = vmatprep.subr.bf16.mxu0 0
    %475 = vmatpush1.bf16.xpose.msra.mxu0 %v458
    %476 = vmatprep.subr.bf16.mxu0 0
    %477 = vmatpush2.bf16.xpose.msra.mxu0 0
    %478 = vmatprep.subr.bf16.mxu0 0
    %479 = vmatpush2.bf16.xpose.msra.mxu0 0
    %480 = vmatprep.subr.bf16.mxu0 0
    %481 = vmatpush2.bf16.xpose.msra.mxu0 0
    %482 = vmatprep.subr.bf16.mxu0 0
    %483 = vmatpush2.bf16.xpose.msra.mxu0 0
    %484 = vmatprep.subr.bf16.mxu0 0
    %485 = vmatpush2.bf16.xpose.msra.mxu0 0
    %486 = vmatprep.subr.bf16.mxu0 0
    %487 = vmatpush2.bf16.xpose.msra.mxu0 0
    %488 = vmatprep.subr.bf16.mxu0 0
    %489 = vmatpush2.bf16.xpose.msra.mxu0 0
    %490 = vmatprep.subr.bf16.mxu0 0
    %491 = vmatpush2.bf16.xpose.msra.mxu0 0
    %492 = vmatprep.mubr.bf16.mxu0 0
    %493 = vmatmul.mubr.bf16.gmra.mxu0 %v455
    %v494 = vpop.f32.mrf.mxu0
    %v495 = vadd.f32 0.0, %v494
    %v496 = vpop.f32.mrf.mxu0
    %v497 = vpop.f32.mrf.mxu0
    %v498 = vpop.f32.mrf.mxu0
    %499 = vdwg.mxu0
    %v501 = vsel %vm196, %v443, 0
    %v504 = vsel %vm196, %v449, 0
    %506 = vmatprep.subr.bf16.mxu0 0
    %507 = vmatpush1.bf16.xpose.msra.mxu0 0
    %508 = vmatprep.subr.bf16.mxu0 0
    %509 = vmatpush1.bf16.xpose.msra.mxu0 0
    %510 = vmatprep.subr.bf16.mxu0 0
    %511 = vmatpush1.bf16.xpose.msra.mxu0 0
    %512 = vmatprep.subr.bf16.mxu0 0
    %513 = vmatpush1.bf16.xpose.msra.mxu0 0
    %514 = vmatprep.subr.bf16.mxu0 0
    %515 = vmatpush1.bf16.xpose.msra.mxu0 0
    %516 = vmatprep.subr.bf16.mxu0 0
    %517 = vmatpush1.bf16.xpose.msra.mxu0 0
    %518 = vmatprep.subr.bf16.mxu0 0
    %519 = vmatpush1.bf16.xpose.msra.mxu0 0
    %520 = vmatprep.subr.bf16.mxu0 0
    %521 = vmatpush1.bf16.xpose.msra.mxu0 %v504
    %522 = vmatprep.subr.bf16.mxu0 0
    %523 = vmatpush2.bf16.xpose.msra.mxu0 0
    %524 = vmatprep.subr.bf16.mxu0 0
    %525 = vmatpush2.bf16.xpose.msra.mxu0 0
    %526 = vmatprep.subr.bf16.mxu0 0
    %527 = vmatpush2.bf16.xpose.msra.mxu0 0
    %528 = vmatprep.subr.bf16.mxu0 0
    %529 = vmatpush2.bf16.xpose.msra.mxu0 0
    %530 = vmatprep.subr.bf16.mxu0 0
    %531 = vmatpush2.bf16.xpose.msra.mxu0 0
    %532 = vmatprep.subr.bf16.mxu0 0
    %533 = vmatpush2.bf16.xpose.msra.mxu0 0
    %534 = vmatprep.subr.bf16.mxu0 0
    %535 = vmatpush2.bf16.xpose.msra.mxu0 0
    %536 = vmatprep.subr.bf16.mxu0 0
    %537 = vmatpush2.bf16.xpose.msra.mxu0 0
    %538 = vmatprep.mubr.bf16.mxu0 0
    %539 = vmatmul.mubr.bf16.gmra.mxu0 %v501
    %v540 = vpop.f32.mrf.mxu0
    %v541 = vadd.f32 0.0, %v540
    %v542 = vpop.f32.mrf.mxu0
    %v543 = vpop.f32.mrf.mxu0
    %v544 = vpop.f32.mrf.mxu0
    %545 = vdwg.mxu0
    %v546 = vmul.f32 %v495, 0.25
    %v547 = vmul.f32 %v541, 0.25
    %v550 = vlaneseq
    %v551 = vshrl.u32 %v550, 7
    %v552 = vsub.s32 0, %v551
    %v553 = vrot.slane %v242, %v552
    %v554 = vlaneseq
    %v555 = vshrl.u32 %v554, 7
    %v556 = vsub.s32 0, %v555
    %v557 = vrot.slane %v243, %v556
    %v560 = vadd.f32 %v546, %v553
    %v561 = vadd.f32 %v547, %v557
    %vm562 = vcmask 64512
    %v563 = vsel %vm562, %v560, -inf
    %564 = vmax.xlane.f32.xlu0 %v563
    %v565 = vpop.xlane.xlu0 %564
    %v566 = vsel %vm562, %v561, -inf
    %567 = vmax.xlane.f32.xlu0 %v566
    %v568 = vpop.xlane.xlu0 %567
    %v569 = vsub.f32 %v560, %v565
    %v570 = vsub.f32 %v561, %v568
    %v571 = vmul.f32 %v569, 1.442695
    %v572 = vpow.pop %v571
    %v573 = vmul.f32 %v570, 1.442695
    %v574 = vpow.pop %v573
    %v575 = vsel %vm562, %v572, 0.0
    %576 = vadd.xlane.f32.xlu0 %v575
    %v577 = vpop.xlane.xlu0 %576
    %v578 = vsel %vm562, %v574, 0.0
    %579 = vadd.xlane.f32.xlu0 %v578
    %v580 = vpop.xlane.xlu0 %579
    %v581 = vrcp.pop %v577
    %v582 = vmul.f32 %v572, %v581
    %v583 = vrcp.pop %v580
    %v584 = vmul.f32 %v574, %v583
    %v585 = vpack.c.bf16 %v582, %v582
    %v586 = vpack.c.bf16 %v584, %v584
    %v587 = vsel %vm251, 1, 0
    %vm588 = vcmp.eq.s32.totalorder %v587, 1
    %v589 = vsel %vm588, %v374, 0.0
    %v590 = vsel %vm588, %v377, 0.0
    %v591 = vpack.c.bf16 %v589, %v589
    %v592 = vpack.c.bf16 %v590, %v590
    %v593 = vsel %vm588, %v436, 0.0
    %v594 = vsel %vm588, %v439, 0.0
    %v595 = vpack.c.bf16 %v593, %v593
    %v596 = vpack.c.bf16 %v594, %v594
    %v598 = vsel %vm196, %v591, 0
    %600 = vmatprep.subr.bf16.mxu0 0
    %601 = vmatpush1.bf16.xpose.msra.mxu0 0
    %602 = vmatprep.subr.bf16.mxu0 0
    %603 = vmatpush1.bf16.xpose.msra.mxu0 0
    %604 = vmatprep.subr.bf16.mxu0 0
    %605 = vmatpush1.bf16.xpose.msra.mxu0 0
    %606 = vmatprep.subr.bf16.mxu0 0
    %607 = vmatpush1.bf16.xpose.msra.mxu0 0
    %608 = vmatprep.subr.bf16.mxu0 0
    %609 = vmatpush1.bf16.xpose.msra.mxu0 0
    %610 = vmatprep.subr.bf16.mxu0 0
    %611 = vmatpush1.bf16.xpose.msra.mxu0 0
    %612 = vmatprep.subr.bf16.mxu0 0
    %613 = vmatpush1.bf16.xpose.msra.mxu0 0
    %614 = vmatprep.subr.bf16.mxu0 0
    %615 = vmatpush1.bf16.xpose.msra.mxu0 %v598
    %616 = vmatprep.subr.bf16.mxu0 0
    %617 = vmatpush2.bf16.xpose.msra.mxu0 0
    %618 = vmatprep.subr.bf16.mxu0 0
    %619 = vmatpush2.bf16.xpose.msra.mxu0 0
    %620 = vmatprep.subr.bf16.mxu0 0
    %621 = vmatpush2.bf16.xpose.msra.mxu0 0
    %622 = vmatprep.subr.bf16.mxu0 0
    %623 = vmatpush2.bf16.xpose.msra.mxu0 0
    %624 = vmatprep.subr.bf16.mxu0 0
    %625 = vmatpush2.bf16.xpose.msra.mxu0 0
    %626 = vmatprep.subr.bf16.mxu0 0
    %627 = vmatpush2.bf16.xpose.msra.mxu0 0
    %628 = vmatprep.subr.bf16.mxu0 0
    %629 = vmatpush2.bf16.xpose.msra.mxu0 0
    %630 = vmatprep.subr.bf16.mxu0 0
    %631 = vmatpush2.bf16.xpose.msra.mxu0 0
    %632 = vmatprep.mubr.bf16.mxu0 0
    %633 = vmatmul.mubr.bf16.gmra.mxu0 %v455
    %v634 = vpop.f32.mrf.mxu0
    %v635 = vadd.f32 0.0, %v634
    %v636 = vpop.f32.mrf.mxu0
    %v637 = vpop.f32.mrf.mxu0
    %v638 = vpop.f32.mrf.mxu0
    %639 = vdwg.mxu0
    %v641 = vsel %vm196, %v592, 0
    %643 = vmatprep.subr.bf16.mxu0 0
    %644 = vmatpush1.bf16.xpose.msra.mxu0 0
    %645 = vmatprep.subr.bf16.mxu0 0
    %646 = vmatpush1.bf16.xpose.msra.mxu0 0
    %647 = vmatprep.subr.bf16.mxu0 0
    %648 = vmatpush1.bf16.xpose.msra.mxu0 0
    %649 = vmatprep.subr.bf16.mxu0 0
    %650 = vmatpush1.bf16.xpose.msra.mxu0 0
    %651 = vmatprep.subr.bf16.mxu0 0
    %652 = vmatpush1.bf16.xpose.msra.mxu0 0
    %653 = vmatprep.subr.bf16.mxu0 0
    %654 = vmatpush1.bf16.xpose.msra.mxu0 0
    %655 = vmatprep.subr.bf16.mxu0 0
    %656 = vmatpush1.bf16.xpose.msra.mxu0 0
    %657 = vmatprep.subr.bf16.mxu0 0
    %658 = vmatpush1.bf16.xpose.msra.mxu0 %v641
    %659 = vmatprep.subr.bf16.mxu0 0
    %660 = vmatpush2.bf16.xpose.msra.mxu0 0
    %661 = vmatprep.subr.bf16.mxu0 0
    %662 = vmatpush2.bf16.xpose.msra.mxu0 0
    %663 = vmatprep.subr.bf16.mxu0 0
    %664 = vmatpush2.bf16.xpose.msra.mxu0 0
    %665 = vmatprep.subr.bf16.mxu0 0
    %666 = vmatpush2.bf16.xpose.msra.mxu0 0
    %667 = vmatprep.subr.bf16.mxu0 0
    %668 = vmatpush2.bf16.xpose.msra.mxu0 0
    %669 = vmatprep.subr.bf16.mxu0 0
    %670 = vmatpush2.bf16.xpose.msra.mxu0 0
    %671 = vmatprep.subr.bf16.mxu0 0
    %672 = vmatpush2.bf16.xpose.msra.mxu0 0
    %673 = vmatprep.subr.bf16.mxu0 0
    %674 = vmatpush2.bf16.xpose.msra.mxu0 0
    %675 = vmatprep.mubr.bf16.mxu0 0
    %676 = vmatmul.mubr.bf16.gmra.mxu0 %v501
    %v677 = vpop.f32.mrf.mxu0
    %v678 = vadd.f32 0.0, %v677
    %v679 = vpop.f32.mrf.mxu0
    %v680 = vpop.f32.mrf.mxu0
    %v681 = vpop.f32.mrf.mxu0
    %682 = vdwg.mxu0
    %v683 = vmul.f32 %v635, 0.25
    %v684 = vmul.f32 %v678, 0.25
    %v685 = vadd.f32 %v683, %v553
    %v686 = vadd.f32 %v684, %v557
    %v687 = vsel %vm562, %v685, -inf
    %688 = vmax.xlane.f32.xlu0 %v687
    %v689 = vpop.xlane.xlu0 %688
    %v690 = vsel %vm562, %v686, -inf
    %691 = vmax.xlane.f32.xlu0 %v690
    %v692 = vpop.xlane.xlu0 %691
    %v693 = vsub.f32 %v685, %v689
    %v694 = vsub.f32 %v686, %v692
    %v695 = vmul.f32 %v693, 1.442695
    %v696 = vpow.pop %v695
    %v697 = vmul.f32 %v694, 1.442695
    %v698 = vpow.pop %v697
    %v699 = vsel %vm562, %v696, 0.0
    %700 = vadd.xlane.f32.xlu0 %v699
    %v701 = vpop.xlane.xlu0 %700
    %v702 = vsel %vm562, %v698, 0.0
    %703 = vadd.xlane.f32.xlu0 %v702
    %v704 = vpop.xlane.xlu0 %703
    %v705 = vrcp.pop %v701
    %v706 = vmul.f32 %v696, %v705
    %v707 = vrcp.pop %v704
    %v708 = vmul.f32 %v698, %v707
    %v709 = vpack.c.bf16 %v706, %v706
    %v710 = vpack.c.bf16 %v708, %v708
    %v712 = vsel %vm562, %v709, 0
    %vm714 = vcmask 1043456
    %v716 = vsel %vm714, %v595, 0
    %718 = vmatprep.subr.bf16.mxu0 0
    %719 = vmatpush1.bf16.msra.mxu0 0
    %720 = vmatprep.subr.bf16.mxu0 0
    %721 = vmatpush1.bf16.msra.mxu0 0
    %722 = vmatprep.subr.bf16.mxu0 0
    %723 = vmatpush1.bf16.msra.mxu0 0
    %724 = vmatprep.subr.bf16.mxu0 0
    %725 = vmatpush1.bf16.msra.mxu0 0
    %726 = vmatprep.subr.bf16.mxu0 0
    %727 = vmatpush1.bf16.msra.mxu0 0
    %728 = vmatprep.subr.bf16.mxu0 0
    %729 = vmatpush1.bf16.msra.mxu0 0
    %730 = vmatprep.subr.bf16.mxu0 0
    %731 = vmatpush1.bf16.msra.mxu0 0
    %732 = vmatprep.subr.bf16.mxu0 0
    %733 = vmatpush1.bf16.msra.mxu0 %v716
    %734 = vmatprep.subr.bf16.mxu0 0
    %735 = vmatpush2.bf16.msra.mxu0 0
    %736 = vmatprep.subr.bf16.mxu0 0
    %737 = vmatpush2.bf16.msra.mxu0 0
    %738 = vmatprep.subr.bf16.mxu0 0
    %739 = vmatpush2.bf16.msra.mxu0 0
    %740 = vmatprep.subr.bf16.mxu0 0
    %741 = vmatpush2.bf16.msra.mxu0 0
    %742 = vmatprep.subr.bf16.mxu0 0
    %743 = vmatpush2.bf16.msra.mxu0 0
    %744 = vmatprep.subr.bf16.mxu0 0
    %745 = vmatpush2.bf16.msra.mxu0 0
    %746 = vmatprep.subr.bf16.mxu0 0
    %747 = vmatpush2.bf16.msra.mxu0 0
    %748 = vmatprep.subr.bf16.mxu0 0
    %749 = vmatpush2.bf16.msra.mxu0 0
    %750 = vmatprep.mubr.bf16.mxu0 0
    %751 = vmatmul.mubr.bf16.gmra.mxu0 %v712
    %v752 = vpop.f32.mrf.mxu0
    %v753 = vadd.f32 0.0, %v752
    %v754 = vpop.f32.mrf.mxu0
    %v755 = vpop.f32.mrf.mxu0
    %v756 = vpop.f32.mrf.mxu0
    %757 = vdwg.mxu0
    %v759 = vsel %vm562, %v710, 0
    %v762 = vsel %vm714, %v596, 0
    %764 = vmatprep.subr.bf16.mxu0 0
    %765 = vmatpush1.bf16.msra.mxu0 0
    %766 = vmatprep.subr.bf16.mxu0 0
    %767 = vmatpush1.bf16.msra.mxu0 0
    %768 = vmatprep.subr.bf16.mxu0 0
    %769 = vmatpush1.bf16.msra.mxu0 0
    %770 = vmatprep.subr.bf16.mxu0 0
    %771 = vmatpush1.bf16.msra.mxu0 0
    %772 = vmatprep.subr.bf16.mxu0 0
    %773 = vmatpush1.bf16.msra.mxu0 0
    %774 = vmatprep.subr.bf16.mxu0 0
    %775 = vmatpush1.bf16.msra.mxu0 0
    %776 = vmatprep.subr.bf16.mxu0 0
    %777 = vmatpush1.bf16.msra.mxu0 0
    %778 = vmatprep.subr.bf16.mxu0 0
    %779 = vmatpush1.bf16.msra.mxu0 %v762
    %780 = vmatprep.subr.bf16.mxu0 0
    %781 = vmatpush2.bf16.msra.mxu0 0
    %782 = vmatprep.subr.bf16.mxu0 0
    %783 = vmatpush2.bf16.msra.mxu0 0
    %784 = vmatprep.subr.bf16.mxu0 0
    %785 = vmatpush2.bf16.msra.mxu0 0
    %786 = vmatprep.subr.bf16.mxu0 0
    %787 = vmatpush2.bf16.msra.mxu0 0
    %788 = vmatprep.subr.bf16.mxu0 0
    %789 = vmatpush2.bf16.msra.mxu0 0
    %790 = vmatprep.subr.bf16.mxu0 0
    %791 = vmatpush2.bf16.msra.mxu0 0
    %792 = vmatprep.subr.bf16.mxu0 0
    %793 = vmatpush2.bf16.msra.mxu0 0
    %794 = vmatprep.subr.bf16.mxu0 0
    %795 = vmatpush2.bf16.msra.mxu0 0
    %796 = vmatprep.mubr.bf16.mxu0 0
    %797 = vmatmul.mubr.bf16.gmra.mxu0 %v759
    %v798 = vpop.f32.mrf.mxu0
    %v799 = vadd.f32 0.0, %v798
    %v800 = vpop.f32.mrf.mxu0
    %v801 = vpop.f32.mrf.mxu0
    %v802 = vpop.f32.mrf.mxu0
    %803 = vdwg.mxu0
    %v805 = vsel %vm562, %v585, 0
    %v808 = vsel %vm714, %v452, 0
    %810 = vmatprep.subr.bf16.mxu0 0
    %811 = vmatpush1.bf16.msra.mxu0 0
    %812 = vmatprep.subr.bf16.mxu0 0
    %813 = vmatpush1.bf16.msra.mxu0 0
    %814 = vmatprep.subr.bf16.mxu0 0
    %815 = vmatpush1.bf16.msra.mxu0 0
    %816 = vmatprep.subr.bf16.mxu0 0
    %817 = vmatpush1.bf16.msra.mxu0 0
    %818 = vmatprep.subr.bf16.mxu0 0
    %819 = vmatpush1.bf16.msra.mxu0 0
    %820 = vmatprep.subr.bf16.mxu0 0
    %821 = vmatpush1.bf16.msra.mxu0 0
    %822 = vmatprep.subr.bf16.mxu0 0
    %823 = vmatpush1.bf16.msra.mxu0 0
    %824 = vmatprep.subr.bf16.mxu0 0
    %825 = vmatpush1.bf16.msra.mxu0 %v808
    %826 = vmatprep.subr.bf16.mxu0 0
    %827 = vmatpush2.bf16.msra.mxu0 0
    %828 = vmatprep.subr.bf16.mxu0 0
    %829 = vmatpush2.bf16.msra.mxu0 0
    %830 = vmatprep.subr.bf16.mxu0 0
    %831 = vmatpush2.bf16.msra.mxu0 0
    %832 = vmatprep.subr.bf16.mxu0 0
    %833 = vmatpush2.bf16.msra.mxu0 0
    %834 = vmatprep.subr.bf16.mxu0 0
    %835 = vmatpush2.bf16.msra.mxu0 0
    %836 = vmatprep.subr.bf16.mxu0 0
    %837 = vmatpush2.bf16.msra.mxu0 0
    %838 = vmatprep.subr.bf16.mxu0 0
    %839 = vmatpush2.bf16.msra.mxu0 0
    %840 = vmatprep.subr.bf16.mxu0 0
    %841 = vmatpush2.bf16.msra.mxu0 0
    %842 = vmatprep.mubr.bf16.mxu0 0
    %843 = vmatmul.mubr.bf16.gmra.mxu0 %v805
    %v844 = vpop.f32.mrf.mxu0
    %v845 = vadd.f32 %v753, %v844
    %v846 = vpop.f32.mrf.mxu0
    %v847 = vpop.f32.mrf.mxu0
    %v848 = vpop.f32.mrf.mxu0
    %849 = vdwg.mxu0
    %v851 = vsel %vm562, %v586, 0
    %v854 = vsel %vm714, %v453, 0
    %856 = vmatprep.subr.bf16.mxu0 0
    %857 = vmatpush1.bf16.msra.mxu0 0
    %858 = vmatprep.subr.bf16.mxu0 0
    %859 = vmatpush1.bf16.msra.mxu0 0
    %860 = vmatprep.subr.bf16.mxu0 0
    %861 = vmatpush1.bf16.msra.mxu0 0
    %862 = vmatprep.subr.bf16.mxu0 0
    %863 = vmatpush1.bf16.msra.mxu0 0
    %864 = vmatprep.subr.bf16.mxu0 0
    %865 = vmatpush1.bf16.msra.mxu0 0
    %866 = vmatprep.subr.bf16.mxu0 0
    %867 = vmatpush1.bf16.msra.mxu0 0
    %868 = vmatprep.subr.bf16.mxu0 0
    %869 = vmatpush1.bf16.msra.mxu0 0
    %870 = vmatprep.subr.bf16.mxu0 0
    %871 = vmatpush1.bf16.msra.mxu0 %v854
    %872 = vmatprep.subr.bf16.mxu0 0
    %873 = vmatpush2.bf16.msra.mxu0 0
    %874 = vmatprep.subr.bf16.mxu0 0
    %875 = vmatpush2.bf16.msra.mxu0 0
    %876 = vmatprep.subr.bf16.mxu0 0
    %877 = vmatpush2.bf16.msra.mxu0 0
    %878 = vmatprep.subr.bf16.mxu0 0
    %879 = vmatpush2.bf16.msra.mxu0 0
    %880 = vmatprep.subr.bf16.mxu0 0
    %881 = vmatpush2.bf16.msra.mxu0 0
    %882 = vmatprep.subr.bf16.mxu0 0
    %883 = vmatpush2.bf16.msra.mxu0 0
    %884 = vmatprep.subr.bf16.mxu0 0
    %885 = vmatpush2.bf16.msra.mxu0 0
    %886 = vmatprep.subr.bf16.mxu0 0
    %887 = vmatpush2.bf16.msra.mxu0 0
    %888 = vmatprep.mubr.bf16.mxu0 0
    %889 = vmatmul.mubr.bf16.gmra.mxu0 %v851
    %v890 = vpop.f32.mrf.mxu0
    %v891 = vadd.f32 %v799, %v890
    %v892 = vpop.f32.mrf.mxu0
    %v893 = vpop.f32.mrf.mxu0
    %v894 = vpop.f32.mrf.mxu0
    %895 = vdwg.mxu0
    %v896 = vpack.c.bf16 %v891, %v845
    %v897 = vld [vmem:[#allocation6 + $0x30] sm:$0xf]
    %v898 = vld [vmem:[#allocation6 + $0x34] sm:$0xf]
    %v899 = vld [vmem:[#allocation6 + $0x38] sm:$0xf]
    %v900 = vld [vmem:[#allocation6 + $0x3c] sm:$0xf]
    %v901 = vld [vmem:[%s5 + $0x5] sm:$0x1]
    %v902 = vlaneseq
    %v903 = vshrl.u32 %v902, 7
    %v904 = vsub.s32 0, %v903
    %v905 = vrot.slane %v901, %v904
    %v910 = vunpack.c.l.b16 %v897
    %v911 = vunpack.c.l.b16 %v898
    %v912 = vunpack.c.l.b16 %v899
    %v913 = vunpack.c.l.b16 %v900
    %v914 = vpack.c.b16 %v911, %v910
    %v915 = vpack.c.b16 %v913, %v912
    %v919 = vsel %vm196, %v896, 0
    %921 = vmatprep.subr.bf16.mxu0 0
    %922 = vmatpush1.bf16.msra.mxu0 0
    %923 = vmatprep.subr.bf16.mxu0 0
    %924 = vmatpush1.bf16.msra.mxu0 0
    %925 = vmatprep.subr.bf16.mxu0 0
    %926 = vmatpush1.bf16.msra.mxu0 0
    %927 = vmatprep.subr.bf16.mxu0 0
    %928 = vmatpush1.bf16.msra.mxu0 0
    %929 = vmatprep.subr.bf16.mxu0 0
    %930 = vmatpush1.bf16.msra.mxu0 0
    %931 = vmatprep.subr.bf16.mxu0 0
    %932 = vmatpush1.bf16.msra.mxu0 0
    %933 = vmatprep.subr.bf16.mxu0 0
    %934 = vmatpush1.bf16.msra.mxu0 %v915
    %935 = vmatprep.subr.bf16.mxu0 0
    %936 = vmatpush1.bf16.msra.mxu0 %v914
    %937 = vmatprep.subr.bf16.mxu0 0
    %938 = vmatpush2.bf16.msra.mxu0 0
    %939 = vmatprep.subr.bf16.mxu0 0
    %940 = vmatpush2.bf16.msra.mxu0 0
    %941 = vmatprep.subr.bf16.mxu0 0
    %942 = vmatpush2.bf16.msra.mxu0 0
    %943 = vmatprep.subr.bf16.mxu0 0
    %944 = vmatpush2.bf16.msra.mxu0 0
    %945 = vmatprep.subr.bf16.mxu0 0
    %946 = vmatpush2.bf16.msra.mxu0 0
    %947 = vmatprep.subr.bf16.mxu0 0
    %948 = vmatpush2.bf16.msra.mxu0 0
    %949 = vmatprep.subr.bf16.mxu0 0
    %950 = vmatpush2.bf16.msra.mxu0 0
    %951 = vmatprep.subr.bf16.mxu0 0
    %952 = vmatpush2.bf16.msra.mxu0 0
    %953 = vmatprep.mubr.bf16.mxu0 0
    %954 = vmatmul.mubr.bf16.gmra.mxu0 %v919
    %v955 = vpop.f32.mrf.mxu0
    %v956 = vadd.f32 %v905, %v955
    %v957 = vpop.f32.mrf.mxu0
    %v958 = vpop.f32.mrf.mxu0
    %v959 = vadd.f32 %v905, %v958
    %v960 = vpop.f32.mrf.mxu0
    %961 = vdwg.mxu0
    %v962 = vadd.f32 %v234, %v956
    %v963 = vadd.f32 %v235, %v959
    %v964 = vld [vmem:[%s5 + $0x6] sm:$0x1]
    %v965 = vld [vmem:[%s5 + $0x7] sm:$0x1]
    %v966 = vsel %vm196, %v962, 0.0
    %967 = vadd.xlane.f32.xlu0 %v966
    %v968 = vpop.xlane.xlu0 %967
    %v969 = vsel %vm196, %v963, 0.0
    %970 = vadd.xlane.f32.xlu0 %v969
    %v971 = vpop.xlane.xlu0 %970
    %v972 = vmul.f32 %v968, %v203
    %v973 = vmul.f32 %v971, %v203
    %v974 = vsub.f32 %v962, %v972
    %v975 = vsub.f32 %v963, %v973
    %v976 = vmul.f32 %v974, %v974
    %v977 = vmul.f32 %v975, %v975
    %v978 = vsel %vm196, %v976, 0.0
    %979 = vadd.xlane.f32.xlu0 %v978
    %v980 = vpop.xlane.xlu0 %979
    %v981 = vsel %vm196, %v977, 0.0
    %982 = vadd.xlane.f32.xlu0 %v981
    %v983 = vpop.xlane.xlu0 %982
    %v984 = vmul.f32 %v980, %v203
    %v985 = vmul.f32 %v983, %v203
    %v986 = vadd.f32 %v984, 1e-12
    %v987 = vadd.f32 %v985, 1e-12
    %v988 = vrsqrt.pop %v986
    %v989 = vrsqrt.pop %v987
    %v990 = vmul.f32 %v974, %v988
    %v991 = vmul.f32 %v975, %v989
    %v992 = vlaneseq
    %v993 = vshrl.u32 %v992, 7
    %v994 = vsub.s32 0, %v993
    %v995 = vrot.slane %v964, %v994
    %v996 = vmul.f32 %v990, %v995
    %v997 = vmul.f32 %v991, %v995
    %v998 = vlaneseq
    %v999 = vshrl.u32 %v998, 7
    %v1000 = vsub.s32 0, %v999
    %v1001 = vrot.slane %v965, %v1000
    %v1002 = vadd.f32 %v996, %v1001
    %v1003 = vadd.f32 %v997, %v1001
    %v1004 = vpack.c.bf16 %v1003, %v1002
    %v1005 = vld [vmem:[#allocation6 + $0x40] sm:$0xf]
    %v1006 = vld [vmem:[#allocation6 + $0x44] sm:$0xf]
    %v1007 = vld [vmem:[#allocation6 + $0x48] sm:$0xf]
    %v1008 = vld [vmem:[#allocation6 + $0x4c] sm:$0xf]
    %v1009 = vld [vmem:[%s5 + $0x8] sm:$0x1]
    %v1010 = vlaneseq
    %v1011 = vshrl.u32 %v1010, 7
    %v1012 = vsub.s32 0, %v1011
    %v1013 = vrot.slane %v1009, %v1012
    %v1018 = vunpack.c.l.b16 %v1005
    %v1019 = vunpack.c.l.b16 %v1006
    %v1020 = vunpack.c.l.b16 %v1007
    %v1021 = vunpack.c.l.b16 %v1008
    %v1022 = vpack.c.b16 %v1019, %v1018
    %v1023 = vpack.c.b16 %v1021, %v1020
    %v1027 = vsel %vm196, %v1004, 0
    %1029 = vmatprep.subr.bf16.mxu0 0
    %1030 = vmatpush1.bf16.msra.mxu0 0
    %1031 = vmatprep.subr.bf16.mxu0 0
    %1032 = vmatpush1.bf16.msra.mxu0 0
    %1033 = vmatprep.subr.bf16.mxu0 0
    %1034 = vmatpush1.bf16.msra.mxu0 0
    %1035 = vmatprep.subr.bf16.mxu0 0
    %1036 = vmatpush1.bf16.msra.mxu0 0
    %1037 = vmatprep.subr.bf16.mxu0 0
    %1038 = vmatpush1.bf16.msra.mxu0 0
    %1039 = vmatprep.subr.bf16.mxu0 0
    %1040 = vmatpush1.bf16.msra.mxu0 0
    %1041 = vmatprep.subr.bf16.mxu0 0
    %1042 = vmatpush1.bf16.msra.mxu0 %v1023
    %1043 = vmatprep.subr.bf16.mxu0 0
    %1044 = vmatpush1.bf16.msra.mxu0 %v1022
    %1045 = vmatprep.subr.bf16.mxu0 0
    %1046 = vmatpush2.bf16.msra.mxu0 0
    %1047 = vmatprep.subr.bf16.mxu0 0
    %1048 = vmatpush2.bf16.msra.mxu0 0
    %1049 = vmatprep.subr.bf16.mxu0 0
    %1050 = vmatpush2.bf16.msra.mxu0 0
    %1051 = vmatprep.subr.bf16.mxu0 0
    %1052 = vmatpush2.bf16.msra.mxu0 0
    %1053 = vmatprep.subr.bf16.mxu0 0
    %1054 = vmatpush2.bf16.msra.mxu0 0
    %1055 = vmatprep.subr.bf16.mxu0 0
    %1056 = vmatpush2.bf16.msra.mxu0 0
    %1057 = vmatprep.subr.bf16.mxu0 0
    %1058 = vmatpush2.bf16.msra.mxu0 0
    %1059 = vmatprep.subr.bf16.mxu0 0
    %1060 = vmatpush2.bf16.msra.mxu0 0
    %1061 = vmatprep.mubr.bf16.mxu0 0
    %1062 = vmatmul.mubr.bf16.gmra.mxu0 %v1027
    %v1063 = vpop.f32.mrf.mxu0
    %v1064 = vadd.f32 %v1013, %v1063
    %v1065 = vpop.f32.mrf.mxu0
    %v1066 = vpop.f32.mrf.mxu0
    %v1067 = vadd.f32 %v1013, %v1066
    %v1068 = vpop.f32.mrf.mxu0
    %1069 = vdwg.mxu0
    %v1070 = vmul.f32 %v1064, 0.5
    %v1071 = vmul.f32 %v1067, 0.5
    %v1072 = vmul.f32 %v1064, 0.044715
    %v1073 = vmul.f32 %v1067, 0.044715
    %v1074 = vmul.f32 %v1072, %v1064
    %v1075 = vmul.f32 %v1073, %v1067
    %v1076 = vmul.f32 %v1074, %v1064
    %v1077 = vmul.f32 %v1075, %v1067
    %v1078 = vadd.f32 %v1064, %v1076
    %v1079 = vadd.f32 %v1067, %v1077
    %v1080 = vmul.f32 %v1078, 0.7978846
    %v1081 = vmul.f32 %v1079, 0.7978846
    %v1082 = vtanh.pop %v1080
    %v1083 = vtanh.pop %v1081
    %v1084 = vadd.f32 %v1082, 1.0
    %v1085 = vadd.f32 %v1083, 1.0
    %v1086 = vmul.f32 %v1070, %v1084
    %v1087 = vmul.f32 %v1071, %v1085
    %v1088 = vpack.c.bf16 %v1087, %v1086
    %v1089 = vld [vmem:[#allocation6 + $0x50] sm:$0xf]
    %v1090 = vld [vmem:[#allocation6 + $0x54] sm:$0xf]
    %v1091 = vld [vmem:[#allocation6 + $0x58] sm:$0xf]
    %v1092 = vld [vmem:[#allocation6 + $0x5c] sm:$0xf]
    %v1093 = vld [vmem:[#allocation6 + $0x60] sm:$0xf]
    %v1094 = vld [vmem:[#allocation6 + $0x64] sm:$0xf]
    %v1095 = vld [vmem:[#allocation6 + $0x68] sm:$0xf]
    %v1096 = vld [vmem:[#allocation6 + $0x6c] sm:$0xf]
    %v1097 = vld [vmem:[#allocation6 + $0x70] sm:$0xf]
    %v1098 = vld [vmem:[#allocation6 + $0x74] sm:$0xf]
    %v1099 = vld [vmem:[#allocation6 + $0x78] sm:$0xf]
    %v1100 = vld [vmem:[#allocation6 + $0x7c] sm:$0xf]
    %v1101 = vld [vmem:[#allocation6 + $0x80] sm:$0xf]
    %v1102 = vld [vmem:[#allocation6 + $0x84] sm:$0xf]
    %v1103 = vld [vmem:[#allocation6 + $0x88] sm:$0xf]
    %v1104 = vld [vmem:[#allocation6 + $0x8c] sm:$0xf]
    %v1105 = vld [vmem:[%s5 + $0x9] sm:$0x1]
    %v1106 = vlaneseq
    %v1107 = vshrl.u32 %v1106, 7
    %v1108 = vsub.s32 0, %v1107
    %v1109 = vrot.slane %v1105, %v1108
    %v1126 = vunpack.c.l.b16 %v1089
    %v1127 = vunpack.c.l.b16 %v1090
    %v1128 = vunpack.c.l.b16 %v1091
    %v1129 = vunpack.c.l.b16 %v1092
    %v1130 = vunpack.c.l.b16 %v1093
    %v1131 = vunpack.c.l.b16 %v1094
    %v1132 = vunpack.c.l.b16 %v1095
    %v1133 = vunpack.c.l.b16 %v1096
    %v1134 = vunpack.c.l.b16 %v1097
    %v1135 = vunpack.c.l.b16 %v1098
    %v1136 = vunpack.c.l.b16 %v1099
    %v1137 = vunpack.c.l.b16 %v1100
    %v1138 = vunpack.c.l.b16 %v1101
    %v1139 = vunpack.c.l.b16 %v1102
    %v1140 = vunpack.c.l.b16 %v1103
    %v1141 = vunpack.c.l.b16 %v1104
    %v1142 = vpack.c.b16 %v1127, %v1126
    %v1143 = vpack.c.b16 %v1129, %v1128
    %v1144 = vpack.c.b16 %v1131, %v1130
    %v1145 = vpack.c.b16 %v1133, %v1132
    %v1146 = vpack.c.b16 %v1135, %v1134
    %v1147 = vpack.c.b16 %v1137, %v1136
    %v1148 = vpack.c.b16 %v1139, %v1138
    %v1149 = vpack.c.b16 %v1141, %v1140
    %1158 = vmatprep.subr.bf16.mxu0 0
    %1159 = vmatpush1.bf16.msra.mxu0 %v1149
    %1160 = vmatprep.subr.bf16.mxu0 0
    %1161 = vmatpush1.bf16.msra.mxu0 %v1148
    %1162 = vmatprep.subr.bf16.mxu0 0
    %1163 = vmatpush1.bf16.msra.mxu0 %v1147
    %1164 = vmatprep.subr.bf16.mxu0 0
    %1165 = vmatpush1.bf16.msra.mxu0 %v1146
    %1166 = vmatprep.subr.bf16.mxu0 0
    %1167 = vmatpush1.bf16.msra.mxu0 %v1145
    %1168 = vmatprep.subr.bf16.mxu0 0
    %1169 = vmatpush1.bf16.msra.mxu0 %v1144
    %1170 = vmatprep.subr.bf16.mxu0 0
    %1171 = vmatpush1.bf16.msra.mxu0 %v1143
    %1172 = vmatprep.subr.bf16.mxu0 0
    %1173 = vmatpush1.bf16.msra.mxu0 %v1142
    %1174 = vmatprep.subr.bf16.mxu0 0
    %1175 = vmatpush2.bf16.msra.mxu0 0
    %1176 = vmatprep.subr.bf16.mxu0 0
    %1177 = vmatpush2.bf16.msra.mxu0 0
    %1178 = vmatprep.subr.bf16.mxu0 0
    %1179 = vmatpush2.bf16.msra.mxu0 0
    %1180 = vmatprep.subr.bf16.mxu0 0
    %1181 = vmatpush2.bf16.msra.mxu0 0
    %1182 = vmatprep.subr.bf16.mxu0 0
    %1183 = vmatpush2.bf16.msra.mxu0 0
    %1184 = vmatprep.subr.bf16.mxu0 0
    %1185 = vmatpush2.bf16.msra.mxu0 0
    %1186 = vmatprep.subr.bf16.mxu0 0
    %1187 = vmatpush2.bf16.msra.mxu0 0
    %1188 = vmatprep.subr.bf16.mxu0 0
    %1189 = vmatpush2.bf16.msra.mxu0 0
    %1190 = vmatprep.mubr.bf16.mxu0 0
    %1191 = vmatmul.mubr.bf16.gmra.mxu0 %v1088
    %v1192 = vpop.f32.mrf.mxu0
    %v1193 = vadd.f32 %v1109, %v1192
    %v1194 = vpop.f32.mrf.mxu0
    %v1195 = vpop.f32.mrf.mxu0
    %v1196 = vadd.f32 %v1109, %v1195
    %v1197 = vpop.f32.mrf.mxu0
    %1198 = vdwg.mxu0
    %v1199 = vadd.f32 %v1002, %v1193
    %v1200 = vadd.f32 %v1003, %v1196
    %v1201 = vld [vmem:[%s5 + $0xa] sm:$0x1]
    %v1202 = vld [vmem:[%s5 + $0xb] sm:$0x1]
    %v1203 = vsel %vm196, %v1199, 0.0
    %1204 = vadd.xlane.f32.xlu0 %v1203
    %v1205 = vpop.xlane.xlu0 %1204
    %v1206 = vsel %vm196, %v1200, 0.0
    %1207 = vadd.xlane.f32.xlu0 %v1206
    %v1208 = vpop.xlane.xlu0 %1207
    %v1209 = vmul.f32 %v1205, %v203
    %v1210 = vmul.f32 %v1208, %v203
    %v1211 = vsub.f32 %v1199, %v1209
    %v1212 = vsub.f32 %v1200, %v1210
    %v1213 = vmul.f32 %v1211, %v1211
    %v1214 = vmul.f32 %v1212, %v1212
    %v1215 = vsel %vm196, %v1213, 0.0
    %1216 = vadd.xlane.f32.xlu0 %v1215
    %v1217 = vpop.xlane.xlu0 %1216
    %v1218 = vsel %vm196, %v1214, 0.0
    %1219 = vadd.xlane.f32.xlu0 %v1218
    %v1220 = vpop.xlane.xlu0 %1219
    %v1221 = vmul.f32 %v1217, %v203
    %v1222 = vmul.f32 %v1220, %v203
    %v1223 = vadd.f32 %v1221, 1e-12
    %v1224 = vadd.f32 %v1222, 1e-12
    %v1225 = vrsqrt.pop %v1223
    %v1226 = vrsqrt.pop %v1224
    %v1227 = vmul.f32 %v1211, %v1225
    %v1228 = vmul.f32 %v1212, %v1226
    %v1229 = vlaneseq
    %v1230 = vshrl.u32 %v1229, 7
    %v1231 = vsub.s32 0, %v1230
    %v1232 = vrot.slane %v1201, %v1231
    %v1233 = vmul.f32 %v1227, %v1232
    %v1234 = vmul.f32 %v1228, %v1232
    %v1235 = vlaneseq
    %v1236 = vshrl.u32 %v1235, 7
    %v1237 = vsub.s32 0, %v1236
    %v1238 = vrot.slane %v1202, %v1237
    %v1239 = vadd.f32 %v1233, %v1238
    %v1240 = vadd.f32 %v1234, %v1238
    %v1241 = vpack.c.bf16 %v1240, %v1239
    %v1242 = vld [vmem:[#allocation6 + $0x90] sm:$0xf]
    %v1243 = vld [vmem:[#allocation6 + $0x94] sm:$0xf]
    %v1244 = vld [vmem:[#allocation6 + $0x98] sm:$0xf]
    %v1245 = vld [vmem:[#allocation6 + $0x9c] sm:$0xf]
    %v1246 = vld [vmem:[%s5 + $0xc] sm:$0x1]
    %v1247 = vlaneseq
    %v1248 = vshrl.u32 %v1247, 7
    %v1249 = vsub.s32 0, %v1248
    %v1250 = vrot.slane %v1246, %v1249
    %v1255 = vunpack.c.l.b16 %v1242
    %v1256 = vunpack.c.l.b16 %v1243
    %v1257 = vunpack.c.l.b16 %v1244
    %v1258 = vunpack.c.l.b16 %v1245
    %v1259 = vpack.c.b16 %v1256, %v1255
    %v1260 = vpack.c.b16 %v1258, %v1257
    %v1264 = vsel %vm196, %v1241, 0
    %1266 = vmatprep.subr.bf16.mxu0 0
    %1267 = vmatpush1.bf16.msra.mxu0 0
    %1268 = vmatprep.subr.bf16.mxu0 0
    %1269 = vmatpush1.bf16.msra.mxu0 0
    %1270 = vmatprep.subr.bf16.mxu0 0
    %1271 = vmatpush1.bf16.msra.mxu0 0
    %1272 = vmatprep.subr.bf16.mxu0 0
    %1273 = vmatpush1.bf16.msra.mxu0 0
    %1274 = vmatprep.subr.bf16.mxu0 0
    %1275 = vmatpush1.bf16.msra.mxu0 0
    %1276 = vmatprep.subr.bf16.mxu0 0
    %1277 = vmatpush1.bf16.msra.mxu0 0
    %1278 = vmatprep.subr.bf16.mxu0 0
    %1279 = vmatpush1.bf16.msra.mxu0 %v1260
    %1280 = vmatprep.subr.bf16.mxu0 0
    %1281 = vmatpush1.bf16.msra.mxu0 %v1259
    %1282 = vmatprep.subr.bf16.mxu0 0
    %1283 = vmatpush2.bf16.msra.mxu0 0
    %1284 = vmatprep.subr.bf16.mxu0 0
    %1285 = vmatpush2.bf16.msra.mxu0 0
    %1286 = vmatprep.subr.bf16.mxu0 0
    %1287 = vmatpush2.bf16.msra.mxu0 0
    %1288 = vmatprep.subr.bf16.mxu0 0
    %1289 = vmatpush2.bf16.msra.mxu0 0
    %1290 = vmatprep.subr.bf16.mxu0 0
    %1291 = vmatpush2.bf16.msra.mxu0 0
    %1292 = vmatprep.subr.bf16.mxu0 0
    %1293 = vmatpush2.bf16.msra.mxu0 0
    %1294 = vmatprep.subr.bf16.mxu0 0
    %1295 = vmatpush2.bf16.msra.mxu0 0
    %1296 = vmatprep.subr.bf16.mxu0 0
    %1297 = vmatpush2.bf16.msra.mxu0 0
    %1298 = vmatprep.mubr.bf16.mxu0 0
    %1299 = vmatmul.mubr.bf16.gmra.mxu0 %v1264
    %v1300 = vpop.f32.mrf.mxu0
    %v1301 = vadd.f32 %v1250, %v1300
    %v1302 = vpop.f32.mrf.mxu0
    %v1303 = vpop.f32.mrf.mxu0
    %v1304 = vadd.f32 %v1250, %v1303
    %v1305 = vpop.f32.mrf.mxu0
    %1306 = vdwg.mxu0
    %v1307 = vld [vmem:[#allocation6 + $0xa0] sm:$0xf]
    %v1308 = vld [vmem:[#allocation6 + $0xa4] sm:$0xf]
    %v1309 = vld [vmem:[#allocation6 + $0xa8] sm:$0xf]
    %v1310 = vld [vmem:[#allocation6 + $0xac] sm:$0xf]
    %v1311 = vld [vmem:[%s5 + $0xd] sm:$0x1]
    %v1312 = vlaneseq
    %v1313 = vshrl.u32 %v1312, 7
    %v1314 = vsub.s32 0, %v1313
    %v1315 = vrot.slane %v1311, %v1314
    %v1320 = vunpack.c.l.b16 %v1307
    %v1321 = vunpack.c.l.b16 %v1308
    %v1322 = vunpack.c.l.b16 %v1309
    %v1323 = vunpack.c.l.b16 %v1310
    %v1324 = vpack.c.b16 %v1321, %v1320
    %v1325 = vpack.c.b16 %v1323, %v1322
    %1328 = vmatprep.subr.bf16.mxu0 0
    %1329 = vmatpush1.bf16.msra.mxu0 0
    %1330 = vmatprep.subr.bf16.mxu0 0
    %1331 = vmatpush1.bf16.msra.mxu0 0
    %1332 = vmatprep.subr.bf16.mxu0 0
    %1333 = vmatpush1.bf16.msra.mxu0 0
    %1334 = vmatprep.subr.bf16.mxu0 0
    %1335 = vmatpush1.bf16.msra.mxu0 0
    %1336 = vmatprep.subr.bf16.mxu0 0
    %1337 = vmatpush1.bf16.msra.mxu0 0
    %1338 = vmatprep.subr.bf16.mxu0 0
    %1339 = vmatpush1.bf16.msra.mxu0 0
    %1340 = vmatprep.subr.bf16.mxu0 0
    %1341 = vmatpush1.bf16.msra.mxu0 %v1325
    %1342 = vmatprep.subr.bf16.mxu0 0
    %1343 = vmatpush1.bf16.msra.mxu0 %v1324
    %1344 = vmatprep.subr.bf16.mxu0 0
    %1345 = vmatpush2.bf16.msra.mxu0 0
    %1346 = vmatprep.subr.bf16.mxu0 0
    %1347 = vmatpush2.bf16.msra.mxu0 0
    %1348 = vmatprep.subr.bf16.mxu0 0
    %1349 = vmatpush2.bf16.msra.mxu0 0
    %1350 = vmatprep.subr.bf16.mxu0 0
    %1351 = vmatpush2.bf16.msra.mxu0 0
    %1352 = vmatprep.subr.bf16.mxu0 0
    %1353 = vmatpush2.bf16.msra.mxu0 0
    %1354 = vmatprep.subr.bf16.mxu0 0
    %1355 = vmatpush2.bf16.msra.mxu0 0
    %1356 = vmatprep.subr.bf16.mxu0 0
    %1357 = vmatpush2.bf16.msra.mxu0 0
    %1358 = vmatprep.subr.bf16.mxu0 0
    %1359 = vmatpush2.bf16.msra.mxu0 0
    %1360 = vmatprep.mubr.bf16.mxu0 0
    %1361 = vmatmul.mubr.bf16.gmra.mxu0 %v1264
    %v1362 = vpop.f32.mrf.mxu0
    %v1363 = vadd.f32 %v1315, %v1362
    %v1364 = vpop.f32.mrf.mxu0
    %v1365 = vpop.f32.mrf.mxu0
    %v1366 = vadd.f32 %v1315, %v1365
    %v1367 = vpop.f32.mrf.mxu0
    %1368 = vdwg.mxu0
    %v1369 = vld [vmem:[#allocation6 + $0xb0] sm:$0xf]
    %v1370 = vld [vmem:[#allocation6 + $0xb4] sm:$0xf]
    %v1371 = vld [vmem:[#allocation6 + $0xb8] sm:$0xf]
    %v1372 = vld [vmem:[#allocation6 + $0xbc] sm:$0xf]
    %v1373 = vld [vmem:[%s5 + $0xe] sm:$0x1]
    %v1374 = vlaneseq
    %v1375 = vshrl.u32 %v1374, 7
    %v1376 = vsub.s32 0, %v1375
    %v1377 = vrot.slane %v1373, %v1376
    %v1382 = vunpack.c.l.b16 %v1369
    %v1383 = vunpack.c.l.b16 %v1370
    %v1384 = vunpack.c.l.b16 %v1371
    %v1385 = vunpack.c.l.b16 %v1372
    %v1386 = vpack.c.b16 %v1383, %v1382
    %v1387 = vpack.c.b16 %v1385, %v1384
    %1390 = vmatprep.subr.bf16.mxu0 0
    %1391 = vmatpush1.bf16.msra.mxu0 0
    %1392 = vmatprep.subr.bf16.mxu0 0
    %1393 = vmatpush1.bf16.msra.mxu0 0
    %1394 = vmatprep.subr.bf16.mxu0 0
    %1395 = vmatpush1.bf16.msra.mxu0 0
    %1396 = vmatprep.subr.bf16.mxu0 0
    %1397 = vmatpush1.bf16.msra.mxu0 0
    %1398 = vmatprep.subr.bf16.mxu0 0
    %1399 = vmatpush1.bf16.msra.mxu0 0
    %1400 = vmatprep.subr.bf16.mxu0 0
    %1401 = vmatpush1.bf16.msra.mxu0 0
    %1402 = vmatprep.subr.bf16.mxu0 0
    %1403 = vmatpush1.bf16.msra.mxu0 %v1387
    %1404 = vmatprep.subr.bf16.mxu0 0
    %1405 = vmatpush1.bf16.msra.mxu0 %v1386
    %1406 = vmatprep.subr.bf16.mxu0 0
    %1407 = vmatpush2.bf16.msra.mxu0 0
    %1408 = vmatprep.subr.bf16.mxu0 0
    %1409 = vmatpush2.bf16.msra.mxu0 0
    %1410 = vmatprep.subr.bf16.mxu0 0
    %1411 = vmatpush2.bf16.msra.mxu0 0
    %1412 = vmatprep.subr.bf16.mxu0 0
    %1413 = vmatpush2.bf16.msra.mxu0 0
    %1414 = vmatprep.subr.bf16.mxu0 0
    %1415 = vmatpush2.bf16.msra.mxu0 0
    %1416 = vmatprep.subr.bf16.mxu0 0
    %1417 = vmatpush2.bf16.msra.mxu0 0
    %1418 = vmatprep.subr.bf16.mxu0 0
    %1419 = vmatpush2.bf16.msra.mxu0 0
    %1420 = vmatprep.subr.bf16.mxu0 0
    %1421 = vmatpush2.bf16.msra.mxu0 0
    %1422 = vmatprep.mubr.bf16.mxu0 0
    %1423 = vmatmul.mubr.bf16.gmra.mxu0 %v1264
    %v1424 = vpop.f32.mrf.mxu0
    %v1425 = vadd.f32 %v1377, %v1424
    %v1426 = vpop.f32.mrf.mxu0
    %v1427 = vpop.f32.mrf.mxu0
    %v1428 = vadd.f32 %v1377, %v1427
    %v1429 = vpop.f32.mrf.mxu0
    %1430 = vdwg.mxu0
    %v1431 = vpack.c.bf16 %v1301, %v1301
    %v1432 = vpack.c.bf16 %v1304, %v1304
    %v1433 = vsel %vm445, %v1363, 0.0
    %v1434 = vsel %vm445, %v1366, 0.0
    %v1435 = vpack.c.bf16 %v1433, %v1433
    %v1436 = vpack.c.bf16 %v1434, %v1434
    %v1437 = vsel %vm445, %v1425, 0.0
    %v1438 = vsel %vm445, %v1428, 0.0
    %v1439 = vpack.c.bf16 %v1437, %v1437
    %v1440 = vpack.c.bf16 %v1438, %v1438
    %v1442 = vsel %vm196, %v1431, 0
    %v1445 = vsel %vm196, %v1435, 0
    %1447 = vmatprep.subr.bf16.mxu0 0
    %1448 = vmatpush1.bf16.xpose.msra.mxu0 0
    %1449 = vmatprep.subr.bf16.mxu0 0
    %1450 = vmatpush1.bf16.xpose.msra.mxu0 0
    %1451 = vmatprep.subr.bf16.mxu0 0
    %1452 = vmatpush1.bf16.xpose.msra.mxu0 0
    %1453 = vmatprep.subr.bf16.mxu0 0
    %1454 = vmatpush1.bf16.xpose.msra.mxu0 0
    %1455 = vmatprep.subr.bf16.mxu0 0
    %1456 = vmatpush1.bf16.xpose.msra.mxu0 0
    %1457 = vmatprep.subr.bf16.mxu0 0
    %1458 = vmatpush1.bf16.xpose.msra.mxu0 0
    %1459 = vmatprep.subr.bf16.mxu0 0
    %1460 = vmatpush1.bf16.xpose.msra.mxu0 0
    %1461 = vmatprep.subr.bf16.mxu0 0
    %1462 = vmatpush1.bf16.xpose.msra.mxu0 %v1445
    %1463 = vmatprep.subr.bf16.mxu0 0
    %1464 = vmatpush2.bf16.xpose.msra.mxu0 0
    %1465 = vmatprep.subr.bf16.mxu0 0
    %1466 = vmatpush2.bf16.xpose.msra.mxu0 0
    %1467 = vmatprep.subr.bf16.mxu0 0
    %1468 = vmatpush2.bf16.xpose.msra.mxu0 0
    %1469 = vmatprep.subr.bf16.mxu0 0
    %1470 = vmatpush2.bf16.xpose.msra.mxu0 0
    %1471 = vmatprep.subr.bf16.mxu0 0
    %1472 = vmatpush2.bf16.xpose.msra.mxu0 0
    %1473 = vmatprep.subr.bf16.mxu0 0
    %1474 = vmatpush2.bf16.xpose.msra.mxu0 0
    %1475 = vmatprep.subr.bf16.mxu0 0
    %1476 = vmatpush2.bf16.xpose.msra.mxu0 0
    %1477 = vmatprep.subr.bf16.mxu0 0
    %1478 = vmatpush2.bf16.xpose.msra.mxu0 0
    %1479 = vmatprep.mubr.bf16.mxu0 0
    %1480 = vmatmul.mubr.bf16.gmra.mxu0 %v1442
    %v1481 = vpop.f32.mrf.mxu0
    %v1482 = vadd.f32 0.0, %v1481
    %v1483 = vpop.f32.mrf.mxu0
    %v1484 = vpop.f32.mrf.mxu0
    %v1485 = vpop.f32.mrf.mxu0
    %1486 = vdwg.mxu0
    %v1488 = vsel %vm196, %v1432, 0
    %v1491 = vsel %vm196, %v1436, 0
    %1493 = vmatprep.subr.bf16.mxu0 0
    %1494 = vmatpush1.bf16.xpose.msra.mxu0 0
    %1495 = vmatprep.subr.bf16.mxu0 0
    %1496 = vmatpush1.bf16.xpose.msra.mxu0 0
    %1497 = vmatprep.subr.bf16.mxu0 0
    %1498 = vmatpush1.bf16.xpose.msra.mxu0 0
    %1499 = vmatprep.subr.bf16.mxu0 0
    %1500 = vmatpush1.bf16.xpose.msra.mxu0 0
    %1501 = vmatprep.subr.bf16.mxu0 0
    %1502 = vmatpush1.bf16.xpose.msra.mxu0 0
    %1503 = vmatprep.subr.bf16.mxu0 0
    %1504 = vmatpush1.bf16.xpose.msra.mxu0 0
    %1505 = vmatprep.subr.bf16.mxu0 0
    %1506 = vmatpush1.bf16.xpose.msra.mxu0 0
    %1507 = vmatprep.subr.bf16.mxu0 0
    %1508 = vmatpush1.bf16.xpose.msra.mxu0 %v1491
    %1509 = vmatprep.subr.bf16.mxu0 0
    %1510 = vmatpush2.bf16.xpose.msra.mxu0 0
    %1511 = vmatprep.subr.bf16.mxu0 0
    %1512 = vmatpush2.bf16.xpose.msra.mxu0 0
    %1513 = vmatprep.subr.bf16.mxu0 0
    %1514 = vmatpush2.bf16.xpose.msra.mxu0 0
    %1515 = vmatprep.subr.bf16.mxu0 0
    %1516 = vmatpush2.bf16.xpose.msra.mxu0 0
    %1517 = vmatprep.subr.bf16.mxu0 0
    %1518 = vmatpush2.bf16.xpose.msra.mxu0 0
    %1519 = vmatprep.subr.bf16.mxu0 0
    %1520 = vmatpush2.bf16.xpose.msra.mxu0 0
    %1521 = vmatprep.subr.bf16.mxu0 0
    %1522 = vmatpush2.bf16.xpose.msra.mxu0 0
    %1523 = vmatprep.subr.bf16.mxu0 0
    %1524 = vmatpush2.bf16.xpose.msra.mxu0 0
    %1525 = vmatprep.mubr.bf16.mxu0 0
    %1526 = vmatmul.mubr.bf16.gmra.mxu0 %v1488
    %v1527 = vpop.f32.mrf.mxu0
    %v1528 = vadd.f32 0.0, %v1527
    %v1529 = vpop.f32.mrf.mxu0
    %v1530 = vpop.f32.mrf.mxu0
    %v1531 = vpop.f32.mrf.mxu0
    %1532 = vdwg.mxu0
    %v1533 = vmul.f32 %v1482, 0.25
    %v1534 = vmul.f32 %v1528, 0.25
    %v1535 = vadd.f32 %v1533, %v553
    %v1536 = vadd.f32 %v1534, %v557
    %v1537 = vsel %vm562, %v1535, -inf
    %1538 = vmax.xlane.f32.xlu0 %v1537
    %v1539 = vpop.xlane.xlu0 %1538
    %v1540 = vsel %vm562, %v1536, -inf
    %1541 = vmax.xlane.f32.xlu0 %v1540
    %v1542 = vpop.xlane.xlu0 %1541
    %v1543 = vsub.f32 %v1535, %v1539
    %v1544 = vsub.f32 %v1536, %v1542
    %v1545 = vmul.f32 %v1543, 1.442695
    %v1546 = vpow.pop %v1545
    %v1547 = vmul.f32 %v1544, 1.442695
    %v1548 = vpow.pop %v1547
    %v1549 = vsel %vm562, %v1546, 0.0
    %1550 = vadd.xlane.f32.xlu0 %v1549
    %v1551 = vpop.xlane.xlu0 %1550
    %v1552 = vsel %vm562, %v1548, 0.0
    %1553 = vadd.xlane.f32.xlu0 %v1552
    %v1554 = vpop.xlane.xlu0 %1553
    %v1555 = vrcp.pop %v1551
    %v1556 = vmul.f32 %v1546, %v1555
    %v1557 = vrcp.pop %v1554
    %v1558 = vmul.f32 %v1548, %v1557
    %v1559 = vpack.c.bf16 %v1556, %v1556
    %v1560 = vpack.c.bf16 %v1558, %v1558
    %v1561 = vsel %vm588, %v1363, 0.0
    %v1562 = vsel %vm588, %v1366, 0.0
    %v1563 = vpack.c.bf16 %v1561, %v1561
    %v1564 = vpack.c.bf16 %v1562, %v1562
    %v1565 = vsel %vm588, %v1425, 0.0
    %v1566 = vsel %vm588, %v1428, 0.0
    %v1567 = vpack.c.bf16 %v1565, %v1565
    %v1568 = vpack.c.bf16 %v1566, %v1566
    %v1570 = vsel %vm196, %v1563, 0
    %1572 = vmatprep.subr.bf16.mxu0 0
    %1573 = vmatpush1.bf16.xpose.msra.mxu0 0
    %1574 = vmatprep.subr.bf16.mxu0 0
    %1575 = vmatpush1.bf16.xpose.msra.mxu0 0
    %1576 = vmatprep.subr.bf16.mxu0 0
    %1577 = vmatpush1.bf16.xpose.msra.mxu0 0
    %1578 = vmatprep.subr.bf16.mxu0 0
    %1579 = vmatpush1.bf16.xpose.msra.mxu0 0
    %1580 = vmatprep.subr.bf16.mxu0 0
    %1581 = vmatpush1.bf16.xpose.msra.mxu0 0
    %1582 = vmatprep.subr.bf16.mxu0 0
    %1583 = vmatpush1.bf16.xpose.msra.mxu0 0
    %1584 = vmatprep.subr.bf16.mxu0 0
    %1585 = vmatpush1.bf16.xpose.msra.mxu0 0
    %1586 = vmatprep.subr.bf16.mxu0 0
    %1587 = vmatpush1.bf16.xpose.msra.mxu0 %v1570
    %1588 = vmatprep.subr.bf16.mxu0 0
    %1589 = vmatpush2.bf16.xpose.msra.mxu0 0
    %1590 = vmatprep.subr.bf16.mxu0 0
    %1591 = vmatpush2.bf16.xpose.msra.mxu0 0
    %1592 = vmatprep.subr.bf16.mxu0 0
    %1593 = vmatpush2.bf16.xpose.msra.mxu0 0
    %1594 = vmatprep.subr.bf16.mxu0 0
    %1595 = vmatpush2.bf16.xpose.msra.mxu0 0
    %1596 = vmatprep.subr.bf16.mxu0 0
    %1597 = vmatpush2.bf16.xpose.msra.mxu0 0
    %1598 = vmatprep.subr.bf16.mxu0 0
    %1599 = vmatpush2.bf16.xpose.msra.mxu0 0
    %1600 = vmatprep.subr.bf16.mxu0 0
    %1601 = vmatpush2.bf16.xpose.msra.mxu0 0
    %1602 = vmatprep.subr.bf16.mxu0 0
    %1603 = vmatpush2.bf16.xpose.msra.mxu0 0
    %1604 = vmatprep.mubr.bf16.mxu0 0
    %1605 = vmatmul.mubr.bf16.gmra.mxu0 %v1442
    %v1606 = vpop.f32.mrf.mxu0
    %v1607 = vadd.f32 0.0, %v1606
    %v1608 = vpop.f32.mrf.mxu0
    %v1609 = vpop.f32.mrf.mxu0
    %v1610 = vpop.f32.mrf.mxu0
    %1611 = vdwg.mxu0
    %v1613 = vsel %vm196, %v1564, 0
    %1615 = vmatprep.subr.bf16.mxu0 0
    %1616 = vmatpush1.bf16.xpose.msra.mxu0 0
    %1617 = vmatprep.subr.bf16.mxu0 0
    %1618 = vmatpush1.bf16.xpose.msra.mxu0 0
    %1619 = vmatprep.subr.bf16.mxu0 0
    %1620 = vmatpush1.bf16.xpose.msra.mxu0 0
    %1621 = vmatprep.subr.bf16.mxu0 0
    %1622 = vmatpush1.bf16.xpose.msra.mxu0 0
    %1623 = vmatprep.subr.bf16.mxu0 0
    %1624 = vmatpush1.bf16.xpose.msra.mxu0 0
    %1625 = vmatprep.subr.bf16.mxu0 0
    %1626 = vmatpush1.bf16.xpose.msra.mxu0 0
    %1627 = vmatprep.subr.bf16.mxu0 0
    %1628 = vmatpush1.bf16.xpose.msra.mxu0 0
    %1629 = vmatprep.subr.bf16.mxu0 0
    %1630 = vmatpush1.bf16.xpose.msra.mxu0 %v1613
    %1631 = vmatprep.subr.bf16.mxu0 0
    %1632 = vmatpush2.bf16.xpose.msra.mxu0 0
    %1633 = vmatprep.subr.bf16.mxu0 0
    %1634 = vmatpush2.bf16.xpose.msra.mxu0 0
    %1635 = vmatprep.subr.bf16.mxu0 0
    %1636 = vmatpush2.bf16.xpose.msra.mxu0 0
    %1637 = vmatprep.subr.bf16.mxu0 0
    %1638 = vmatpush2.bf16.xpose.msra.mxu0 0
    %1639 = vmatprep.subr.bf16.mxu0 0
    %1640 = vmatpush2.bf16.xpose.msra.mxu0 0
    %1641 = vmatprep.subr.bf16.mxu0 0
    %1642 = vmatpush2.bf16.xpose.msra.mxu0 0
    %1643 = vmatprep.subr.bf16.mxu0 0
    %1644 = vmatpush2.bf16.xpose.msra.mxu0 0
    %1645 = vmatprep.subr.bf16.mxu0 0
    %1646 = vmatpush2.bf16.xpose.msra.mxu0 0
    %1647 = vmatprep.mubr.bf16.mxu0 0
    %1648 = vmatmul.mubr.bf16.gmra.mxu0 %v1488
    %v1649 = vpop.f32.mrf.mxu0
    %v1650 = vadd.f32 0.0, %v1649
    %v1651 = vpop.f32.mrf.mxu0
    %v1652 = vpop.f32.mrf.mxu0
    %v1653 = vpop.f32.mrf.mxu0
    %1654 = vdwg.mxu0
    %v1655 = vmul.f32 %v1607, 0.25
    %v1656 = vmul.f32 %v1650, 0.25
    %v1657 = vadd.f32 %v1655, %v553
    %v1658 = vadd.f32 %v1656, %v557
    %v1659 = vsel %vm562, %v1657, -inf
    %1660 = vmax.xlane.f32.xlu0 %v1659
    %v1661 = vpop.xlane.xlu0 %1660
    %v1662 = vsel %vm562, %v1658, -inf
    %1663 = vmax.xlane.f32.xlu0 %v1662
    %v1664 = vpop.xlane.xlu0 %1663
    %v1665 = vsub.f32 %v1657, %v1661
    %v1666 = vsub.f32 %v1658, %v1664
    %v1667 = vmul.f32 %v1665, 1.442695
    %v1668 = vpow.pop %v1667
    %v1669 = vmul.f32 %v1666, 1.442695
    %v1670 = vpow.pop %v1669
    %v1671 = vsel %vm562, %v1668, 0.0
    %1672 = vadd.xlane.f32.xlu0 %v1671
    %v1673 = vpop.xlane.xlu0 %1672
    %v1674 = vsel %vm562, %v1670, 0.0
    %1675 = vadd.xlane.f32.xlu0 %v1674
    %v1676 = vpop.xlane.xlu0 %1675
    %v1677 = vrcp.pop %v1673
    %v1678 = vmul.f32 %v1668, %v1677
    %v1679 = vrcp.pop %v1676
    %v1680 = vmul.f32 %v1670, %v1679
    %v1681 = vpack.c.bf16 %v1678, %v1678
    %v1682 = vpack.c.bf16 %v1680, %v1680
    %v1684 = vsel %vm562, %v1681, 0
    %v1687 = vsel %vm714, %v1567, 0
    %1689 = vmatprep.subr.bf16.mxu0 0
    %1690 = vmatpush1.bf16.msra.mxu0 0
    %1691 = vmatprep.subr.bf16.mxu0 0
    %1692 = vmatpush1.bf16.msra.mxu0 0
    %1693 = vmatprep.subr.bf16.mxu0 0
    %1694 = vmatpush1.bf16.msra.mxu0 0
    %1695 = vmatprep.subr.bf16.mxu0 0
    %1696 = vmatpush1.bf16.msra.mxu0 0
    %1697 = vmatprep.subr.bf16.mxu0 0
    %1698 = vmatpush1.bf16.msra.mxu0 0
    %1699 = vmatprep.subr.bf16.mxu0 0
    %1700 = vmatpush1.bf16.msra.mxu0 0
    %1701 = vmatprep.subr.bf16.mxu0 0
    %1702 = vmatpush1.bf16.msra.mxu0 0
    %1703 = vmatprep.subr.bf16.mxu0 0
    %1704 = vmatpush1.bf16.msra.mxu0 %v1687
    %1705 = vmatprep.subr.bf16.mxu0 0
    %1706 = vmatpush2.bf16.msra.mxu0 0
    %1707 = vmatprep.subr.bf16.mxu0 0
    %1708 = vmatpush2.bf16.msra.mxu0 0
    %1709 = vmatprep.subr.bf16.mxu0 0
    %1710 = vmatpush2.bf16.msra.mxu0 0
    %1711 = vmatprep.subr.bf16.mxu0 0
    %1712 = vmatpush2.bf16.msra.mxu0 0
    %1713 = vmatprep.subr.bf16.mxu0 0
    %1714 = vmatpush2.bf16.msra.mxu0 0
    %1715 = vmatprep.subr.bf16.mxu0 0
    %1716 = vmatpush2.bf16.msra.mxu0 0
    %1717 = vmatprep.subr.bf16.mxu0 0
    %1718 = vmatpush2.bf16.msra.mxu0 0
    %1719 = vmatprep.subr.bf16.mxu0 0
    %1720 = vmatpush2.bf16.msra.mxu0 0
    %1721 = vmatprep.mubr.bf16.mxu0 0
    %1722 = vmatmul.mubr.bf16.gmra.mxu0 %v1684
    %v1723 = vpop.f32.mrf.mxu0
    %v1724 = vadd.f32 0.0, %v1723
    %v1725 = vpop.f32.mrf.mxu0
    %v1726 = vpop.f32.mrf.mxu0
    %v1727 = vpop.f32.mrf.mxu0
    %1728 = vdwg.mxu0
    %v1730 = vsel %vm562, %v1682, 0
    %v1733 = vsel %vm714, %v1568, 0
    %1735 = vmatprep.subr.bf16.mxu0 0
    %1736 = vmatpush1.bf16.msra.mxu0 0
    %1737 = vmatprep.subr.bf16.mxu0 0
    %1738 = vmatpush1.bf16.msra.mxu0 0
    %1739 = vmatprep.subr.bf16.mxu0 0
    %1740 = vmatpush1.bf16.msra.mxu0 0
    %1741 = vmatprep.subr.bf16.mxu0 0
    %1742 = vmatpush1.bf16.msra.mxu0 0
    %1743 = vmatprep.subr.bf16.mxu0 0
    %1744 = vmatpush1.bf16.msra.mxu0 0
    %1745 = vmatprep.subr.bf16.mxu0 0
    %1746 = vmatpush1.bf16.msra.mxu0 0
    %1747 = vmatprep.subr.bf16.mxu0 0
    %1748 = vmatpush1.bf16.msra.mxu0 0
    %1749 = vmatprep.subr.bf16.mxu0 0
    %1750 = vmatpush1.bf16.msra.mxu0 %v1733
    %1751 = vmatprep.subr.bf16.mxu0 0
    %1752 = vmatpush2.bf16.msra.mxu0 0
    %1753 = vmatprep.subr.bf16.mxu0 0
    %1754 = vmatpush2.bf16.msra.mxu0 0
    %1755 = vmatprep.subr.bf16.mxu0 0
    %1756 = vmatpush2.bf16.msra.mxu0 0
    %1757 = vmatprep.subr.bf16.mxu0 0
    %1758 = vmatpush2.bf16.msra.mxu0 0
    %1759 = vmatprep.subr.bf16.mxu0 0
    %1760 = vmatpush2.bf16.msra.mxu0 0
    %1761 = vmatprep.subr.bf16.mxu0 0
    %1762 = vmatpush2.bf16.msra.mxu0 0
    %1763 = vmatprep.subr.bf16.mxu0 0
    %1764 = vmatpush2.bf16.msra.mxu0 0
    %1765 = vmatprep.subr.bf16.mxu0 0
    %1766 = vmatpush2.bf16.msra.mxu0 0
    %1767 = vmatprep.mubr.bf16.mxu0 0
    %1768 = vmatmul.mubr.bf16.gmra.mxu0 %v1730
    %v1769 = vpop.f32.mrf.mxu0
    %v1770 = vadd.f32 0.0, %v1769
    %v1771 = vpop.f32.mrf.mxu0
    %v1772 = vpop.f32.mrf.mxu0
    %v1773 = vpop.f32.mrf.mxu0
    %1774 = vdwg.mxu0
    %v1776 = vsel %vm562, %v1559, 0
    %v1779 = vsel %vm714, %v1439, 0
    %1781 = vmatprep.subr.bf16.mxu0 0
    %1782 = vmatpush1.bf16.msra.mxu0 0
    %1783 = vmatprep.subr.bf16.mxu0 0
    %1784 = vmatpush1.bf16.msra.mxu0 0
    %1785 = vmatprep.subr.bf16.mxu0 0
    %1786 = vmatpush1.bf16.msra.mxu0 0
    %1787 = vmatprep.subr.bf16.mxu0 0
    %1788 = vmatpush1.bf16.msra.mxu0 0
    %1789 = vmatprep.subr.bf16.mxu0 0
    %1790 = vmatpush1.bf16.msra.mxu0 0
    %1791 = vmatprep.subr.bf16.mxu0 0
    %1792 = vmatpush1.bf16.msra.mxu0 0
    %1793 = vmatprep.subr.bf16.mxu0 0
    %1794 = vmatpush1.bf16.msra.mxu0 0
    %1795 = vmatprep.subr.bf16.mxu0 0
    %1796 = vmatpush1.bf16.msra.mxu0 %v1779
    %1797 = vmatprep.subr.bf16.mxu0 0
    %1798 = vmatpush2.bf16.msra.mxu0 0
    %1799 = vmatprep.subr.bf16.mxu0 0
    %1800 = vmatpush2.bf16.msra.mxu0 0
    %1801 = vmatprep.subr.bf16.mxu0 0
    %1802 = vmatpush2.bf16.msra.mxu0 0
    %1803 = vmatprep.subr.bf16.mxu0 0
    %1804 = vmatpush2.bf16.msra.mxu0 0
    %1805 = vmatprep.subr.bf16.mxu0 0
    %1806 = vmatpush2.bf16.msra.mxu0 0
    %1807 = vmatprep.subr.bf16.mxu0 0
    %1808 = vmatpush2.bf16.msra.mxu0 0
    %1809 = vmatprep.subr.bf16.mxu0 0
    %1810 = vmatpush2.bf16.msra.mxu0 0
    %1811 = vmatprep.subr.bf16.mxu0 0
    %1812 = vmatpush2.bf16.msra.mxu0 0
    %1813 = vmatprep.mubr.bf16.mxu0 0
    %1814 = vmatmul.mubr.bf16.gmra.mxu0 %v1776
    %v1815 = vpop.f32.mrf.mxu0
    %v1816 = vadd.f32 %v1724, %v1815
    %v1817 = vpop.f32.mrf.mxu0
    %v1818 = vpop.f32.mrf.mxu0
    %v1819 = vpop.f32.mrf.mxu0
    %1820 = vdwg.mxu0
    %v1822 = vsel %vm562, %v1560, 0
    %v1825 = vsel %vm714, %v1440, 0
    %1827 = vmatprep.subr.bf16.mxu0 0
    %1828 = vmatpush1.bf16.msra.mxu0 0
    %1829 = vmatprep.subr.bf16.mxu0 0
    %1830 = vmatpush1.bf16.msra.mxu0 0
    %1831 = vmatprep.subr.bf16.mxu0 0
    %1832 = vmatpush1.bf16.msra.mxu0 0
    %1833 = vmatprep.subr.bf16.mxu0 0
    %1834 = vmatpush1.bf16.msra.mxu0 0
    %1835 = vmatprep.subr.bf16.mxu0 0
    %1836 = vmatpush1.bf16.msra.mxu0 0
    %1837 = vmatprep.subr.bf16.mxu0 0
    %1838 = vmatpush1.bf16.msra.mxu0 0
    %1839 = vmatprep.subr.bf16.mxu0 0
    %1840 = vmatpush1.bf16.msra.mxu0 0
    %1841 = vmatprep.subr.bf16.mxu0 0
    %1842 = vmatpush1.bf16.msra.mxu0 %v1825
    %1843 = vmatprep.subr.bf16.mxu0 0
    %1844 = vmatpush2.bf16.msra.mxu0 0
    %1845 = vmatprep.subr.bf16.mxu0 0
    %1846 = vmatpush2.bf16.msra.mxu0 0
    %1847 = vmatprep.subr.bf16.mxu0 0
    %1848 = vmatpush2.bf16.msra.mxu0 0
    %1849 = vmatprep.subr.bf16.mxu0 0
    %1850 = vmatpush2.bf16.msra.mxu0 0
    %1851 = vmatprep.subr.bf16.mxu0 0
    %1852 = vmatpush2.bf16.msra.mxu0 0
    %1853 = vmatprep.subr.bf16.mxu0 0
    %1854 = vmatpush2.bf16.msra.mxu0 0
    %1855 = vmatprep.subr.bf16.mxu0 0
    %1856 = vmatpush2.bf16.msra.mxu0 0
    %1857 = vmatprep.subr.bf16.mxu0 0
    %1858 = vmatpush2.bf16.msra.mxu0 0
    %1859 = vmatprep.mubr.bf16.mxu0 0
    %1860 = vmatmul.mubr.bf16.gmra.mxu0 %v1822
    %v1861 = vpop.f32.mrf.mxu0
    %v1862 = vadd.f32 %v1770, %v1861
    %v1863 = vpop.f32.mrf.mxu0
    %v1864 = vpop.f32.mrf.mxu0
    %v1865 = vpop.f32.mrf.mxu0
    %1866 = vdwg.mxu0
    %v1867 = vpack.c.bf16 %v1862, %v1816
    %v1868 = vld [vmem:[#allocation6 + $0xc0] sm:$0xf]
    %v1869 = vld [vmem:[#allocation6 + $0xc4] sm:$0xf]
    %v1870 = vld [vmem:[#allocation6 + $0xc8] sm:$0xf]
    %v1871 = vld [vmem:[#allocation6 + $0xcc] sm:$0xf]
    %v1872 = vld [vmem:[%s5 + $0xf] sm:$0x1]
    %v1873 = vlaneseq
    %v1874 = vshrl.u32 %v1873, 7
    %v1875 = vsub.s32 0, %v1874
    %v1876 = vrot.slane %v1872, %v1875
    %v1881 = vunpack.c.l.b16 %v1868
    %v1882 = vunpack.c.l.b16 %v1869
    %v1883 = vunpack.c.l.b16 %v1870
    %v1884 = vunpack.c.l.b16 %v1871
    %v1885 = vpack.c.b16 %v1882, %v1881
    %v1886 = vpack.c.b16 %v1884, %v1883
    %v1890 = vsel %vm196, %v1867, 0
    %1892 = vmatprep.subr.bf16.mxu0 0
    %1893 = vmatpush1.bf16.msra.mxu0 0
    %1894 = vmatprep.subr.bf16.mxu0 0
    %1895 = vmatpush1.bf16.msra.mxu0 0
    %1896 = vmatprep.subr.bf16.mxu0 0
    %1897 = vmatpush1.bf16.msra.mxu0 0
    %1898 = vmatprep.subr.bf16.mxu0 0
    %1899 = vmatpush1.bf16.msra.mxu0 0
    %1900 = vmatprep.subr.bf16.mxu0 0
    %1901 = vmatpush1.bf16.msra.mxu0 0
    %1902 = vmatprep.subr.bf16.mxu0 0
    %1903 = vmatpush1.bf16.msra.mxu0 0
    %1904 = vmatprep.subr.bf16.mxu0 0
    %1905 = vmatpush1.bf16.msra.mxu0 %v1886
    %1906 = vmatprep.subr.bf16.mxu0 0
    %1907 = vmatpush1.bf16.msra.mxu0 %v1885
    %1908 = vmatprep.subr.bf16.mxu0 0
    %1909 = vmatpush2.bf16.msra.mxu0 0
    %1910 = vmatprep.subr.bf16.mxu0 0
    %1911 = vmatpush2.bf16.msra.mxu0 0
    %1912 = vmatprep.subr.bf16.mxu0 0
    %1913 = vmatpush2.bf16.msra.mxu0 0
    %1914 = vmatprep.subr.bf16.mxu0 0
    %1915 = vmatpush2.bf16.msra.mxu0 0
    %1916 = vmatprep.subr.bf16.mxu0 0
    %1917 = vmatpush2.bf16.msra.mxu0 0
    %1918 = vmatprep.subr.bf16.mxu0 0
    %1919 = vmatpush2.bf16.msra.mxu0 0
    %1920 = vmatprep.subr.bf16.mxu0 0
    %1921 = vmatpush2.bf16.msra.mxu0 0
    %1922 = vmatprep.subr.bf16.mxu0 0
    %1923 = vmatpush2.bf16.msra.mxu0 0
    %1924 = vmatprep.mubr.bf16.mxu0 0
    %1925 = vmatmul.mubr.bf16.gmra.mxu0 %v1890
    %v1926 = vpop.f32.mrf.mxu0
    %v1927 = vadd.f32 %v1876, %v1926
    %v1928 = vpop.f32.mrf.mxu0
    %v1929 = vpop.f32.mrf.mxu0
    %v1930 = vadd.f32 %v1876, %v1929
    %v1931 = vpop.f32.mrf.mxu0
    %1932 = vdwg.mxu0
    %v1933 = vadd.f32 %v1239, %v1927
    %v1934 = vadd.f32 %v1240, %v1930
    %v1935 = vld [vmem:[%s5 + $0x10] sm:$0x1]
    %v1936 = vld [vmem:[%s5 + $0x11] sm:$0x1]
    %v1937 = vsel %vm196, %v1933, 0.0
    %1938 = vadd.xlane.f32.xlu0 %v1937
    %v1939 = vpop.xlane.xlu0 %1938
    %v1940 = vsel %vm196, %v1934, 0.0
    %1941 = vadd.xlane.f32.xlu0 %v1940
    %v1942 = vpop.xlane.xlu0 %1941
    %v1943 = vmul.f32 %v1939, %v203
    %v1944 = vmul.f32 %v1942, %v203
    %v1945 = vsub.f32 %v1933, %v1943
    %v1946 = vsub.f32 %v1934, %v1944
    %v1947 = vmul.f32 %v1945, %v1945
    %v1948 = vmul.f32 %v1946, %v1946
    %v1949 = vsel %vm196, %v1947, 0.0
    %1950 = vadd.xlane.f32.xlu0 %v1949
    %v1951 = vpop.xlane.xlu0 %1950
    %v1952 = vsel %vm196, %v1948, 0.0
    %1953 = vadd.xlane.f32.xlu0 %v1952
    %v1954 = vpop.xlane.xlu0 %1953
    %v1955 = vmul.f32 %v1951, %v203
    %v1956 = vmul.f32 %v1954, %v203
    %v1957 = vadd.f32 %v1955, 1e-12
    %v1958 = vadd.f32 %v1956, 1e-12
    %v1959 = vrsqrt.pop %v1957
    %v1960 = vrsqrt.pop %v1958
    %v1961 = vmul.f32 %v1945, %v1959
    %v1962 = vmul.f32 %v1946, %v1960
    %v1963 = vlaneseq
    %v1964 = vshrl.u32 %v1963, 7
    %v1965 = vsub.s32 0, %v1964
    %v1966 = vrot.slane %v1935, %v1965
    %v1967 = vmul.f32 %v1961, %v1966
    %v1968 = vmul.f32 %v1962, %v1966
    %v1969 = vlaneseq
    %v1970 = vshrl.u32 %v1969, 7
    %v1971 = vsub.s32 0, %v1970
    %v1972 = vrot.slane %v1936, %v1971
    %v1973 = vadd.f32 %v1967, %v1972
    %v1974 = vadd.f32 %v1968, %v1972
    %v1975 = vpack.c.bf16 %v1974, %v1973
    %v1976 = vld [vmem:[#allocation6 + $0xd0] sm:$0xf]
    %v1977 = vld [vmem:[#allocation6 + $0xd4] sm:$0xf]
    %v1978 = vld [vmem:[#allocation6 + $0xd8] sm:$0xf]
    %v1979 = vld [vmem:[#allocation6 + $0xdc] sm:$0xf]
    %v1980 = vld [vmem:[%s5 + $0x12] sm:$0x1]
    %v1981 = vlaneseq
    %v1982 = vshrl.u32 %v1981, 7
    %v1983 = vsub.s32 0, %v1982
    %v1984 = vrot.slane %v1980, %v1983
    %v1989 = vunpack.c.l.b16 %v1976
    %v1990 = vunpack.c.l.b16 %v1977
    %v1991 = vunpack.c.l.b16 %v1978
    %v1992 = vunpack.c.l.b16 %v1979
    %v1993 = vpack.c.b16 %v1990, %v1989
    %v1994 = vpack.c.b16 %v1992, %v1991
    %v1998 = vsel %vm196, %v1975, 0
    %2000 = vmatprep.subr.bf16.mxu0 0
    %2001 = vmatpush1.bf16.msra.mxu0 0
    %2002 = vmatprep.subr.bf16.mxu0 0
    %2003 = vmatpush1.bf16.msra.mxu0 0
    %2004 = vmatprep.subr.bf16.mxu0 0
    %2005 = vmatpush1.bf16.msra.mxu0 0
    %2006 = vmatprep.subr.bf16.mxu0 0
    %2007 = vmatpush1.bf16.msra.mxu0 0
    %2008 = vmatprep.subr.bf16.mxu0 0
    %2009 = vmatpush1.bf16.msra.mxu0 0
    %2010 = vmatprep.subr.bf16.mxu0 0
    %2011 = vmatpush1.bf16.msra.mxu0 0
    %2012 = vmatprep.subr.bf16.mxu0 0
    %2013 = vmatpush1.bf16.msra.mxu0 %v1994
    %2014 = vmatprep.subr.bf16.mxu0 0
    %2015 = vmatpush1.bf16.msra.mxu0 %v1993
    %2016 = vmatprep.subr.bf16.mxu0 0
    %2017 = vmatpush2.bf16.msra.mxu0 0
    %2018 = vmatprep.subr.bf16.mxu0 0
    %2019 = vmatpush2.bf16.msra.mxu0 0
    %2020 = vmatprep.subr.bf16.mxu0 0
    %2021 = vmatpush2.bf16.msra.mxu0 0
    %2022 = vmatprep.subr.bf16.mxu0 0
    %2023 = vmatpush2.bf16.msra.mxu0 0
    %2024 = vmatprep.subr.bf16.mxu0 0
    %2025 = vmatpush2.bf16.msra.mxu0 0
    %2026 = vmatprep.subr.bf16.mxu0 0
    %2027 = vmatpush2.bf16.msra.mxu0 0
    %2028 = vmatprep.subr.bf16.mxu0 0
    %2029 = vmatpush2.bf16.msra.mxu0 0
    %2030 = vmatprep.subr.bf16.mxu0 0
    %2031 = vmatpush2.bf16.msra.mxu0 0
    %2032 = vmatprep.mubr.bf16.mxu0 0
    %2033 = vmatmul.mubr.bf16.gmra.mxu0 %v1998
    %v2034 = vpop.f32.mrf.mxu0
    %v2035 = vadd.f32 %v1984, %v2034
    %v2036 = vpop.f32.mrf.mxu0
    %v2037 = vpop.f32.mrf.mxu0
    %v2038 = vadd.f32 %v1984, %v2037
    %v2039 = vpop.f32.mrf.mxu0
    %2040 = vdwg.mxu0
    %v2041 = vmul.f32 %v2035, 0.5
    %v2042 = vmul.f32 %v2038, 0.5
    %v2043 = vmul.f32 %v2035, 0.044715
    %v2044 = vmul.f32 %v2038, 0.044715
    %v2045 = vmul.f32 %v2043, %v2035
    %v2046 = vmul.f32 %v2044, %v2038
    %v2047 = vmul.f32 %v2045, %v2035
    %v2048 = vmul.f32 %v2046, %v2038
    %v2049 = vadd.f32 %v2035, %v2047
    %v2050 = vadd.f32 %v2038, %v2048
    %v2051 = vmul.f32 %v2049, 0.7978846
    %v2052 = vmul.f32 %v2050, 0.7978846
    %v2053 = vtanh.pop %v2051
    %v2054 = vtanh.pop %v2052
    %v2055 = vadd.f32 %v2053, 1.0
    %v2056 = vadd.f32 %v2054, 1.0
    %v2057 = vmul.f32 %v2041, %v2055
    %v2058 = vmul.f32 %v2042, %v2056
    %v2059 = vpack.c.bf16 %v2058, %v2057
    %v2060 = vld [vmem:[#allocation6 + $0xe0] sm:$0xf]
    %v2061 = vld [vmem:[#allocation6 + $0xe4] sm:$0xf]
    %v2062 = vld [vmem:[#allocation6 + $0xe8] sm:$0xf]
    %v2063 = vld [vmem:[#allocation6 + $0xec] sm:$0xf]
    %v2064 = vld [vmem:[#allocation6 + $0xf0] sm:$0xf]
    %v2065 = vld [vmem:[#allocation6 + $0xf4] sm:$0xf]
    %v2066 = vld [vmem:[#allocation6 + $0xf8] sm:$0xf]
    %v2067 = vld [vmem:[#allocation6 + $0xfc] sm:$0xf]
    %v2068 = vld [vmem:[#allocation6 + $0x100] sm:$0xf]
    %v2069 = vld [vmem:[#allocation6 + $0x104] sm:$0xf]
    %v2070 = vld [vmem:[#allocation6 + $0x108] sm:$0xf]
    %v2071 = vld [vmem:[#allocation6 + $0x10c] sm:$0xf]
    %v2072 = vld [vmem:[#allocation6 + $0x110] sm:$0xf]
    %v2073 = vld [vmem:[#allocation6 + $0x114] sm:$0xf]
    %v2074 = vld [vmem:[#allocation6 + $0x118] sm:$0xf]
    %v2075 = vld [vmem:[#allocation6 + $0x11c] sm:$0xf]
    %v2076 = vld [vmem:[%s5 + $0x13] sm:$0x1]
    %v2077 = vlaneseq
    %v2078 = vshrl.u32 %v2077, 7
    %v2079 = vsub.s32 0, %v2078
    %v2080 = vrot.slane %v2076, %v2079
    %v2097 = vunpack.c.l.b16 %v2060
    %v2098 = vunpack.c.l.b16 %v2061
    %v2099 = vunpack.c.l.b16 %v2062
    %v2100 = vunpack.c.l.b16 %v2063
    %v2101 = vunpack.c.l.b16 %v2064
    %v2102 = vunpack.c.l.b16 %v2065
    %v2103 = vunpack.c.l.b16 %v2066
    %v2104 = vunpack.c.l.b16 %v2067
    %v2105 = vunpack.c.l.b16 %v2068
    %v2106 = vunpack.c.l.b16 %v2069
    %v2107 = vunpack.c.l.b16 %v2070
    %v2108 = vunpack.c.l.b16 %v2071
    %v2109 = vunpack.c.l.b16 %v2072
    %v2110 = vunpack.c.l.b16 %v2073
    %v2111 = vunpack.c.l.b16 %v2074
    %v2112 = vunpack.c.l.b16 %v2075
    %v2113 = vpack.c.b16 %v2098, %v2097
    %v2114 = vpack.c.b16 %v2100, %v2099
    %v2115 = vpack.c.b16 %v2102, %v2101
    %v2116 = vpack.c.b16 %v2104, %v2103
    %v2117 = vpack.c.b16 %v2106, %v2105
    %v2118 = vpack.c.b16 %v2108, %v2107
    %v2119 = vpack.c.b16 %v2110, %v2109
    %v2120 = vpack.c.b16 %v2112, %v2111
    %2129 = vmatprep.subr.bf16.mxu0 0
    %2130 = vmatpush1.bf16.msra.mxu0 %v2120
    %2131 = vmatprep.subr.bf16.mxu0 0
    %2132 = vmatpush1.bf16.msra.mxu0 %v2119
    %2133 = vmatprep.subr.bf16.mxu0 0
    %2134 = vmatpush1.bf16.msra.mxu0 %v2118
    %2135 = vmatprep.subr.bf16.mxu0 0
    %2136 = vmatpush1.bf16.msra.mxu0 %v2117
    %2137 = vmatprep.subr.bf16.mxu0 0
    %2138 = vmatpush1.bf16.msra.mxu0 %v2116
    %2139 = vmatprep.subr.bf16.mxu0 0
    %2140 = vmatpush1.bf16.msra.mxu0 %v2115
    %2141 = vmatprep.subr.bf16.mxu0 0
    %2142 = vmatpush1.bf16.msra.mxu0 %v2114
    %2143 = vmatprep.subr.bf16.mxu0 0
    %2144 = vmatpush1.bf16.msra.mxu0 %v2113
    %2145 = vmatprep.subr.bf16.mxu0 0
    %2146 = vmatpush2.bf16.msra.mxu0 0
    %2147 = vmatprep.subr.bf16.mxu0 0
    %2148 = vmatpush2.bf16.msra.mxu0 0
    %2149 = vmatprep.subr.bf16.mxu0 0
    %2150 = vmatpush2.bf16.msra.mxu0 0
    %2151 = vmatprep.subr.bf16.mxu0 0
    %2152 = vmatpush2.bf16.msra.mxu0 0
    %2153 = vmatprep.subr.bf16.mxu0 0
    %2154 = vmatpush2.bf16.msra.mxu0 0
    %2155 = vmatprep.subr.bf16.mxu0 0
    %2156 = vmatpush2.bf16.msra.mxu0 0
    %2157 = vmatprep.subr.bf16.mxu0 0
    %2158 = vmatpush2.bf16.msra.mxu0 0
    %2159 = vmatprep.subr.bf16.mxu0 0
    %2160 = vmatpush2.bf16.msra.mxu0 0
    %2161 = vmatprep.mubr.bf16.mxu0 0
    %2162 = vmatmul.mubr.bf16.gmra.mxu0 %v2059
    %v2163 = vpop.f32.mrf.mxu0
    %v2164 = vadd.f32 %v2080, %v2163
    %v2165 = vpop.f32.mrf.mxu0
    %v2166 = vpop.f32.mrf.mxu0
    %v2167 = vadd.f32 %v2080, %v2166
    %v2168 = vpop.f32.mrf.mxu0
    %2169 = vdwg.mxu0
    %v2170 = vadd.f32 %v1973, %v2164
    %v2171 = vadd.f32 %v1974, %v2167
    %v2172 = vld [vmem:[%s5 + $0x14] sm:$0x1]
    %v2173 = vld [vmem:[%s5 + $0x15] sm:$0x1]
    %v2174 = vsel %vm196, %v2170, 0.0
    %2175 = vadd.xlane.f32.xlu0 %v2174
    %v2176 = vpop.xlane.xlu0 %2175
    %v2177 = vsel %vm196, %v2171, 0.0
    %2178 = vadd.xlane.f32.xlu0 %v2177
    %v2179 = vpop.xlane.xlu0 %2178
    %v2180 = vmul.f32 %v2176, %v203
    %v2181 = vmul.f32 %v2179, %v203
    %v2182 = vsub.f32 %v2170, %v2180
    %v2183 = vsub.f32 %v2171, %v2181
    %v2184 = vmul.f32 %v2182, %v2182
    %v2185 = vmul.f32 %v2183, %v2183
    %v2186 = vsel %vm196, %v2184, 0.0
    %2187 = vadd.xlane.f32.xlu0 %v2186
    %v2188 = vpop.xlane.xlu0 %2187
    %v2189 = vsel %vm196, %v2185, 0.0
    %2190 = vadd.xlane.f32.xlu0 %v2189
    %v2191 = vpop.xlane.xlu0 %2190
    %v2192 = vmul.f32 %v2188, %v203
    %v2193 = vmul.f32 %v2191, %v203
    %v2194 = vadd.f32 %v2192, 1e-12
    %v2195 = vadd.f32 %v2193, 1e-12
    %v2196 = vrsqrt.pop %v2194
    %v2197 = vrsqrt.pop %v2195
    %v2198 = vmul.f32 %v2182, %v2196
    %v2199 = vmul.f32 %v2183, %v2197
    %v2200 = vlaneseq
    %v2201 = vshrl.u32 %v2200, 7
    %v2202 = vsub.s32 0, %v2201
    %v2203 = vrot.slane %v2172, %v2202
    %v2204 = vmul.f32 %v2198, %v2203
    %v2205 = vmul.f32 %v2199, %v2203
    %v2206 = vlaneseq
    %v2207 = vshrl.u32 %v2206, 7
    %v2208 = vsub.s32 0, %v2207
    %v2209 = vrot.slane %v2173, %v2208
    %v2210 = vadd.f32 %v2204, %v2209
    %v2211 = vadd.f32 %v2205, %v2209
    %v2213 = vrot.slane %v2211, 7
    %vm2215 = vcmask 1040384
    %v2216 = vsel %vm2215, %v2210, %v2213
    %v2217 = vpack.c.bf16 %v2216, %v2216
    %v2218 = vld [vmem:[#allocation6 + $0x120] sm:$0xf]
    %v2219 = vld [vmem:[#allocation6 + $0x124] sm:$0xf]
    %v2220 = vld [vmem:[#allocation6 + $0x128] sm:$0xf]
    %v2221 = vld [vmem:[#allocation6 + $0x12c] sm:$0xf]
    %v2222 = vld [vmem:[%s5 + $0x16] sm:$0x1]
    %v2223 = vlaneseq
    %v2224 = vshrl.u32 %v2223, 7
    %v2225 = vsub.s32 0, %v2224
    %v2226 = vrot.slane %v2222, %v2225
    %v2231 = vunpack.c.l.b16 %v2218
    %v2232 = vunpack.c.l.b16 %v2219
    %v2233 = vunpack.c.l.b16 %v2220
    %v2234 = vunpack.c.l.b16 %v2221
    %v2235 = vpack.c.b16 %v2232, %v2231
    %v2236 = vpack.c.b16 %v2234, %v2233
    %v2240 = vsel %vm196, %v2217, 0
    %2242 = vmatprep.subr.bf16.mxu0 0
    %2243 = vmatpush1.bf16.msra.mxu0 0
    %2244 = vmatprep.subr.bf16.mxu0 0
    %2245 = vmatpush1.bf16.msra.mxu0 0
    %2246 = vmatprep.subr.bf16.mxu0 0
    %2247 = vmatpush1.bf16.msra.mxu0 0
    %2248 = vmatprep.subr.bf16.mxu0 0
    %2249 = vmatpush1.bf16.msra.mxu0 0
    %2250 = vmatprep.subr.bf16.mxu0 0
    %2251 = vmatpush1.bf16.msra.mxu0 0
    %2252 = vmatprep.subr.bf16.mxu0 0
    %2253 = vmatpush1.bf16.msra.mxu0 0
    %2254 = vmatprep.subr.bf16.mxu0 0
    %2255 = vmatpush1.bf16.msra.mxu0 %v2236
    %2256 = vmatprep.subr.bf16.mxu0 0
    %2257 = vmatpush1.bf16.msra.mxu0 %v2235
    %2258 = vmatprep.subr.bf16.mxu0 0
    %2259 = vmatpush2.bf16.msra.mxu0 0
    %2260 = vmatprep.subr.bf16.mxu0 0
    %2261 = vmatpush2.bf16.msra.mxu0 0
    %2262 = vmatprep.subr.bf16.mxu0 0
    %2263 = vmatpush2.bf16.msra.mxu0 0
    %2264 = vmatprep.subr.bf16.mxu0 0
    %2265 = vmatpush2.bf16.msra.mxu0 0
    %2266 = vmatprep.subr.bf16.mxu0 0
    %2267 = vmatpush2.bf16.msra.mxu0 0
    %2268 = vmatprep.subr.bf16.mxu0 0
    %2269 = vmatpush2.bf16.msra.mxu0 0
    %2270 = vmatprep.subr.bf16.mxu0 0
    %2271 = vmatpush2.bf16.msra.mxu0 0
    %2272 = vmatprep.subr.bf16.mxu0 0
    %2273 = vmatpush2.bf16.msra.mxu0 0
    %2274 = vmatprep.mubr.bf16.mxu0 0
    %2275 = vmatmul.mubr.bf16.gmra.mxu0 %v2240
    %v2276 = vpop.f32.mrf.mxu0
    %v2277 = vadd.f32 %v2226, %v2276
    %v2278 = vpop.f32.mrf.mxu0
    %v2279 = vpop.f32.mrf.mxu0
    %v2280 = vpop.f32.mrf.mxu0
    %2281 = vdwg.mxu0
    %2283 = vrot.lane.b32.xlu0 %v2277, 32
    %v2284 = vpop.permute.xlu0 %2283
    %v2286 = vsel %vm196, %v2216, %v2284
    %vm2287 = vcmask 293888
    %v2288 = vsel %vm2287, %v2286, 0.0
    %2289 = vst [vmem:[%s6] sm:$0x3] %v2288
    // Predicated region
    $region22: #{pt_forward.1} parent=1 // pred_check
      _
    $region23: #{pt_forward.1} parent=1 // pred_check_branch
      %2291 = sbr.rel (0) target = $region25
    $region24: #{pt_forward.1} parent=1 // pred_region
      _
    $region25: #{pt_forward.1} parent=1 // pred_fallthru
      _
    // Predicated region
    $region26: #{pt_forward.1} parent=1 // pred_check
      _
    $region27: #{pt_forward.1} parent=1 // pred_check_branch
      %2293 = sbr.rel (0) target = $region29
    $region28: #{pt_forward.1} parent=1 // pred_region
      _
    $region29: #{pt_forward.1} parent=1 // pred_fallthru
      _
    %2294 = vsyncpa [#allocation7], 1

</llo_original>
